<compile_context>
chip_gen: v5e
topology: v5e:2x2
jax: 0.10.0
libtpu: 0.0.40
codegen_flags: <defaults>
</compile_context>

<pallas_src>
import math

import jax
import jax.numpy as jnp
from jax.experimental import pallas as pl
from jax.experimental.pallas import tpu as pltpu


# ----------------------------- in-kernel helpers -----------------------------

def _layer_norm(x, w, b, eps):
    mu = jnp.mean(x, axis=-1, keepdims=True)
    var = jnp.mean((x - mu) ** 2, axis=-1, keepdims=True)
    return (x - mu) * jax.lax.rsqrt(var + eps) * w + b


def _gelu_exact(x):
    # nn.GELU() default = exact erf formulation
    return 0.5 * x * (1.0 + jax.lax.erf(x * (1.0 / math.sqrt(2.0))))


# ------------------------- fused whole-forward kernel -------------------------

def make_fused_kernel(depth, n_heads, seq_len, block_eps=1e-6, final_eps=1e-6):
    # block_eps = 1e-6 (explicit in the PyTorch spec: norm_layer(embed_dim, eps=1e-06)).
    # final_eps defaults to 1e-6, matching norm_layer=None -> partial(nn.LayerNorm, eps=1e-06);
    # set final_eps=1e-5 if a bare nn.LayerNorm was passed for norm_layer.
    def kernel(x_ref, pe_ref,
               ln1w_ref, ln1b_ref, qkvw_ref, qkvb_ref, projw_ref, projb_ref,
               ln2w_ref, ln2b_ref, fc1w_ref, fc1b_ref, fc2w_ref, fc2b_ref,
               normw_ref, normb_ref,
               wih_ref, whh_ref, bih_ref, bhh_ref,
               headw_ref, headb_ref,
               o_ref):
        T = seq_len
        H = n_heads
        x = x_ref[0].astype(jnp.float32)                 # (T, E)
        E = x.shape[-1]
        dh = E // H
        scale = dh ** -0.5

        # positional encoding (pos_drop is an inference no-op)
        x = x + pe_ref[...]

        for d in range(depth):                            # static unroll over depth
            # ---- x = x + Attn(LN1(x)) ----
            xn = _layer_norm(x, ln1w_ref[d], ln1b_ref[d], block_eps)
            # per-head q/k/v in one batched dot: (3H, T, E) @ (3H, E, dh) -> (3H, T, dh)
            xb = jnp.broadcast_to(xn[None], (3 * H, T, E))
            qkv = jnp.einsum('gte,gef->gtf', xb, qkvw_ref[d],
                             preferred_element_type=jnp.float32) + qkvb_ref[d]
            q = qkv[0 * H:1 * H]                          # (H, T, dh) - leading-axis slices
            k = qkv[1 * H:2 * H]
            v = qkv[2 * H:3 * H]
            s = jnp.einsum('htf,hsf->hts', q, k,
                           preferred_element_type=jnp.float32) * scale   # (H, T, T)
            s = s - jnp.max(s, axis=-1, keepdims=True)
            p = jnp.exp(s)
            p = p * pl.reciprocal(jnp.sum(p, axis=-1, keepdims=True), approx=True)
            o = jnp.einsum('hts,hsf->htf', p, v,
                           preferred_element_type=jnp.float32)           # (H, T, dh)
            # head-merge folded into per-head proj slabs (H, dh, E): no concatenate
            oh = jnp.einsum('htf,hfe->hte', o, projw_ref[d],
                            preferred_element_type=jnp.float32)          # (H, T, E)
            attn = jnp.sum(oh, axis=0) + projb_ref[d]                    # (T, E)
            x = x + attn

            # ---- x = x + MLP(LN2(x)) ----
            xn2 = _layer_norm(x, ln2w_ref[d], ln2b_ref[d], block_eps)
            h1 = jnp.dot(xn2, fc1w_ref[d],
                         preferred_element_type=jnp.float32) + fc1b_ref[d]
            h1 = _gelu_exact(h1)
            h2 = jnp.dot(h1, fc2w_ref[d],
                         preferred_element_type=jnp.float32) + fc2b_ref[d]
            x = x + h2

        # ---- final LayerNorm + LSTM input contribution, hoisted out of recurrence ----
        xn_f = _layer_norm(x, normw_ref[...], normb_ref[...], final_eps)  # (T, E)
        xg = jnp.broadcast_to(xn_f[None], (4, T, E))
        # gate order (PyTorch): i, f, g, o along the leading axis
        pre = (jnp.einsum('gte,gef->gtf', xg, wih_ref[...],
                          preferred_element_type=jnp.float32)
               + bih_ref[...] + bhh_ref[...])                             # (4, T, E)

        h = jnp.zeros((1, E), jnp.float32)
        c = jnp.zeros((1, E), jnp.float32)
        for t in range(T):                                # static unroll (small T)
            hb = jnp.broadcast_to(h[None], (4, 1, E))
            rec = jnp.einsum('gbe,gef->gbf', hb, whh_ref[...],
                             preferred_element_type=jnp.float32)          # (4, 1, E)
            g_all = pre[:, t:t + 1, :] + rec                              # (4, 1, E)
            i_g = jax.nn.sigmoid(g_all[0])
            f_g = jax.nn.sigmoid(g_all[1])
            g_g = jnp.tanh(g_all[2])
            o_g = jax.nn.sigmoid(g_all[3])
            c = f_g * c + i_g * g_g
            h = o_g * jnp.tanh(c)

        # ---- classification head on the last hidden state (128-lane padded) ----
        logits = jnp.dot(h, headw_ref[...],
                         preferred_element_type=jnp.float32) + headb_ref[...]  # (1, Cpad)
        o_ref[0] = logits.astype(o_ref.dtype)
    return kernel


# ------------------------------- full forward ---------------------------------

def transformer_forward(x4d, kp, n_classes):
    """x4d: (B, T, grid_h, grid_v); kp: kernel-layout params (see pack_params)."""
    B, T, gh, gv = x4d.shape
    E = gh * gv
    depth = kp["ln1_w"].shape[0]
    n_heads = kp["qkv_w"].shape[1] // 3
    Cpad = kp["head_w"].shape[-1]

    x = x4d.reshape(B, T, E).astype(jnp.float32)          # Embedding: flatten(2)
    pe = kp["pe"][:T]                                      # (T, E)

    def rep(a):                                            # full-array, grid-invariant block
        return pl.BlockSpec(a.shape, lambda b, _r=a.ndim: (0,) * _r)

    args = (x, pe,
            kp["ln1_w"], kp["ln1_b"], kp["qkv_w"], kp["qkv_b"],
            kp["proj_w"], kp["proj_b"], kp["ln2_w"], kp["ln2_b"],
            kp["fc1_w"], kp["fc1_b"], kp["fc2_w"], kp["fc2_b"],
            kp["norm_w"], kp["norm_b"],
            kp["lstm_wih"], kp["lstm_whh"], kp["lstm_bih"], kp["lstm_bhh"],
            kp["head_w"], kp["head_b"])
    in_specs = ([pl.BlockSpec((1, T, E), lambda b: (b, 0, 0))]
                + [rep(a) for a in args[1:]])

    out = pl.pallas_call(
        make_fused_kernel(depth, n_heads, T),
        out_shape=jax.ShapeDtypeStruct((B, 1, Cpad), jnp.float32),
        grid=(B,),
        in_specs=in_specs,
        out_specs=pl.BlockSpec((1, 1, Cpad), lambda b: (b, 0, 0)),
        compiler_params=pltpu.CompilerParams(dimension_semantics=("parallel",)),
    )(*args)
    return out.reshape(B, Cpad)[:, :n_classes]


# ------------------------------ parameter setup -------------------------------

def sinusoid_positional_encoding(max_len, embed_dim):
    position = jnp.arange(max_len, dtype=jnp.float32)[:, None]
    div_term = jnp.exp(jnp.arange(0, embed_dim, 2, dtype=jnp.float32)
                       * (-math.log(10000.0) / embed_dim))
    pe = jnp.zeros((max_len, embed_dim), jnp.float32)
    pe = pe.at[:, 0::2].set(jnp.sin(position * div_term))
    pe = pe.at[:, 1::2].set(jnp.cos(position * div_term))
    return pe                                              # == pe.T in the PyTorch module


def init_torch_like_params(key, E, depth, mlp_ratio, n_classes):
    """Parameters in native PyTorch layouts (what state_dict would hold)."""
    Hm = int(E * mlp_ratio)
    std = 0.02
    keys = jax.random.split(key, depth * 4 + 3)

    def w(k, shape):
        return (std * jax.random.normal(k, shape)).astype(jnp.float32)

    blocks = []
    for d in range(depth):
        k0, k1, k2, k3 = keys[d * 4:(d + 1) * 4]
        blocks.append(dict(
            ln1_w=jnp.ones((E,), jnp.float32), ln1_b=jnp.zeros((E,), jnp.float32),
            qkv_w=w(k0, (3 * E, E)), qkv_b=jnp.zeros((3 * E,), jnp.float32),
            proj_w=w(k1, (E, E)), proj_b=jnp.zeros((E,), jnp.float32),
            ln2_w=jnp.ones((E,), jnp.float32), ln2_b=jnp.zeros((E,), jnp.float32),
            fc1_w=w(k2, (Hm, E)), fc1_b=jnp.zeros((Hm,), jnp.float32),
            fc2_w=w(k3, (E, Hm)), fc2_b=jnp.zeros((E,), jnp.float32),
        ))
    kih, khh, kh = keys[depth * 4:]
    return dict(
        blocks=blocks,
        norm_w=jnp.ones((E,), jnp.float32), norm_b=jnp.zeros((E,), jnp.float32),
        lstm_w_ih=w(kih, (4 * E, E)), lstm_w_hh=w(khh, (4 * E, E)),
        lstm_b_ih=jnp.zeros((4 * E,), jnp.float32),
        lstm_b_hh=jnp.zeros((4 * E,), jnp.float32),
        head_w=w(kh, (n_classes, E)), head_b=jnp.zeros((n_classes,), jnp.float32),
    )


def pack_params(tp, *, E, n_heads, max_len, n_classes, lane=128):
    """Convert PyTorch-layout params into the layouts the fused kernel expects."""
    H = n_heads
    dh = E // H
    Cpad = max(lane, ((n_classes + lane - 1) // lane) * lane)

    def stack(fn):
        return jnp.stack([fn(b) for b in tp["blocks"]], axis=0)

    return dict(
        pe=sinusoid_positional_encoding(max_len, E),
        ln1_w=stack(lambda b: b["ln1_w"].reshape(1, E)),
        ln1_b=stack(lambda b: b["ln1_b"].reshape(1, E)),
        # qkv.weight (3E, E) -> per-head slabs (3H, E_in, dh); order [q heads, k heads, v heads]
        qkv_w=stack(lambda b: b["qkv_w"].reshape(3, H, dh, E)
                    .transpose(0, 1, 3, 2).reshape(3 * H, E, dh)),
        qkv_b=stack(lambda b: b["qkv_b"].reshape(3 * H, 1, dh)),
        # proj.weight (E, E) -> per-head slabs (H, dh, E_out): head-merge folded into proj
        proj_w=stack(lambda b: b["proj_w"].T.reshape(H, dh, E)),
        proj_b=stack(lambda b: b["proj_b"].reshape(1, E)),
        ln2_w=stack(lambda b: b["ln2_w"].reshape(1, E)),
        ln2_b=stack(lambda b: b["ln2_b"].reshape(1, E)),
        fc1_w=stack(lambda b: b["fc1_w"].T),
        fc1_b=stack(lambda b: b["fc1_b"].reshape(1, -1)),
        fc2_w=stack(lambda b: b["fc2_w"].T),
        fc2_b=stack(lambda b: b["fc2_b"].reshape(1, E)),
        norm_w=tp["norm_w"].reshape(1, E),
        norm_b=tp["norm_b"].reshape(1, E),
        # LSTM weight_ih/hh (4E, E), gate order i,f,g,o -> (4, E_in, E_gate_out)
        lstm_wih=tp["lstm_w_ih"].reshape(4, E, E).transpose(0, 2, 1),
        lstm_whh=tp["lstm_w_hh"].reshape(4, E, E).transpose(0, 2, 1),
        lstm_bih=tp["lstm_b_ih"].reshape(4, 1, E),
        lstm_bhh=tp["lstm_b_hh"].reshape(4, 1, E),
        # head.weight (C, E) -> (E, Cpad), zero-padded so the store is a full 128-lane vst
        head_w=jnp.zeros((E, Cpad), jnp.float32).at[:, :n_classes].set(tp["head_w"].T),
        head_b=jnp.zeros((1, Cpad), jnp.float32).at[0, :n_classes].set(tp["head_b"]),
    )


# ---------------------------------- main ---------------------------------------

if __name__ == "__main__":
    # small, self-consistent shapes: embed_dim must equal grid_h * grid_v
    batch = 2
    seq_len = 8          # temporal sequence length (T)
    grid = (4, 8)        # electrode grid -> E = 32
    embed_dim = grid[0] * grid[1]
    depth = 2
    n_heads = 4
    mlp_ratio = 4
    n_classes = 5
    max_len = 100

    key = jax.random.PRNGKey(0)
    kx, kp = jax.random.split(key)
    x = jax.random.normal(kx, (batch, seq_len, grid[0], grid[1]), jnp.float32)

    torch_params = init_torch_like_params(kp, embed_dim, depth, mlp_ratio, n_classes)
    kparams = pack_params(torch_params, E=embed_dim, n_heads=n_heads,
                          max_len=max_len, n_classes=n_classes)

    fwd = jax.jit(transformer_forward, static_argnums=2)
    logits = fwd(x, kparams, n_classes)
    logits = jax.block_until_ready(logits)
    assert logits.shape == (batch, n_classes)
    print("KERNEL_OK")
</pallas_src>

<mosaic_0001>
module attributes {stable_mosaic.version = 11 : i64} {
  func.func @kernel(%arg0: i32, %arg1: memref<1x8x32xf32, #tpu.memory_space<vmem>>, %arg2: memref<8x32xf32, #tpu.memory_space<vmem>>, %arg3: memref<2x1x32xf32, #tpu.memory_space<vmem>>, %arg4: memref<2x1x32xf32, #tpu.memory_space<vmem>>, %arg5: memref<2x12x32x8xf32, #tpu.memory_space<vmem>>, %arg6: memref<2x12x1x8xf32, #tpu.memory_space<vmem>>, %arg7: memref<2x4x8x32xf32, #tpu.memory_space<vmem>>, %arg8: memref<2x1x32xf32, #tpu.memory_space<vmem>>, %arg9: memref<2x1x32xf32, #tpu.memory_space<vmem>>, %arg10: memref<2x1x32xf32, #tpu.memory_space<vmem>>, %arg11: memref<2x32x128xf32, #tpu.memory_space<vmem>>, %arg12: memref<2x1x128xf32, #tpu.memory_space<vmem>>, %arg13: memref<2x128x32xf32, #tpu.memory_space<vmem>>, %arg14: memref<2x1x32xf32, #tpu.memory_space<vmem>>, %arg15: memref<1x32xf32, #tpu.memory_space<vmem>>, %arg16: memref<1x32xf32, #tpu.memory_space<vmem>>, %arg17: memref<4x32x32xf32, #tpu.memory_space<vmem>>, %arg18: memref<4x32x32xf32, #tpu.memory_space<vmem>>, %arg19: memref<4x1x32xf32, #tpu.memory_space<vmem>>, %arg20: memref<4x1x32xf32, #tpu.memory_space<vmem>>, %arg21: memref<32x128xf32, #tpu.memory_space<vmem>>, %arg22: memref<1x128xf32, #tpu.memory_space<vmem>>, %arg23: memref<1x1x128xf32, #tpu.memory_space<vmem>>) attributes {dimension_semantics = [#tpu.dimension_semantics<parallel>], iteration_bounds = array<i64: 2>, scalar_prefetch = 0 : i64, scratch_operands = 0 : i64, tpu.core_type = #tpu.core_type<tc>, window_params = [{transform_indices = @transform_0, window_bounds = array<i64: 1, 8, 32>}, {pipeline_mode = #tpu.pipeline_mode<synchronous>, transform_indices = @transform_1, window_bounds = array<i64: 8, 32>}, {pipeline_mode = #tpu.pipeline_mode<synchronous>, transform_indices = @transform_2, window_bounds = array<i64: 2, 1, 32>}, {pipeline_mode = #tpu.pipeline_mode<synchronous>, transform_indices = @transform_3, window_bounds = array<i64: 2, 1, 32>}, {pipeline_mode = #tpu.pipeline_mode<synchronous>, transform_indices = @transform_4, window_bounds = array<i64: 2, 12, 32, 8>}, {pipeline_mode = #tpu.pipeline_mode<synchronous>, transform_indices = @transform_5, window_bounds = array<i64: 2, 12, 1, 8>}, {pipeline_mode = #tpu.pipeline_mode<synchronous>, transform_indices = @transform_6, window_bounds = array<i64: 2, 4, 8, 32>}, {pipeline_mode = #tpu.pipeline_mode<synchronous>, transform_indices = @transform_7, window_bounds = array<i64: 2, 1, 32>}, {pipeline_mode = #tpu.pipeline_mode<synchronous>, transform_indices = @transform_8, window_bounds = array<i64: 2, 1, 32>}, {pipeline_mode = #tpu.pipeline_mode<synchronous>, transform_indices = @transform_9, window_bounds = array<i64: 2, 1, 32>}, {pipeline_mode = #tpu.pipeline_mode<synchronous>, transform_indices = @transform_10, window_bounds = array<i64: 2, 32, 128>}, {pipeline_mode = #tpu.pipeline_mode<synchronous>, transform_indices = @transform_11, window_bounds = array<i64: 2, 1, 128>}, {pipeline_mode = #tpu.pipeline_mode<synchronous>, transform_indices = @transform_12, window_bounds = array<i64: 2, 128, 32>}, {pipeline_mode = #tpu.pipeline_mode<synchronous>, transform_indices = @transform_13, window_bounds = array<i64: 2, 1, 32>}, {pipeline_mode = #tpu.pipeline_mode<synchronous>, transform_indices = @transform_14, window_bounds = array<i64: 1, 32>}, {pipeline_mode = #tpu.pipeline_mode<synchronous>, transform_indices = @transform_15, window_bounds = array<i64: 1, 32>}, {pipeline_mode = #tpu.pipeline_mode<synchronous>, transform_indices = @transform_16, window_bounds = array<i64: 4, 32, 32>}, {pipeline_mode = #tpu.pipeline_mode<synchronous>, transform_indices = @transform_17, window_bounds = array<i64: 4, 32, 32>}, {pipeline_mode = #tpu.pipeline_mode<synchronous>, transform_indices = @transform_18, window_bounds = array<i64: 4, 1, 32>}, {pipeline_mode = #tpu.pipeline_mode<synchronous>, transform_indices = @transform_19, window_bounds = array<i64: 4, 1, 32>}, {pipeline_mode = #tpu.pipeline_mode<synchronous>, transform_indices = @transform_20, window_bounds = array<i64: 32, 128>}, {pipeline_mode = #tpu.pipeline_mode<synchronous>, transform_indices = @transform_21, window_bounds = array<i64: 1, 128>}, {transform_indices = @transform_22, window_bounds = array<i64: 1, 1, 128>}]} {
    %c0 = arith.constant 0 : index
    %c0_0 = arith.constant 0 : index
    %c0_1 = arith.constant 0 : index
    %0 = vector.load %arg1[%c0, %c0_0, %c0_1] : memref<1x8x32xf32, #tpu.memory_space<vmem>>, vector<1x8x32xf32>
    %1 = vector.shape_cast %0 : vector<1x8x32xf32> to vector<8x32xf32>
    %c0_2 = arith.constant 0 : index
    %c0_3 = arith.constant 0 : index
    %2 = vector.load %arg2[%c0_2, %c0_3] : memref<8x32xf32, #tpu.memory_space<vmem>>, vector<8x32xf32>
    %3 = arith.addf %1, %2 : vector<8x32xf32>
    %c0_4 = arith.constant 0 : index
    %c0_5 = arith.constant 0 : index
    %c0_6 = arith.constant 0 : index
    %4 = vector.load %arg3[%c0_4, %c0_5, %c0_6] : memref<2x1x32xf32, #tpu.memory_space<vmem>>, vector<1x1x32xf32>
    %5 = vector.shape_cast %4 : vector<1x1x32xf32> to vector<1x32xf32>
    %c0_7 = arith.constant 0 : index
    %c0_8 = arith.constant 0 : index
    %c0_9 = arith.constant 0 : index
    %6 = vector.load %arg4[%c0_7, %c0_8, %c0_9] : memref<2x1x32xf32, #tpu.memory_space<vmem>>, vector<1x1x32xf32>
    %7 = vector.shape_cast %6 : vector<1x1x32xf32> to vector<1x32xf32>
    %cst = arith.constant dense<0.000000e+00> : vector<8xf32>
    %8 = vector.multi_reduction <add>, %3, %cst [1] : vector<8x32xf32> to vector<8xf32>
    %9 = vector.shape_cast %8 : vector<8xf32> to vector<8x1xf32>
    %cst_10 = arith.constant 3.200000e+01 : f32
    %10 = vector.broadcast %cst_10 : f32 to vector<8x1xf32>
    %11 = arith.divf %9, %10 : vector<8x1xf32>
    %12 = vector.broadcast %11 : vector<8x1xf32> to vector<8x32xf32>
    %13 = arith.subf %3, %12 : vector<8x32xf32>
    %14 = arith.mulf %13, %13 : vector<8x32xf32>
    %cst_11 = arith.constant dense<0.000000e+00> : vector<8xf32>
    %15 = vector.multi_reduction <add>, %14, %cst_11 [1] : vector<8x32xf32> to vector<8xf32>
    %16 = vector.shape_cast %15 : vector<8xf32> to vector<8x1xf32>
    %cst_12 = arith.constant 3.200000e+01 : f32
    %17 = vector.broadcast %cst_12 : f32 to vector<8x1xf32>
    %18 = arith.divf %16, %17 : vector<8x1xf32>
    %19 = vector.broadcast %11 : vector<8x1xf32> to vector<8x32xf32>
    %20 = arith.subf %3, %19 : vector<8x32xf32>
    %cst_13 = arith.constant 9.99999997E-7 : f32
    %21 = vector.broadcast %cst_13 : f32 to vector<8x1xf32>
    %22 = arith.addf %18, %21 : vector<8x1xf32>
    %23 = math.rsqrt %22 : vector<8x1xf32>
    %24 = vector.broadcast %23 : vector<8x1xf32> to vector<8x32xf32>
    %25 = arith.mulf %20, %24 : vector<8x32xf32>
    %26 = vector.broadcast %5 : vector<1x32xf32> to vector<8x32xf32>
    %27 = arith.mulf %25, %26 : vector<8x32xf32>
    %28 = vector.broadcast %7 : vector<1x32xf32> to vector<8x32xf32>
    %29 = arith.addf %27, %28 : vector<8x32xf32>
    %30 = vector.shape_cast %29 : vector<8x32xf32> to vector<1x8x32xf32>
    %31 = vector.shape_cast %30 : vector<1x8x32xf32> to vector<1x8x32xf32>
    %32 = vector.broadcast %31 : vector<1x8x32xf32> to vector<12x8x32xf32>
    %c0_14 = arith.constant 0 : index
    %c0_15 = arith.constant 0 : index
    %c0_16 = arith.constant 0 : index
    %c0_17 = arith.constant 0 : index
    %33 = vector.load %arg5[%c0_14, %c0_15, %c0_16, %c0_17] : memref<2x12x32x8xf32, #tpu.memory_space<vmem>>, vector<1x12x32x8xf32>
    %34 = vector.shape_cast %33 : vector<1x12x32x8xf32> to vector<12x32x8xf32>
    "tpu.trace_start"() <{level = 10 : i32, message = "gte,gef->gtf"}> : () -> ()
    %cst_18 = arith.constant dense<0.000000e+00> : vector<12x8x8xf32>
    %35 = tpu.matmul %32, %34, %cst_18 {dimension_numbers = #tpu.dot_dimension_numbers<[2], [1], [1], [2], [0, 0, 0, 1, 1, 2], [0], [0]>} : vector<12x8x32xf32>, vector<12x32x8xf32>, vector<12x8x8xf32> -> vector<12x8x8xf32>
    "tpu.trace_stop"() : () -> ()
    %c0_19 = arith.constant 0 : index
    %c0_20 = arith.constant 0 : index
    %c0_21 = arith.constant 0 : index
    %c0_22 = arith.constant 0 : index
    %36 = vector.load %arg6[%c0_19, %c0_20, %c0_21, %c0_22] : memref<2x12x1x8xf32, #tpu.memory_space<vmem>>, vector<1x12x1x8xf32>
    %37 = vector.shape_cast %36 : vector<1x12x1x8xf32> to vector<12x1x8xf32>
    %38 = vector.broadcast %37 : vector<12x1x8xf32> to vector<12x8x8xf32>
    %39 = arith.addf %35, %38 : vector<12x8x8xf32>
    %40 = vector.extract_strided_slice %39 {offsets = [0, 0, 0], sizes = [4, 8, 8], strides = [1, 1, 1]} : vector<12x8x8xf32> to vector<4x8x8xf32>
    %41 = vector.extract_strided_slice %39 {offsets = [4, 0, 0], sizes = [4, 8, 8], strides = [1, 1, 1]} : vector<12x8x8xf32> to vector<4x8x8xf32>
    %42 = vector.extract_strided_slice %39 {offsets = [8, 0, 0], sizes = [4, 8, 8], strides = [1, 1, 1]} : vector<12x8x8xf32> to vector<4x8x8xf32>
    "tpu.trace_start"() <{level = 10 : i32, message = "htf,hsf->hts"}> : () -> ()
    %cst_23 = arith.constant dense<0.000000e+00> : vector<4x8x8xf32>
    %43 = tpu.matmul %40, %41, %cst_23 {dimension_numbers = #tpu.dot_dimension_numbers<[2], [2], [1], [1], [0, 0, 0, 1, 1, 1], [0], [0]>} : vector<4x8x8xf32>, vector<4x8x8xf32>, vector<4x8x8xf32> -> vector<4x8x8xf32>
    "tpu.trace_stop"() : () -> ()
    %cst_24 = arith.constant 0.353553385 : f32
    %44 = vector.broadcast %cst_24 : f32 to vector<4x8x8xf32>
    %45 = arith.mulf %43, %44 : vector<4x8x8xf32>
    %cst_25 = arith.constant dense<0xFF800000> : vector<4x8xf32>
    %46 = vector.multi_reduction <maximumf>, %45, %cst_25 [2] : vector<4x8x8xf32> to vector<4x8xf32>
    %47 = vector.shape_cast %46 : vector<4x8xf32> to vector<4x8x1xf32>
    %48 = vector.broadcast %47 : vector<4x8x1xf32> to vector<4x8x8xf32>
    %49 = arith.subf %45, %48 : vector<4x8x8xf32>
    %50 = math.exp %49 : vector<4x8x8xf32>
    %cst_26 = arith.constant dense<0.000000e+00> : vector<4x8xf32>
    %51 = vector.multi_reduction <add>, %50, %cst_26 [2] : vector<4x8x8xf32> to vector<4x8xf32>
    %52 = vector.shape_cast %51 : vector<4x8xf32> to vector<4x8x1xf32>
    %53 = tpu.reciprocal %52 {approx = true} : vector<4x8x1xf32> -> vector<4x8x1xf32>
    %54 = vector.broadcast %53 : vector<4x8x1xf32> to vector<4x8x8xf32>
    %55 = arith.mulf %50, %54 : vector<4x8x8xf32>
    "tpu.trace_start"() <{level = 10 : i32, message = "hts,hsf->htf"}> : () -> ()
    %cst_27 = arith.constant dense<0.000000e+00> : vector<4x8x8xf32>
    %56 = tpu.matmul %55, %42, %cst_27 {dimension_numbers = #tpu.dot_dimension_numbers<[2], [1], [1], [2], [0, 0, 0, 1, 1, 2], [0], [0]>} : vector<4x8x8xf32>, vector<4x8x8xf32>, vector<4x8x8xf32> -> vector<4x8x8xf32>
    "tpu.trace_stop"() : () -> ()
    %c0_28 = arith.constant 0 : index
    %c0_29 = arith.constant 0 : index
    %c0_30 = arith.constant 0 : index
    %c0_31 = arith.constant 0 : index
    %57 = vector.load %arg7[%c0_28, %c0_29, %c0_30, %c0_31] : memref<2x4x8x32xf32, #tpu.memory_space<vmem>>, vector<1x4x8x32xf32>
    %58 = vector.shape_cast %57 : vector<1x4x8x32xf32> to vector<4x8x32xf32>
    "tpu.trace_start"() <{level = 10 : i32, message = "htf,hfe->hte"}> : () -> ()
    %cst_32 = arith.constant dense<0.000000e+00> : vector<4x8x32xf32>
    %59 = tpu.matmul %56, %58, %cst_32 {dimension_numbers = #tpu.dot_dimension_numbers<[2], [1], [1], [2], [0, 0, 0, 1, 1, 2], [0], [0]>} : vector<4x8x8xf32>, vector<4x8x32xf32>, vector<4x8x32xf32> -> vector<4x8x32xf32>
    "tpu.trace_stop"() : () -> ()
    %cst_33 = arith.constant dense<0.000000e+00> : vector<8x32xf32>
    %60 = vector.multi_reduction <add>, %59, %cst_33 [0] : vector<4x8x32xf32> to vector<8x32xf32>
    %c0_34 = arith.constant 0 : index
    %c0_35 = arith.constant 0 : index
    %c0_36 = arith.constant 0 : index
    %61 = vector.load %arg8[%c0_34, %c0_35, %c0_36] : memref<2x1x32xf32, #tpu.memory_space<vmem>>, vector<1x1x32xf32>
    %62 = vector.shape_cast %61 : vector<1x1x32xf32> to vector<1x32xf32>
    %63 = vector.broadcast %62 : vector<1x32xf32> to vector<8x32xf32>
    %64 = arith.addf %60, %63 : vector<8x32xf32>
    %65 = arith.addf %3, %64 : vector<8x32xf32>
    %c0_37 = arith.constant 0 : index
    %c0_38 = arith.constant 0 : index
    %c0_39 = arith.constant 0 : index
    %66 = vector.load %arg9[%c0_37, %c0_38, %c0_39] : memref<2x1x32xf32, #tpu.memory_space<vmem>>, vector<1x1x32xf32>
    %67 = vector.shape_cast %66 : vector<1x1x32xf32> to vector<1x32xf32>
    %c0_40 = arith.constant 0 : index
    %c0_41 = arith.constant 0 : index
    %c0_42 = arith.constant 0 : index
    %68 = vector.load %arg10[%c0_40, %c0_41, %c0_42] : memref<2x1x32xf32, #tpu.memory_space<vmem>>, vector<1x1x32xf32>
    %69 = vector.shape_cast %68 : vector<1x1x32xf32> to vector<1x32xf32>
    %cst_43 = arith.constant dense<0.000000e+00> : vector<8xf32>
    %70 = vector.multi_reduction <add>, %65, %cst_43 [1] : vector<8x32xf32> to vector<8xf32>
    %71 = vector.shape_cast %70 : vector<8xf32> to vector<8x1xf32>
    %cst_44 = arith.constant 3.200000e+01 : f32
    %72 = vector.broadcast %cst_44 : f32 to vector<8x1xf32>
    %73 = arith.divf %71, %72 : vector<8x1xf32>
    %74 = vector.broadcast %73 : vector<8x1xf32> to vector<8x32xf32>
    %75 = arith.subf %65, %74 : vector<8x32xf32>
    %76 = arith.mulf %75, %75 : vector<8x32xf32>
    %cst_45 = arith.constant dense<0.000000e+00> : vector<8xf32>
    %77 = vector.multi_reduction <add>, %76, %cst_45 [1] : vector<8x32xf32> to vector<8xf32>
    %78 = vector.shape_cast %77 : vector<8xf32> to vector<8x1xf32>
    %cst_46 = arith.constant 3.200000e+01 : f32
    %79 = vector.broadcast %cst_46 : f32 to vector<8x1xf32>
    %80 = arith.divf %78, %79 : vector<8x1xf32>
    %81 = vector.broadcast %73 : vector<8x1xf32> to vector<8x32xf32>
    %82 = arith.subf %65, %81 : vector<8x32xf32>
    %cst_47 = arith.constant 9.99999997E-7 : f32
    %83 = vector.broadcast %cst_47 : f32 to vector<8x1xf32>
    %84 = arith.addf %80, %83 : vector<8x1xf32>
    %85 = math.rsqrt %84 : vector<8x1xf32>
    %86 = vector.broadcast %85 : vector<8x1xf32> to vector<8x32xf32>
    %87 = arith.mulf %82, %86 : vector<8x32xf32>
    %88 = vector.broadcast %67 : vector<1x32xf32> to vector<8x32xf32>
    %89 = arith.mulf %87, %88 : vector<8x32xf32>
    %90 = vector.broadcast %69 : vector<1x32xf32> to vector<8x32xf32>
    %91 = arith.addf %89, %90 : vector<8x32xf32>
    %c0_48 = arith.constant 0 : index
    %c0_49 = arith.constant 0 : index
    %c0_50 = arith.constant 0 : index
    %92 = vector.load %arg11[%c0_48, %c0_49, %c0_50] : memref<2x32x128xf32, #tpu.memory_space<vmem>>, vector<1x32x128xf32>
    %93 = vector.shape_cast %92 : vector<1x32x128xf32> to vector<32x128xf32>
    %cst_51 = arith.constant dense<0.000000e+00> : vector<8x128xf32>
    %94 = tpu.matmul %91, %93, %cst_51 {dimension_numbers = #tpu.dot_dimension_numbers<[1], [0], [0], [1], [0, 0, 1, 1], [], []>} : vector<8x32xf32>, vector<32x128xf32>, vector<8x128xf32> -> vector<8x128xf32>
    %c0_52 = arith.constant 0 : index
    %c0_53 = arith.constant 0 : index
    %c0_54 = arith.constant 0 : index
    %95 = vector.load %arg12[%c0_52, %c0_53, %c0_54] : memref<2x1x128xf32, #tpu.memory_space<vmem>>, vector<1x1x128xf32>
    %96 = vector.shape_cast %95 : vector<1x1x128xf32> to vector<1x128xf32>
    %97 = vector.broadcast %96 : vector<1x128xf32> to vector<8x128xf32>
    %98 = arith.addf %94, %97 : vector<8x128xf32>
    %cst_55 = arith.constant 5.000000e-01 : f32
    %99 = vector.broadcast %cst_55 : f32 to vector<8x128xf32>
    %100 = arith.mulf %99, %98 : vector<8x128xf32>
    %cst_56 = arith.constant 0.707106769 : f32
    %101 = vector.broadcast %cst_56 : f32 to vector<8x128xf32>
    %102 = arith.mulf %98, %101 : vector<8x128xf32>
    %103 = math.erf %102 : vector<8x128xf32>
    %cst_57 = arith.constant 1.000000e+00 : f32
    %104 = vector.broadcast %cst_57 : f32 to vector<8x128xf32>
    %105 = arith.addf %104, %103 : vector<8x128xf32>
    %106 = arith.mulf %100, %105 : vector<8x128xf32>
    %c0_58 = arith.constant 0 : index
    %c0_59 = arith.constant 0 : index
    %c0_60 = arith.constant 0 : index
    %107 = vector.load %arg13[%c0_58, %c0_59, %c0_60] : memref<2x128x32xf32, #tpu.memory_space<vmem>>, vector<1x128x32xf32>
    %108 = vector.shape_cast %107 : vector<1x128x32xf32> to vector<128x32xf32>
    %cst_61 = arith.constant dense<0.000000e+00> : vector<8x32xf32>
    %109 = tpu.matmul %106, %108, %cst_61 {dimension_numbers = #tpu.dot_dimension_numbers<[1], [0], [0], [1], [0, 0, 1, 1], [], []>} : vector<8x128xf32>, vector<128x32xf32>, vector<8x32xf32> -> vector<8x32xf32>
    %c0_62 = arith.constant 0 : index
    %c0_63 = arith.constant 0 : index
    %c0_64 = arith.constant 0 : index
    %110 = vector.load %arg14[%c0_62, %c0_63, %c0_64] : memref<2x1x32xf32, #tpu.memory_space<vmem>>, vector<1x1x32xf32>
    %111 = vector.shape_cast %110 : vector<1x1x32xf32> to vector<1x32xf32>
    %112 = vector.broadcast %111 : vector<1x32xf32> to vector<8x32xf32>
    %113 = arith.addf %109, %112 : vector<8x32xf32>
    %114 = arith.addf %65, %113 : vector<8x32xf32>
    %c1 = arith.constant 1 : index
    %c0_65 = arith.constant 0 : index
    %c0_66 = arith.constant 0 : index
    %115 = vector.load %arg3[%c1, %c0_65, %c0_66] : memref<2x1x32xf32, #tpu.memory_space<vmem>>, vector<1x1x32xf32>
    %116 = vector.shape_cast %115 : vector<1x1x32xf32> to vector<1x32xf32>
    %c1_67 = arith.constant 1 : index
    %c0_68 = arith.constant 0 : index
    %c0_69 = arith.constant 0 : index
    %117 = vector.load %arg4[%c1_67, %c0_68, %c0_69] : memref<2x1x32xf32, #tpu.memory_space<vmem>>, vector<1x1x32xf32>
    %118 = vector.shape_cast %117 : vector<1x1x32xf32> to vector<1x32xf32>
    %cst_70 = arith.constant dense<0.000000e+00> : vector<8xf32>
    %119 = vector.multi_reduction <add>, %114, %cst_70 [1] : vector<8x32xf32> to vector<8xf32>
    %120 = vector.shape_cast %119 : vector<8xf32> to vector<8x1xf32>
    %cst_71 = arith.constant 3.200000e+01 : f32
    %121 = vector.broadcast %cst_71 : f32 to vector<8x1xf32>
    %122 = arith.divf %120, %121 : vector<8x1xf32>
    %123 = vector.broadcast %122 : vector<8x1xf32> to vector<8x32xf32>
    %124 = arith.subf %114, %123 : vector<8x32xf32>
    %125 = arith.mulf %124, %124 : vector<8x32xf32>
    %cst_72 = arith.constant dense<0.000000e+00> : vector<8xf32>
    %126 = vector.multi_reduction <add>, %125, %cst_72 [1] : vector<8x32xf32> to vector<8xf32>
    %127 = vector.shape_cast %126 : vector<8xf32> to vector<8x1xf32>
    %cst_73 = arith.constant 3.200000e+01 : f32
    %128 = vector.broadcast %cst_73 : f32 to vector<8x1xf32>
    %129 = arith.divf %127, %128 : vector<8x1xf32>
    %130 = vector.broadcast %122 : vector<8x1xf32> to vector<8x32xf32>
    %131 = arith.subf %114, %130 : vector<8x32xf32>
    %cst_74 = arith.constant 9.99999997E-7 : f32
    %132 = vector.broadcast %cst_74 : f32 to vector<8x1xf32>
    %133 = arith.addf %129, %132 : vector<8x1xf32>
    %134 = math.rsqrt %133 : vector<8x1xf32>
    %135 = vector.broadcast %134 : vector<8x1xf32> to vector<8x32xf32>
    %136 = arith.mulf %131, %135 : vector<8x32xf32>
    %137 = vector.broadcast %116 : vector<1x32xf32> to vector<8x32xf32>
    %138 = arith.mulf %136, %137 : vector<8x32xf32>
    %139 = vector.broadcast %118 : vector<1x32xf32> to vector<8x32xf32>
    %140 = arith.addf %138, %139 : vector<8x32xf32>
    %141 = vector.shape_cast %140 : vector<8x32xf32> to vector<1x8x32xf32>
    %142 = vector.shape_cast %141 : vector<1x8x32xf32> to vector<1x8x32xf32>
    %143 = vector.broadcast %142 : vector<1x8x32xf32> to vector<12x8x32xf32>
    %c1_75 = arith.constant 1 : index
    %c0_76 = arith.constant 0 : index
    %c0_77 = arith.constant 0 : index
    %c0_78 = arith.constant 0 : index
    %144 = vector.load %arg5[%c1_75, %c0_76, %c0_77, %c0_78] : memref<2x12x32x8xf32, #tpu.memory_space<vmem>>, vector<1x12x32x8xf32>
    %145 = vector.shape_cast %144 : vector<1x12x32x8xf32> to vector<12x32x8xf32>
    "tpu.trace_start"() <{level = 10 : i32, message = "gte,gef->gtf"}> : () -> ()
    %cst_79 = arith.constant dense<0.000000e+00> : vector<12x8x8xf32>
    %146 = tpu.matmul %143, %145, %cst_79 {dimension_numbers = #tpu.dot_dimension_numbers<[2], [1], [1], [2], [0, 0, 0, 1, 1, 2], [0], [0]>} : vector<12x8x32xf32>, vector<12x32x8xf32>, vector<12x8x8xf32> -> vector<12x8x8xf32>
    "tpu.trace_stop"() : () -> ()
    %c1_80 = arith.constant 1 : index
    %c0_81 = arith.constant 0 : index
    %c0_82 = arith.constant 0 : index
    %c0_83 = arith.constant 0 : index
    %147 = vector.load %arg6[%c1_80, %c0_81, %c0_82, %c0_83] : memref<2x12x1x8xf32, #tpu.memory_space<vmem>>, vector<1x12x1x8xf32>
    %148 = vector.shape_cast %147 : vector<1x12x1x8xf32> to vector<12x1x8xf32>
    %149 = vector.broadcast %148 : vector<12x1x8xf32> to vector<12x8x8xf32>
    %150 = arith.addf %146, %149 : vector<12x8x8xf32>
    %151 = vector.extract_strided_slice %150 {offsets = [0, 0, 0], sizes = [4, 8, 8], strides = [1, 1, 1]} : vector<12x8x8xf32> to vector<4x8x8xf32>
    %152 = vector.extract_strided_slice %150 {offsets = [4, 0, 0], sizes = [4, 8, 8], strides = [1, 1, 1]} : vector<12x8x8xf32> to vector<4x8x8xf32>
    %153 = vector.extract_strided_slice %150 {offsets = [8, 0, 0], sizes = [4, 8, 8], strides = [1, 1, 1]} : vector<12x8x8xf32> to vector<4x8x8xf32>
    "tpu.trace_start"() <{level = 10 : i32, message = "htf,hsf->hts"}> : () -> ()
    %cst_84 = arith.constant dense<0.000000e+00> : vector<4x8x8xf32>
    %154 = tpu.matmul %151, %152, %cst_84 {dimension_numbers = #tpu.dot_dimension_numbers<[2], [2], [1], [1], [0, 0, 0, 1, 1, 1], [0], [0]>} : vector<4x8x8xf32>, vector<4x8x8xf32>, vector<4x8x8xf32> -> vector<4x8x8xf32>
    "tpu.trace_stop"() : () -> ()
    %cst_85 = arith.constant 0.353553385 : f32
    %155 = vector.broadcast %cst_85 : f32 to vector<4x8x8xf32>
    %156 = arith.mulf %154, %155 : vector<4x8x8xf32>
    %cst_86 = arith.constant dense<0xFF800000> : vector<4x8xf32>
    %157 = vector.multi_reduction <maximumf>, %156, %cst_86 [2] : vector<4x8x8xf32> to vector<4x8xf32>
    %158 = vector.shape_cast %157 : vector<4x8xf32> to vector<4x8x1xf32>
    %159 = vector.broadcast %158 : vector<4x8x1xf32> to vector<4x8x8xf32>
    %160 = arith.subf %156, %159 : vector<4x8x8xf32>
    %161 = math.exp %160 : vector<4x8x8xf32>
    %cst_87 = arith.constant dense<0.000000e+00> : vector<4x8xf32>
    %162 = vector.multi_reduction <add>, %161, %cst_87 [2] : vector<4x8x8xf32> to vector<4x8xf32>
    %163 = vector.shape_cast %162 : vector<4x8xf32> to vector<4x8x1xf32>
    %164 = tpu.reciprocal %163 {approx = true} : vector<4x8x1xf32> -> vector<4x8x1xf32>
    %165 = vector.broadcast %164 : vector<4x8x1xf32> to vector<4x8x8xf32>
    %166 = arith.mulf %161, %165 : vector<4x8x8xf32>
    "tpu.trace_start"() <{level = 10 : i32, message = "hts,hsf->htf"}> : () -> ()
    %cst_88 = arith.constant dense<0.000000e+00> : vector<4x8x8xf32>
    %167 = tpu.matmul %166, %153, %cst_88 {dimension_numbers = #tpu.dot_dimension_numbers<[2], [1], [1], [2], [0, 0, 0, 1, 1, 2], [0], [0]>} : vector<4x8x8xf32>, vector<4x8x8xf32>, vector<4x8x8xf32> -> vector<4x8x8xf32>
    "tpu.trace_stop"() : () -> ()
    %c1_89 = arith.constant 1 : index
    %c0_90 = arith.constant 0 : index
    %c0_91 = arith.constant 0 : index
    %c0_92 = arith.constant 0 : index
    %168 = vector.load %arg7[%c1_89, %c0_90, %c0_91, %c0_92] : memref<2x4x8x32xf32, #tpu.memory_space<vmem>>, vector<1x4x8x32xf32>
    %169 = vector.shape_cast %168 : vector<1x4x8x32xf32> to vector<4x8x32xf32>
    "tpu.trace_start"() <{level = 10 : i32, message = "htf,hfe->hte"}> : () -> ()
    %cst_93 = arith.constant dense<0.000000e+00> : vector<4x8x32xf32>
    %170 = tpu.matmul %167, %169, %cst_93 {dimension_numbers = #tpu.dot_dimension_numbers<[2], [1], [1], [2], [0, 0, 0, 1, 1, 2], [0], [0]>} : vector<4x8x8xf32>, vector<4x8x32xf32>, vector<4x8x32xf32> -> vector<4x8x32xf32>
    "tpu.trace_stop"() : () -> ()
    %cst_94 = arith.constant dense<0.000000e+00> : vector<8x32xf32>
    %171 = vector.multi_reduction <add>, %170, %cst_94 [0] : vector<4x8x32xf32> to vector<8x32xf32>
    %c1_95 = arith.constant 1 : index
    %c0_96 = arith.constant 0 : index
    %c0_97 = arith.constant 0 : index
    %172 = vector.load %arg8[%c1_95, %c0_96, %c0_97] : memref<2x1x32xf32, #tpu.memory_space<vmem>>, vector<1x1x32xf32>
    %173 = vector.shape_cast %172 : vector<1x1x32xf32> to vector<1x32xf32>
    %174 = vector.broadcast %173 : vector<1x32xf32> to vector<8x32xf32>
    %175 = arith.addf %171, %174 : vector<8x32xf32>
    %176 = arith.addf %114, %175 : vector<8x32xf32>
    %c1_98 = arith.constant 1 : index
    %c0_99 = arith.constant 0 : index
    %c0_100 = arith.constant 0 : index
    %177 = vector.load %arg9[%c1_98, %c0_99, %c0_100] : memref<2x1x32xf32, #tpu.memory_space<vmem>>, vector<1x1x32xf32>
    %178 = vector.shape_cast %177 : vector<1x1x32xf32> to vector<1x32xf32>
    %c1_101 = arith.constant 1 : index
    %c0_102 = arith.constant 0 : index
    %c0_103 = arith.constant 0 : index
    %179 = vector.load %arg10[%c1_101, %c0_102, %c0_103] : memref<2x1x32xf32, #tpu.memory_space<vmem>>, vector<1x1x32xf32>
    %180 = vector.shape_cast %179 : vector<1x1x32xf32> to vector<1x32xf32>
    %cst_104 = arith.constant dense<0.000000e+00> : vector<8xf32>
    %181 = vector.multi_reduction <add>, %176, %cst_104 [1] : vector<8x32xf32> to vector<8xf32>
    %182 = vector.shape_cast %181 : vector<8xf32> to vector<8x1xf32>
    %cst_105 = arith.constant 3.200000e+01 : f32
    %183 = vector.broadcast %cst_105 : f32 to vector<8x1xf32>
    %184 = arith.divf %182, %183 : vector<8x1xf32>
    %185 = vector.broadcast %184 : vector<8x1xf32> to vector<8x32xf32>
    %186 = arith.subf %176, %185 : vector<8x32xf32>
    %187 = arith.mulf %186, %186 : vector<8x32xf32>
    %cst_106 = arith.constant dense<0.000000e+00> : vector<8xf32>
    %188 = vector.multi_reduction <add>, %187, %cst_106 [1] : vector<8x32xf32> to vector<8xf32>
    %189 = vector.shape_cast %188 : vector<8xf32> to vector<8x1xf32>
    %cst_107 = arith.constant 3.200000e+01 : f32
    %190 = vector.broadcast %cst_107 : f32 to vector<8x1xf32>
    %191 = arith.divf %189, %190 : vector<8x1xf32>
    %192 = vector.broadcast %184 : vector<8x1xf32> to vector<8x32xf32>
    %193 = arith.subf %176, %192 : vector<8x32xf32>
    %cst_108 = arith.constant 9.99999997E-7 : f32
    %194 = vector.broadcast %cst_108 : f32 to vector<8x1xf32>
    %195 = arith.addf %191, %194 : vector<8x1xf32>
    %196 = math.rsqrt %195 : vector<8x1xf32>
    %197 = vector.broadcast %196 : vector<8x1xf32> to vector<8x32xf32>
    %198 = arith.mulf %193, %197 : vector<8x32xf32>
    %199 = vector.broadcast %178 : vector<1x32xf32> to vector<8x32xf32>
    %200 = arith.mulf %198, %199 : vector<8x32xf32>
    %201 = vector.broadcast %180 : vector<1x32xf32> to vector<8x32xf32>
    %202 = arith.addf %200, %201 : vector<8x32xf32>
    %c1_109 = arith.constant 1 : index
    %c0_110 = arith.constant 0 : index
    %c0_111 = arith.constant 0 : index
    %203 = vector.load %arg11[%c1_109, %c0_110, %c0_111] : memref<2x32x128xf32, #tpu.memory_space<vmem>>, vector<1x32x128xf32>
    %204 = vector.shape_cast %203 : vector<1x32x128xf32> to vector<32x128xf32>
    %cst_112 = arith.constant dense<0.000000e+00> : vector<8x128xf32>
    %205 = tpu.matmul %202, %204, %cst_112 {dimension_numbers = #tpu.dot_dimension_numbers<[1], [0], [0], [1], [0, 0, 1, 1], [], []>} : vector<8x32xf32>, vector<32x128xf32>, vector<8x128xf32> -> vector<8x128xf32>
    %c1_113 = arith.constant 1 : index
    %c0_114 = arith.constant 0 : index
    %c0_115 = arith.constant 0 : index
    %206 = vector.load %arg12[%c1_113, %c0_114, %c0_115] : memref<2x1x128xf32, #tpu.memory_space<vmem>>, vector<1x1x128xf32>
    %207 = vector.shape_cast %206 : vector<1x1x128xf32> to vector<1x128xf32>
    %208 = vector.broadcast %207 : vector<1x128xf32> to vector<8x128xf32>
    %209 = arith.addf %205, %208 : vector<8x128xf32>
    %cst_116 = arith.constant 5.000000e-01 : f32
    %210 = vector.broadcast %cst_116 : f32 to vector<8x128xf32>
    %211 = arith.mulf %210, %209 : vector<8x128xf32>
    %cst_117 = arith.constant 0.707106769 : f32
    %212 = vector.broadcast %cst_117 : f32 to vector<8x128xf32>
    %213 = arith.mulf %209, %212 : vector<8x128xf32>
    %214 = math.erf %213 : vector<8x128xf32>
    %cst_118 = arith.constant 1.000000e+00 : f32
    %215 = vector.broadcast %cst_118 : f32 to vector<8x128xf32>
    %216 = arith.addf %215, %214 : vector<8x128xf32>
    %217 = arith.mulf %211, %216 : vector<8x128xf32>
    %c1_119 = arith.constant 1 : index
    %c0_120 = arith.constant 0 : index
    %c0_121 = arith.constant 0 : index
    %218 = vector.load %arg13[%c1_119, %c0_120, %c0_121] : memref<2x128x32xf32, #tpu.memory_space<vmem>>, vector<1x128x32xf32>
    %219 = vector.shape_cast %218 : vector<1x128x32xf32> to vector<128x32xf32>
    %cst_122 = arith.constant dense<0.000000e+00> : vector<8x32xf32>
    %220 = tpu.matmul %217, %219, %cst_122 {dimension_numbers = #tpu.dot_dimension_numbers<[1], [0], [0], [1], [0, 0, 1, 1], [], []>} : vector<8x128xf32>, vector<128x32xf32>, vector<8x32xf32> -> vector<8x32xf32>
    %c1_123 = arith.constant 1 : index
    %c0_124 = arith.constant 0 : index
    %c0_125 = arith.constant 0 : index
    %221 = vector.load %arg14[%c1_123, %c0_124, %c0_125] : memref<2x1x32xf32, #tpu.memory_space<vmem>>, vector<1x1x32xf32>
    %222 = vector.shape_cast %221 : vector<1x1x32xf32> to vector<1x32xf32>
    %223 = vector.broadcast %222 : vector<1x32xf32> to vector<8x32xf32>
    %224 = arith.addf %220, %223 : vector<8x32xf32>
    %225 = arith.addf %176, %224 : vector<8x32xf32>
    %c0_126 = arith.constant 0 : index
    %c0_127 = arith.constant 0 : index
    %226 = vector.load %arg15[%c0_126, %c0_127] : memref<1x32xf32, #tpu.memory_space<vmem>>, vector<1x32xf32>
    %c0_128 = arith.constant 0 : index
    %c0_129 = arith.constant 0 : index
    %227 = vector.load %arg16[%c0_128, %c0_129] : memref<1x32xf32, #tpu.memory_space<vmem>>, vector<1x32xf32>
    %cst_130 = arith.constant dense<0.000000e+00> : vector<8xf32>
    %228 = vector.multi_reduction <add>, %225, %cst_130 [1] : vector<8x32xf32> to vector<8xf32>
    %229 = vector.shape_cast %228 : vector<8xf32> to vector<8x1xf32>
    %cst_131 = arith.constant 3.200000e+01 : f32
    %230 = vector.broadcast %cst_131 : f32 to vector<8x1xf32>
    %231 = arith.divf %229, %230 : vector<8x1xf32>
    %232 = vector.broadcast %231 : vector<8x1xf32> to vector<8x32xf32>
    %233 = arith.subf %225, %232 : vector<8x32xf32>
    %234 = arith.mulf %233, %233 : vector<8x32xf32>
    %cst_132 = arith.constant dense<0.000000e+00> : vector<8xf32>
    %235 = vector.multi_reduction <add>, %234, %cst_132 [1] : vector<8x32xf32> to vector<8xf32>
    %236 = vector.shape_cast %235 : vector<8xf32> to vector<8x1xf32>
    %cst_133 = arith.constant 3.200000e+01 : f32
    %237 = vector.broadcast %cst_133 : f32 to vector<8x1xf32>
    %238 = arith.divf %236, %237 : vector<8x1xf32>
    %239 = vector.broadcast %231 : vector<8x1xf32> to vector<8x32xf32>
    %240 = arith.subf %225, %239 : vector<8x32xf32>
    %cst_134 = arith.constant 9.99999997E-7 : f32
    %241 = vector.broadcast %cst_134 : f32 to vector<8x1xf32>
    %242 = arith.addf %238, %241 : vector<8x1xf32>
    %243 = math.rsqrt %242 : vector<8x1xf32>
    %244 = vector.broadcast %243 : vector<8x1xf32> to vector<8x32xf32>
    %245 = arith.mulf %240, %244 : vector<8x32xf32>
    %246 = vector.broadcast %226 : vector<1x32xf32> to vector<8x32xf32>
    %247 = arith.mulf %245, %246 : vector<8x32xf32>
    %248 = vector.broadcast %227 : vector<1x32xf32> to vector<8x32xf32>
    %249 = arith.addf %247, %248 : vector<8x32xf32>
    %250 = vector.shape_cast %249 : vector<8x32xf32> to vector<1x8x32xf32>
    %251 = vector.shape_cast %250 : vector<1x8x32xf32> to vector<1x8x32xf32>
    %252 = vector.broadcast %251 : vector<1x8x32xf32> to vector<4x8x32xf32>
    %c0_135 = arith.constant 0 : index
    %c0_136 = arith.constant 0 : index
    %c0_137 = arith.constant 0 : index
    %253 = vector.load %arg17[%c0_135, %c0_136, %c0_137] : memref<4x32x32xf32, #tpu.memory_space<vmem>>, vector<4x32x32xf32>
    "tpu.trace_start"() <{level = 10 : i32, message = "gte,gef->gtf"}> : () -> ()
    %cst_138 = arith.constant dense<0.000000e+00> : vector<4x8x32xf32>
    %254 = tpu.matmul %252, %253, %cst_138 {dimension_numbers = #tpu.dot_dimension_numbers<[2], [1], [1], [2], [0, 0, 0, 1, 1, 2], [0], [0]>} : vector<4x8x32xf32>, vector<4x32x32xf32>, vector<4x8x32xf32> -> vector<4x8x32xf32>
    "tpu.trace_stop"() : () -> ()
    %c0_139 = arith.constant 0 : index
    %c0_140 = arith.constant 0 : index
    %c0_141 = arith.constant 0 : index
    %255 = vector.load %arg19[%c0_139, %c0_140, %c0_141] : memref<4x1x32xf32, #tpu.memory_space<vmem>>, vector<4x1x32xf32>
    %256 = vector.broadcast %255 : vector<4x1x32xf32> to vector<4x8x32xf32>
    %257 = arith.addf %254, %256 : vector<4x8x32xf32>
    %c0_142 = arith.constant 0 : index
    %c0_143 = arith.constant 0 : index
    %c0_144 = arith.constant 0 : index
    %258 = vector.load %arg20[%c0_142, %c0_143, %c0_144] : memref<4x1x32xf32, #tpu.memory_space<vmem>>, vector<4x1x32xf32>
    %259 = vector.broadcast %258 : vector<4x1x32xf32> to vector<4x8x32xf32>
    %260 = arith.addf %257, %259 : vector<4x8x32xf32>
    %cst_145 = arith.constant 0.000000e+00 : f32
    %261 = vector.broadcast %cst_145 : f32 to vector<1x32xf32>
    %cst_146 = arith.constant 0.000000e+00 : f32
    %262 = vector.broadcast %cst_146 : f32 to vector<1x32xf32>
    %263 = vector.shape_cast %261 : vector<1x32xf32> to vector<1x1x32xf32>
    %264 = vector.shape_cast %263 : vector<1x1x32xf32> to vector<1x1x32xf32>
    %265 = vector.broadcast %264 : vector<1x1x32xf32> to vector<4x1x32xf32>
    %c0_147 = arith.constant 0 : index
    %c0_148 = arith.constant 0 : index
    %c0_149 = arith.constant 0 : index
    %266 = vector.load %arg18[%c0_147, %c0_148, %c0_149] : memref<4x32x32xf32, #tpu.memory_space<vmem>>, vector<4x32x32xf32>
    "tpu.trace_start"() <{level = 10 : i32, message = "gbe,gef->gbf"}> : () -> ()
    %cst_150 = arith.constant dense<0.000000e+00> : vector<4x1x32xf32>
    %267 = tpu.matmul %265, %266, %cst_150 {dimension_numbers = #tpu.dot_dimension_numbers<[2], [1], [1], [2], [0, 0, 0, 1, 1, 2], [0], [0]>} : vector<4x1x32xf32>, vector<4x32x32xf32>, vector<4x1x32xf32> -> vector<4x1x32xf32>
    "tpu.trace_stop"() : () -> ()
    %268 = vector.extract_strided_slice %260 {offsets = [0, 0, 0], sizes = [4, 1, 32], strides = [1, 1, 1]} : vector<4x8x32xf32> to vector<4x1x32xf32>
    %269 = arith.addf %268, %267 : vector<4x1x32xf32>
    %270 = vector.extract_strided_slice %269 {offsets = [0, 0, 0], sizes = [1, 1, 32], strides = [1, 1, 1]} : vector<4x1x32xf32> to vector<1x1x32xf32>
    %271 = vector.shape_cast %270 : vector<1x1x32xf32> to vector<1x32xf32>
    %272 = arith.negf %271 : vector<1x32xf32>
    %273 = math.exp %272 : vector<1x32xf32>
    %cst_151 = arith.constant 1.000000e+00 : f32
    %274 = vector.broadcast %cst_151 : f32 to vector<1x32xf32>
    %275 = arith.addf %274, %273 : vector<1x32xf32>
    %276 = arith.divf %274, %275 : vector<1x32xf32>
    %277 = vector.extract_strided_slice %269 {offsets = [1, 0, 0], sizes = [1, 1, 32], strides = [1, 1, 1]} : vector<4x1x32xf32> to vector<1x1x32xf32>
    %278 = vector.shape_cast %277 : vector<1x1x32xf32> to vector<1x32xf32>
    %279 = arith.negf %278 : vector<1x32xf32>
    %280 = math.exp %279 : vector<1x32xf32>
    %cst_152 = arith.constant 1.000000e+00 : f32
    %281 = vector.broadcast %cst_152 : f32 to vector<1x32xf32>
    %282 = arith.addf %281, %280 : vector<1x32xf32>
    %283 = arith.divf %281, %282 : vector<1x32xf32>
    %284 = vector.extract_strided_slice %269 {offsets = [2, 0, 0], sizes = [1, 1, 32], strides = [1, 1, 1]} : vector<4x1x32xf32> to vector<1x1x32xf32>
    %285 = vector.shape_cast %284 : vector<1x1x32xf32> to vector<1x32xf32>
    %286 = math.tanh %285 : vector<1x32xf32>
    %287 = vector.extract_strided_slice %269 {offsets = [3, 0, 0], sizes = [1, 1, 32], strides = [1, 1, 1]} : vector<4x1x32xf32> to vector<1x1x32xf32>
    %288 = vector.shape_cast %287 : vector<1x1x32xf32> to vector<1x32xf32>
    %289 = arith.negf %288 : vector<1x32xf32>
    %290 = math.exp %289 : vector<1x32xf32>
    %cst_153 = arith.constant 1.000000e+00 : f32
    %291 = vector.broadcast %cst_153 : f32 to vector<1x32xf32>
    %292 = arith.addf %291, %290 : vector<1x32xf32>
    %293 = arith.divf %291, %292 : vector<1x32xf32>
    %294 = arith.mulf %283, %262 : vector<1x32xf32>
    %295 = arith.mulf %276, %286 : vector<1x32xf32>
    %296 = arith.addf %294, %295 : vector<1x32xf32>
    %297 = math.tanh %296 : vector<1x32xf32>
    %298 = arith.mulf %293, %297 : vector<1x32xf32>
    %299 = vector.shape_cast %298 : vector<1x32xf32> to vector<1x1x32xf32>
    %300 = vector.shape_cast %299 : vector<1x1x32xf32> to vector<1x1x32xf32>
    %301 = vector.broadcast %300 : vector<1x1x32xf32> to vector<4x1x32xf32>
    %c0_154 = arith.constant 0 : index
    %c0_155 = arith.constant 0 : index
    %c0_156 = arith.constant 0 : index
    %302 = vector.load %arg18[%c0_154, %c0_155, %c0_156] : memref<4x32x32xf32, #tpu.memory_space<vmem>>, vector<4x32x32xf32>
    "tpu.trace_start"() <{level = 10 : i32, message = "gbe,gef->gbf"}> : () -> ()
    %cst_157 = arith.constant dense<0.000000e+00> : vector<4x1x32xf32>
    %303 = tpu.matmul %301, %302, %cst_157 {dimension_numbers = #tpu.dot_dimension_numbers<[2], [1], [1], [2], [0, 0, 0, 1, 1, 2], [0], [0]>} : vector<4x1x32xf32>, vector<4x32x32xf32>, vector<4x1x32xf32> -> vector<4x1x32xf32>
    "tpu.trace_stop"() : () -> ()
    %304 = vector.extract_strided_slice %260 {offsets = [0, 1, 0], sizes = [4, 1, 32], strides = [1, 1, 1]} : vector<4x8x32xf32> to vector<4x1x32xf32>
    %305 = arith.addf %304, %303 : vector<4x1x32xf32>
    %306 = vector.extract_strided_slice %305 {offsets = [0, 0, 0], sizes = [1, 1, 32], strides = [1, 1, 1]} : vector<4x1x32xf32> to vector<1x1x32xf32>
    %307 = vector.shape_cast %306 : vector<1x1x32xf32> to vector<1x32xf32>
    %308 = arith.negf %307 : vector<1x32xf32>
    %309 = math.exp %308 : vector<1x32xf32>
    %cst_158 = arith.constant 1.000000e+00 : f32
    %310 = vector.broadcast %cst_158 : f32 to vector<1x32xf32>
    %311 = arith.addf %310, %309 : vector<1x32xf32>
    %312 = arith.divf %310, %311 : vector<1x32xf32>
    %313 = vector.extract_strided_slice %305 {offsets = [1, 0, 0], sizes = [1, 1, 32], strides = [1, 1, 1]} : vector<4x1x32xf32> to vector<1x1x32xf32>
    %314 = vector.shape_cast %313 : vector<1x1x32xf32> to vector<1x32xf32>
    %315 = arith.negf %314 : vector<1x32xf32>
    %316 = math.exp %315 : vector<1x32xf32>
    %cst_159 = arith.constant 1.000000e+00 : f32
    %317 = vector.broadcast %cst_159 : f32 to vector<1x32xf32>
    %318 = arith.addf %317, %316 : vector<1x32xf32>
    %319 = arith.divf %317, %318 : vector<1x32xf32>
    %320 = vector.extract_strided_slice %305 {offsets = [2, 0, 0], sizes = [1, 1, 32], strides = [1, 1, 1]} : vector<4x1x32xf32> to vector<1x1x32xf32>
    %321 = vector.shape_cast %320 : vector<1x1x32xf32> to vector<1x32xf32>
    %322 = math.tanh %321 : vector<1x32xf32>
    %323 = vector.extract_strided_slice %305 {offsets = [3, 0, 0], sizes = [1, 1, 32], strides = [1, 1, 1]} : vector<4x1x32xf32> to vector<1x1x32xf32>
    %324 = vector.shape_cast %323 : vector<1x1x32xf32> to vector<1x32xf32>
    %325 = arith.negf %324 : vector<1x32xf32>
    %326 = math.exp %325 : vector<1x32xf32>
    %cst_160 = arith.constant 1.000000e+00 : f32
    %327 = vector.broadcast %cst_160 : f32 to vector<1x32xf32>
    %328 = arith.addf %327, %326 : vector<1x32xf32>
    %329 = arith.divf %327, %328 : vector<1x32xf32>
    %330 = arith.mulf %319, %296 : vector<1x32xf32>
    %331 = arith.mulf %312, %322 : vector<1x32xf32>
    %332 = arith.addf %330, %331 : vector<1x32xf32>
    %333 = math.tanh %332 : vector<1x32xf32>
    %334 = arith.mulf %329, %333 : vector<1x32xf32>
    %335 = vector.shape_cast %334 : vector<1x32xf32> to vector<1x1x32xf32>
    %336 = vector.shape_cast %335 : vector<1x1x32xf32> to vector<1x1x32xf32>
    %337 = vector.broadcast %336 : vector<1x1x32xf32> to vector<4x1x32xf32>
    %c0_161 = arith.constant 0 : index
    %c0_162 = arith.constant 0 : index
    %c0_163 = arith.constant 0 : index
    %338 = vector.load %arg18[%c0_161, %c0_162, %c0_163] : memref<4x32x32xf32, #tpu.memory_space<vmem>>, vector<4x32x32xf32>
    "tpu.trace_start"() <{level = 10 : i32, message = "gbe,gef->gbf"}> : () -> ()
    %cst_164 = arith.constant dense<0.000000e+00> : vector<4x1x32xf32>
    %339 = tpu.matmul %337, %338, %cst_164 {dimension_numbers = #tpu.dot_dimension_numbers<[2], [1], [1], [2], [0, 0, 0, 1, 1, 2], [0], [0]>} : vector<4x1x32xf32>, vector<4x32x32xf32>, vector<4x1x32xf32> -> vector<4x1x32xf32>
    "tpu.trace_stop"() : () -> ()
    %340 = vector.extract_strided_slice %260 {offsets = [0, 2, 0], sizes = [4, 1, 32], strides = [1, 1, 1]} : vector<4x8x32xf32> to vector<4x1x32xf32>
    %341 = arith.addf %340, %339 : vector<4x1x32xf32>
    %342 = vector.extract_strided_slice %341 {offsets = [0, 0, 0], sizes = [1, 1, 32], strides = [1, 1, 1]} : vector<4x1x32xf32> to vector<1x1x32xf32>
    %343 = vector.shape_cast %342 : vector<1x1x32xf32> to vector<1x32xf32>
    %344 = arith.negf %343 : vector<1x32xf32>
    %345 = math.exp %344 : vector<1x32xf32>
    %cst_165 = arith.constant 1.000000e+00 : f32
    %346 = vector.broadcast %cst_165 : f32 to vector<1x32xf32>
    %347 = arith.addf %346, %345 : vector<1x32xf32>
    %348 = arith.divf %346, %347 : vector<1x32xf32>
    %349 = vector.extract_strided_slice %341 {offsets = [1, 0, 0], sizes = [1, 1, 32], strides = [1, 1, 1]} : vector<4x1x32xf32> to vector<1x1x32xf32>
    %350 = vector.shape_cast %349 : vector<1x1x32xf32> to vector<1x32xf32>
    %351 = arith.negf %350 : vector<1x32xf32>
    %352 = math.exp %351 : vector<1x32xf32>
    %cst_166 = arith.constant 1.000000e+00 : f32
    %353 = vector.broadcast %cst_166 : f32 to vector<1x32xf32>
    %354 = arith.addf %353, %352 : vector<1x32xf32>
    %355 = arith.divf %353, %354 : vector<1x32xf32>
    %356 = vector.extract_strided_slice %341 {offsets = [2, 0, 0], sizes = [1, 1, 32], strides = [1, 1, 1]} : vector<4x1x32xf32> to vector<1x1x32xf32>
    %357 = vector.shape_cast %356 : vector<1x1x32xf32> to vector<1x32xf32>
    %358 = math.tanh %357 : vector<1x32xf32>
    %359 = vector.extract_strided_slice %341 {offsets = [3, 0, 0], sizes = [1, 1, 32], strides = [1, 1, 1]} : vector<4x1x32xf32> to vector<1x1x32xf32>
    %360 = vector.shape_cast %359 : vector<1x1x32xf32> to vector<1x32xf32>
    %361 = arith.negf %360 : vector<1x32xf32>
    %362 = math.exp %361 : vector<1x32xf32>
    %cst_167 = arith.constant 1.000000e+00 : f32
    %363 = vector.broadcast %cst_167 : f32 to vector<1x32xf32>
    %364 = arith.addf %363, %362 : vector<1x32xf32>
    %365 = arith.divf %363, %364 : vector<1x32xf32>
    %366 = arith.mulf %355, %332 : vector<1x32xf32>
    %367 = arith.mulf %348, %358 : vector<1x32xf32>
    %368 = arith.addf %366, %367 : vector<1x32xf32>
    %369 = math.tanh %368 : vector<1x32xf32>
    %370 = arith.mulf %365, %369 : vector<1x32xf32>
    %371 = vector.shape_cast %370 : vector<1x32xf32> to vector<1x1x32xf32>
    %372 = vector.shape_cast %371 : vector<1x1x32xf32> to vector<1x1x32xf32>
    %373 = vector.broadcast %372 : vector<1x1x32xf32> to vector<4x1x32xf32>
    %c0_168 = arith.constant 0 : index
    %c0_169 = arith.constant 0 : index
    %c0_170 = arith.constant 0 : index
    %374 = vector.load %arg18[%c0_168, %c0_169, %c0_170] : memref<4x32x32xf32, #tpu.memory_space<vmem>>, vector<4x32x32xf32>
    "tpu.trace_start"() <{level = 10 : i32, message = "gbe,gef->gbf"}> : () -> ()
    %cst_171 = arith.constant dense<0.000000e+00> : vector<4x1x32xf32>
    %375 = tpu.matmul %373, %374, %cst_171 {dimension_numbers = #tpu.dot_dimension_numbers<[2], [1], [1], [2], [0, 0, 0, 1, 1, 2], [0], [0]>} : vector<4x1x32xf32>, vector<4x32x32xf32>, vector<4x1x32xf32> -> vector<4x1x32xf32>
    "tpu.trace_stop"() : () -> ()
    %376 = vector.extract_strided_slice %260 {offsets = [0, 3, 0], sizes = [4, 1, 32], strides = [1, 1, 1]} : vector<4x8x32xf32> to vector<4x1x32xf32>
    %377 = arith.addf %376, %375 : vector<4x1x32xf32>
    %378 = vector.extract_strided_slice %377 {offsets = [0, 0, 0], sizes = [1, 1, 32], strides = [1, 1, 1]} : vector<4x1x32xf32> to vector<1x1x32xf32>
    %379 = vector.shape_cast %378 : vector<1x1x32xf32> to vector<1x32xf32>
    %380 = arith.negf %379 : vector<1x32xf32>
    %381 = math.exp %380 : vector<1x32xf32>
    %cst_172 = arith.constant 1.000000e+00 : f32
    %382 = vector.broadcast %cst_172 : f32 to vector<1x32xf32>
    %383 = arith.addf %382, %381 : vector<1x32xf32>
    %384 = arith.divf %382, %383 : vector<1x32xf32>
    %385 = vector.extract_strided_slice %377 {offsets = [1, 0, 0], sizes = [1, 1, 32], strides = [1, 1, 1]} : vector<4x1x32xf32> to vector<1x1x32xf32>
    %386 = vector.shape_cast %385 : vector<1x1x32xf32> to vector<1x32xf32>
    %387 = arith.negf %386 : vector<1x32xf32>
    %388 = math.exp %387 : vector<1x32xf32>
    %cst_173 = arith.constant 1.000000e+00 : f32
    %389 = vector.broadcast %cst_173 : f32 to vector<1x32xf32>
    %390 = arith.addf %389, %388 : vector<1x32xf32>
    %391 = arith.divf %389, %390 : vector<1x32xf32>
    %392 = vector.extract_strided_slice %377 {offsets = [2, 0, 0], sizes = [1, 1, 32], strides = [1, 1, 1]} : vector<4x1x32xf32> to vector<1x1x32xf32>
    %393 = vector.shape_cast %392 : vector<1x1x32xf32> to vector<1x32xf32>
    %394 = math.tanh %393 : vector<1x32xf32>
    %395 = vector.extract_strided_slice %377 {offsets = [3, 0, 0], sizes = [1, 1, 32], strides = [1, 1, 1]} : vector<4x1x32xf32> to vector<1x1x32xf32>
    %396 = vector.shape_cast %395 : vector<1x1x32xf32> to vector<1x32xf32>
    %397 = arith.negf %396 : vector<1x32xf32>
    %398 = math.exp %397 : vector<1x32xf32>
    %cst_174 = arith.constant 1.000000e+00 : f32
    %399 = vector.broadcast %cst_174 : f32 to vector<1x32xf32>
    %400 = arith.addf %399, %398 : vector<1x32xf32>
    %401 = arith.divf %399, %400 : vector<1x32xf32>
    %402 = arith.mulf %391, %368 : vector<1x32xf32>
    %403 = arith.mulf %384, %394 : vector<1x32xf32>
    %404 = arith.addf %402, %403 : vector<1x32xf32>
    %405 = math.tanh %404 : vector<1x32xf32>
    %406 = arith.mulf %401, %405 : vector<1x32xf32>
    %407 = vector.shape_cast %406 : vector<1x32xf32> to vector<1x1x32xf32>
    %408 = vector.shape_cast %407 : vector<1x1x32xf32> to vector<1x1x32xf32>
    %409 = vector.broadcast %408 : vector<1x1x32xf32> to vector<4x1x32xf32>
    %c0_175 = arith.constant 0 : index
    %c0_176 = arith.constant 0 : index
    %c0_177 = arith.constant 0 : index
    %410 = vector.load %arg18[%c0_175, %c0_176, %c0_177] : memref<4x32x32xf32, #tpu.memory_space<vmem>>, vector<4x32x32xf32>
    "tpu.trace_start"() <{level = 10 : i32, message = "gbe,gef->gbf"}> : () -> ()
    %cst_178 = arith.constant dense<0.000000e+00> : vector<4x1x32xf32>
    %411 = tpu.matmul %409, %410, %cst_178 {dimension_numbers = #tpu.dot_dimension_numbers<[2], [1], [1], [2], [0, 0, 0, 1, 1, 2], [0], [0]>} : vector<4x1x32xf32>, vector<4x32x32xf32>, vector<4x1x32xf32> -> vector<4x1x32xf32>
    "tpu.trace_stop"() : () -> ()
    %412 = vector.extract_strided_slice %260 {offsets = [0, 4, 0], sizes = [4, 1, 32], strides = [1, 1, 1]} : vector<4x8x32xf32> to vector<4x1x32xf32>
    %413 = arith.addf %412, %411 : vector<4x1x32xf32>
    %414 = vector.extract_strided_slice %413 {offsets = [0, 0, 0], sizes = [1, 1, 32], strides = [1, 1, 1]} : vector<4x1x32xf32> to vector<1x1x32xf32>
    %415 = vector.shape_cast %414 : vector<1x1x32xf32> to vector<1x32xf32>
    %416 = arith.negf %415 : vector<1x32xf32>
    %417 = math.exp %416 : vector<1x32xf32>
    %cst_179 = arith.constant 1.000000e+00 : f32
    %418 = vector.broadcast %cst_179 : f32 to vector<1x32xf32>
    %419 = arith.addf %418, %417 : vector<1x32xf32>
    %420 = arith.divf %418, %419 : vector<1x32xf32>
    %421 = vector.extract_strided_slice %413 {offsets = [1, 0, 0], sizes = [1, 1, 32], strides = [1, 1, 1]} : vector<4x1x32xf32> to vector<1x1x32xf32>
    %422 = vector.shape_cast %421 : vector<1x1x32xf32> to vector<1x32xf32>
    %423 = arith.negf %422 : vector<1x32xf32>
    %424 = math.exp %423 : vector<1x32xf32>
    %cst_180 = arith.constant 1.000000e+00 : f32
    %425 = vector.broadcast %cst_180 : f32 to vector<1x32xf32>
    %426 = arith.addf %425, %424 : vector<1x32xf32>
    %427 = arith.divf %425, %426 : vector<1x32xf32>
    %428 = vector.extract_strided_slice %413 {offsets = [2, 0, 0], sizes = [1, 1, 32], strides = [1, 1, 1]} : vector<4x1x32xf32> to vector<1x1x32xf32>
    %429 = vector.shape_cast %428 : vector<1x1x32xf32> to vector<1x32xf32>
    %430 = math.tanh %429 : vector<1x32xf32>
    %431 = vector.extract_strided_slice %413 {offsets = [3, 0, 0], sizes = [1, 1, 32], strides = [1, 1, 1]} : vector<4x1x32xf32> to vector<1x1x32xf32>
    %432 = vector.shape_cast %431 : vector<1x1x32xf32> to vector<1x32xf32>
    %433 = arith.negf %432 : vector<1x32xf32>
    %434 = math.exp %433 : vector<1x32xf32>
    %cst_181 = arith.constant 1.000000e+00 : f32
    %435 = vector.broadcast %cst_181 : f32 to vector<1x32xf32>
    %436 = arith.addf %435, %434 : vector<1x32xf32>
    %437 = arith.divf %435, %436 : vector<1x32xf32>
    %438 = arith.mulf %427, %404 : vector<1x32xf32>
    %439 = arith.mulf %420, %430 : vector<1x32xf32>
    %440 = arith.addf %438, %439 : vector<1x32xf32>
    %441 = math.tanh %440 : vector<1x32xf32>
    %442 = arith.mulf %437, %441 : vector<1x32xf32>
    %443 = vector.shape_cast %442 : vector<1x32xf32> to vector<1x1x32xf32>
    %444 = vector.shape_cast %443 : vector<1x1x32xf32> to vector<1x1x32xf32>
    %445 = vector.broadcast %444 : vector<1x1x32xf32> to vector<4x1x32xf32>
    %c0_182 = arith.constant 0 : index
    %c0_183 = arith.constant 0 : index
    %c0_184 = arith.constant 0 : index
    %446 = vector.load %arg18[%c0_182, %c0_183, %c0_184] : memref<4x32x32xf32, #tpu.memory_space<vmem>>, vector<4x32x32xf32>
    "tpu.trace_start"() <{level = 10 : i32, message = "gbe,gef->gbf"}> : () -> ()
    %cst_185 = arith.constant dense<0.000000e+00> : vector<4x1x32xf32>
    %447 = tpu.matmul %445, %446, %cst_185 {dimension_numbers = #tpu.dot_dimension_numbers<[2], [1], [1], [2], [0, 0, 0, 1, 1, 2], [0], [0]>} : vector<4x1x32xf32>, vector<4x32x32xf32>, vector<4x1x32xf32> -> vector<4x1x32xf32>
    "tpu.trace_stop"() : () -> ()
    %448 = vector.extract_strided_slice %260 {offsets = [0, 5, 0], sizes = [4, 1, 32], strides = [1, 1, 1]} : vector<4x8x32xf32> to vector<4x1x32xf32>
    %449 = arith.addf %448, %447 : vector<4x1x32xf32>
    %450 = vector.extract_strided_slice %449 {offsets = [0, 0, 0], sizes = [1, 1, 32], strides = [1, 1, 1]} : vector<4x1x32xf32> to vector<1x1x32xf32>
    %451 = vector.shape_cast %450 : vector<1x1x32xf32> to vector<1x32xf32>
    %452 = arith.negf %451 : vector<1x32xf32>
    %453 = math.exp %452 : vector<1x32xf32>
    %cst_186 = arith.constant 1.000000e+00 : f32
    %454 = vector.broadcast %cst_186 : f32 to vector<1x32xf32>
    %455 = arith.addf %454, %453 : vector<1x32xf32>
    %456 = arith.divf %454, %455 : vector<1x32xf32>
    %457 = vector.extract_strided_slice %449 {offsets = [1, 0, 0], sizes = [1, 1, 32], strides = [1, 1, 1]} : vector<4x1x32xf32> to vector<1x1x32xf32>
    %458 = vector.shape_cast %457 : vector<1x1x32xf32> to vector<1x32xf32>
    %459 = arith.negf %458 : vector<1x32xf32>
    %460 = math.exp %459 : vector<1x32xf32>
    %cst_187 = arith.constant 1.000000e+00 : f32
    %461 = vector.broadcast %cst_187 : f32 to vector<1x32xf32>
    %462 = arith.addf %461, %460 : vector<1x32xf32>
    %463 = arith.divf %461, %462 : vector<1x32xf32>
    %464 = vector.extract_strided_slice %449 {offsets = [2, 0, 0], sizes = [1, 1, 32], strides = [1, 1, 1]} : vector<4x1x32xf32> to vector<1x1x32xf32>
    %465 = vector.shape_cast %464 : vector<1x1x32xf32> to vector<1x32xf32>
    %466 = math.tanh %465 : vector<1x32xf32>
    %467 = vector.extract_strided_slice %449 {offsets = [3, 0, 0], sizes = [1, 1, 32], strides = [1, 1, 1]} : vector<4x1x32xf32> to vector<1x1x32xf32>
    %468 = vector.shape_cast %467 : vector<1x1x32xf32> to vector<1x32xf32>
    %469 = arith.negf %468 : vector<1x32xf32>
    %470 = math.exp %469 : vector<1x32xf32>
    %cst_188 = arith.constant 1.000000e+00 : f32
    %471 = vector.broadcast %cst_188 : f32 to vector<1x32xf32>
    %472 = arith.addf %471, %470 : vector<1x32xf32>
    %473 = arith.divf %471, %472 : vector<1x32xf32>
    %474 = arith.mulf %463, %440 : vector<1x32xf32>
    %475 = arith.mulf %456, %466 : vector<1x32xf32>
    %476 = arith.addf %474, %475 : vector<1x32xf32>
    %477 = math.tanh %476 : vector<1x32xf32>
    %478 = arith.mulf %473, %477 : vector<1x32xf32>
    %479 = vector.shape_cast %478 : vector<1x32xf32> to vector<1x1x32xf32>
    %480 = vector.shape_cast %479 : vector<1x1x32xf32> to vector<1x1x32xf32>
    %481 = vector.broadcast %480 : vector<1x1x32xf32> to vector<4x1x32xf32>
    %c0_189 = arith.constant 0 : index
    %c0_190 = arith.constant 0 : index
    %c0_191 = arith.constant 0 : index
    %482 = vector.load %arg18[%c0_189, %c0_190, %c0_191] : memref<4x32x32xf32, #tpu.memory_space<vmem>>, vector<4x32x32xf32>
    "tpu.trace_start"() <{level = 10 : i32, message = "gbe,gef->gbf"}> : () -> ()
    %cst_192 = arith.constant dense<0.000000e+00> : vector<4x1x32xf32>
    %483 = tpu.matmul %481, %482, %cst_192 {dimension_numbers = #tpu.dot_dimension_numbers<[2], [1], [1], [2], [0, 0, 0, 1, 1, 2], [0], [0]>} : vector<4x1x32xf32>, vector<4x32x32xf32>, vector<4x1x32xf32> -> vector<4x1x32xf32>
    "tpu.trace_stop"() : () -> ()
    %484 = vector.extract_strided_slice %260 {offsets = [0, 6, 0], sizes = [4, 1, 32], strides = [1, 1, 1]} : vector<4x8x32xf32> to vector<4x1x32xf32>
    %485 = arith.addf %484, %483 : vector<4x1x32xf32>
    %486 = vector.extract_strided_slice %485 {offsets = [0, 0, 0], sizes = [1, 1, 32], strides = [1, 1, 1]} : vector<4x1x32xf32> to vector<1x1x32xf32>
    %487 = vector.shape_cast %486 : vector<1x1x32xf32> to vector<1x32xf32>
    %488 = arith.negf %487 : vector<1x32xf32>
    %489 = math.exp %488 : vector<1x32xf32>
    %cst_193 = arith.constant 1.000000e+00 : f32
    %490 = vector.broadcast %cst_193 : f32 to vector<1x32xf32>
    %491 = arith.addf %490, %489 : vector<1x32xf32>
    %492 = arith.divf %490, %491 : vector<1x32xf32>
    %493 = vector.extract_strided_slice %485 {offsets = [1, 0, 0], sizes = [1, 1, 32], strides = [1, 1, 1]} : vector<4x1x32xf32> to vector<1x1x32xf32>
    %494 = vector.shape_cast %493 : vector<1x1x32xf32> to vector<1x32xf32>
    %495 = arith.negf %494 : vector<1x32xf32>
    %496 = math.exp %495 : vector<1x32xf32>
    %cst_194 = arith.constant 1.000000e+00 : f32
    %497 = vector.broadcast %cst_194 : f32 to vector<1x32xf32>
    %498 = arith.addf %497, %496 : vector<1x32xf32>
    %499 = arith.divf %497, %498 : vector<1x32xf32>
    %500 = vector.extract_strided_slice %485 {offsets = [2, 0, 0], sizes = [1, 1, 32], strides = [1, 1, 1]} : vector<4x1x32xf32> to vector<1x1x32xf32>
    %501 = vector.shape_cast %500 : vector<1x1x32xf32> to vector<1x32xf32>
    %502 = math.tanh %501 : vector<1x32xf32>
    %503 = vector.extract_strided_slice %485 {offsets = [3, 0, 0], sizes = [1, 1, 32], strides = [1, 1, 1]} : vector<4x1x32xf32> to vector<1x1x32xf32>
    %504 = vector.shape_cast %503 : vector<1x1x32xf32> to vector<1x32xf32>
    %505 = arith.negf %504 : vector<1x32xf32>
    %506 = math.exp %505 : vector<1x32xf32>
    %cst_195 = arith.constant 1.000000e+00 : f32
    %507 = vector.broadcast %cst_195 : f32 to vector<1x32xf32>
    %508 = arith.addf %507, %506 : vector<1x32xf32>
    %509 = arith.divf %507, %508 : vector<1x32xf32>
    %510 = arith.mulf %499, %476 : vector<1x32xf32>
    %511 = arith.mulf %492, %502 : vector<1x32xf32>
    %512 = arith.addf %510, %511 : vector<1x32xf32>
    %513 = math.tanh %512 : vector<1x32xf32>
    %514 = arith.mulf %509, %513 : vector<1x32xf32>
    %515 = vector.shape_cast %514 : vector<1x32xf32> to vector<1x1x32xf32>
    %516 = vector.shape_cast %515 : vector<1x1x32xf32> to vector<1x1x32xf32>
    %517 = vector.broadcast %516 : vector<1x1x32xf32> to vector<4x1x32xf32>
    %c0_196 = arith.constant 0 : index
    %c0_197 = arith.constant 0 : index
    %c0_198 = arith.constant 0 : index
    %518 = vector.load %arg18[%c0_196, %c0_197, %c0_198] : memref<4x32x32xf32, #tpu.memory_space<vmem>>, vector<4x32x32xf32>
    "tpu.trace_start"() <{level = 10 : i32, message = "gbe,gef->gbf"}> : () -> ()
    %cst_199 = arith.constant dense<0.000000e+00> : vector<4x1x32xf32>
    %519 = tpu.matmul %517, %518, %cst_199 {dimension_numbers = #tpu.dot_dimension_numbers<[2], [1], [1], [2], [0, 0, 0, 1, 1, 2], [0], [0]>} : vector<4x1x32xf32>, vector<4x32x32xf32>, vector<4x1x32xf32> -> vector<4x1x32xf32>
    "tpu.trace_stop"() : () -> ()
    %520 = vector.extract_strided_slice %260 {offsets = [0, 7, 0], sizes = [4, 1, 32], strides = [1, 1, 1]} : vector<4x8x32xf32> to vector<4x1x32xf32>
    %521 = arith.addf %520, %519 : vector<4x1x32xf32>
    %522 = vector.extract_strided_slice %521 {offsets = [0, 0, 0], sizes = [1, 1, 32], strides = [1, 1, 1]} : vector<4x1x32xf32> to vector<1x1x32xf32>
    %523 = vector.shape_cast %522 : vector<1x1x32xf32> to vector<1x32xf32>
    %524 = arith.negf %523 : vector<1x32xf32>
    %525 = math.exp %524 : vector<1x32xf32>
    %cst_200 = arith.constant 1.000000e+00 : f32
    %526 = vector.broadcast %cst_200 : f32 to vector<1x32xf32>
    %527 = arith.addf %526, %525 : vector<1x32xf32>
    %528 = arith.divf %526, %527 : vector<1x32xf32>
    %529 = vector.extract_strided_slice %521 {offsets = [1, 0, 0], sizes = [1, 1, 32], strides = [1, 1, 1]} : vector<4x1x32xf32> to vector<1x1x32xf32>
    %530 = vector.shape_cast %529 : vector<1x1x32xf32> to vector<1x32xf32>
    %531 = arith.negf %530 : vector<1x32xf32>
    %532 = math.exp %531 : vector<1x32xf32>
    %cst_201 = arith.constant 1.000000e+00 : f32
    %533 = vector.broadcast %cst_201 : f32 to vector<1x32xf32>
    %534 = arith.addf %533, %532 : vector<1x32xf32>
    %535 = arith.divf %533, %534 : vector<1x32xf32>
    %536 = vector.extract_strided_slice %521 {offsets = [2, 0, 0], sizes = [1, 1, 32], strides = [1, 1, 1]} : vector<4x1x32xf32> to vector<1x1x32xf32>
    %537 = vector.shape_cast %536 : vector<1x1x32xf32> to vector<1x32xf32>
    %538 = math.tanh %537 : vector<1x32xf32>
    %539 = vector.extract_strided_slice %521 {offsets = [3, 0, 0], sizes = [1, 1, 32], strides = [1, 1, 1]} : vector<4x1x32xf32> to vector<1x1x32xf32>
    %540 = vector.shape_cast %539 : vector<1x1x32xf32> to vector<1x32xf32>
    %541 = arith.negf %540 : vector<1x32xf32>
    %542 = math.exp %541 : vector<1x32xf32>
    %cst_202 = arith.constant 1.000000e+00 : f32
    %543 = vector.broadcast %cst_202 : f32 to vector<1x32xf32>
    %544 = arith.addf %543, %542 : vector<1x32xf32>
    %545 = arith.divf %543, %544 : vector<1x32xf32>
    %546 = arith.mulf %535, %512 : vector<1x32xf32>
    %547 = arith.mulf %528, %538 : vector<1x32xf32>
    %548 = arith.addf %546, %547 : vector<1x32xf32>
    %549 = math.tanh %548 : vector<1x32xf32>
    %550 = arith.mulf %545, %549 : vector<1x32xf32>
    %c0_203 = arith.constant 0 : index
    %c0_204 = arith.constant 0 : index
    %551 = vector.load %arg21[%c0_203, %c0_204] : memref<32x128xf32, #tpu.memory_space<vmem>>, vector<32x128xf32>
    %cst_205 = arith.constant dense<0.000000e+00> : vector<1x128xf32>
    %552 = tpu.matmul %550, %551, %cst_205 {dimension_numbers = #tpu.dot_dimension_numbers<[1], [0], [0], [1], [0, 0, 1, 1], [], []>} : vector<1x32xf32>, vector<32x128xf32>, vector<1x128xf32> -> vector<1x128xf32>
    %c0_206 = arith.constant 0 : index
    %c0_207 = arith.constant 0 : index
    %553 = vector.load %arg22[%c0_206, %c0_207] : memref<1x128xf32, #tpu.memory_space<vmem>>, vector<1x128xf32>
    %554 = arith.addf %552, %553 : vector<1x128xf32>
    %c0_208 = arith.constant 0 : index
    %c0_209 = arith.constant 0 : index
    %c0_210 = arith.constant 0 : index
    %555 = vector.load %arg23[%c0_208, %c0_209, %c0_210] : memref<1x1x128xf32, #tpu.memory_space<vmem>>, vector<1x1x128xf32>
    %556 = vector.shape_cast %555 : vector<1x1x128xf32> to vector<1x128xf32>
    %557 = vector.shape_cast %554 : vector<1x128xf32> to vector<1x1x128xf32>
    tpu.vector_store %arg23[%c0_208, %c0_209, %c0_210], %557 {strides = array<i32>} : memref<1x1x128xf32, #tpu.memory_space<vmem>>, vector<1x1x128xf32>,
    return
  }
  func.func @transform_0(%arg0: i32) -> (i32, i32, i32) {
    %c0_i32 = arith.constant 0 : i32
    %c0_i32_0 = arith.constant 0 : i32
    %c0_i32_1 = arith.constant 0 : i32
    return %arg0, %c0_i32, %c0_i32_0 : i32, i32, i32
  }
  func.func @transform_1(%arg0: i32) -> (i32, i32) {
    %c0_i32 = arith.constant 0 : i32
    %c0_i32_0 = arith.constant 0 : i32
    %c0_i32_1 = arith.constant 0 : i32
    return %c0_i32, %c0_i32_0 : i32, i32
  }
  func.func @transform_2(%arg0: i32) -> (i32, i32, i32) {
    %c0_i32 = arith.constant 0 : i32
    %c0_i32_0 = arith.constant 0 : i32
    %c0_i32_1 = arith.constant 0 : i32
    %c0_i32_2 = arith.constant 0 : i32
    return %c0_i32, %c0_i32_0, %c0_i32_1 : i32, i32, i32
  }
  func.func @transform_3(%arg0: i32) -> (i32, i32, i32) {
    %c0_i32 = arith.constant 0 : i32
    %c0_i32_0 = arith.constant 0 : i32
    %c0_i32_1 = arith.constant 0 : i32
    %c0_i32_2 = arith.constant 0 : i32
    return %c0_i32, %c0_i32_0, %c0_i32_1 : i32, i32, i32
  }
  func.func @transform_4(%arg0: i32) -> (i32, i32, i32, i32) {
    %c0_i32 = arith.constant 0 : i32
    %c0_i32_0 = arith.constant 0 : i32
    %c0_i32_1 = arith.constant 0 : i32
    %c0_i32_2 = arith.constant 0 : i32
    %c0_i32_3 = arith.constant 0 : i32
    return %c0_i32, %c0_i32_0, %c0_i32_1, %c0_i32_2 : i32, i32, i32, i32
  }
  func.func @transform_5(%arg0: i32) -> (i32, i32, i32, i32) {
    %c0_i32 = arith.constant 0 : i32
    %c0_i32_0 = arith.constant 0 : i32
    %c0_i32_1 = arith.constant 0 : i32
    %c0_i32_2 = arith.constant 0 : i32
    %c0_i32_3 = arith.constant 0 : i32
    return %c0_i32, %c0_i32_0, %c0_i32_1, %c0_i32_2 : i32, i32, i32, i32
  }
  func.func @transform_6(%arg0: i32) -> (i32, i32, i32, i32) {
    %c0_i32 = arith.constant 0 : i32
    %c0_i32_0 = arith.constant 0 : i32
    %c0_i32_1 = arith.constant 0 : i32
    %c0_i32_2 = arith.constant 0 : i32
    %c0_i32_3 = arith.constant 0 : i32
    return %c0_i32, %c0_i32_0, %c0_i32_1, %c0_i32_2 : i32, i32, i32, i32
  }
  func.func @transform_7(%arg0: i32) -> (i32, i32, i32) {
    %c0_i32 = arith.constant 0 : i32
    %c0_i32_0 = arith.constant 0 : i32
    %c0_i32_1 = arith.constant 0 : i32
    %c0_i32_2 = arith.constant 0 : i32
    return %c0_i32, %c0_i32_0, %c0_i32_1 : i32, i32, i32
  }
  func.func @transform_8(%arg0: i32) -> (i32, i32, i32) {
    %c0_i32 = arith.constant 0 : i32
    %c0_i32_0 = arith.constant 0 : i32
    %c0_i32_1 = arith.constant 0 : i32
    %c0_i32_2 = arith.constant 0 : i32
    return %c0_i32, %c0_i32_0, %c0_i32_1 : i32, i32, i32
  }
  func.func @transform_9(%arg0: i32) -> (i32, i32, i32) {
    %c0_i32 = arith.constant 0 : i32
    %c0_i32_0 = arith.constant 0 : i32
    %c0_i32_1 = arith.constant 0 : i32
    %c0_i32_2 = arith.constant 0 : i32
    return %c0_i32, %c0_i32_0, %c0_i32_1 : i32, i32, i32
  }
  func.func @transform_10(%arg0: i32) -> (i32, i32, i32) {
    %c0_i32 = arith.constant 0 : i32
    %c0_i32_0 = arith.constant 0 : i32
    %c0_i32_1 = arith.constant 0 : i32
    %c0_i32_2 = arith.constant 0 : i32
    return %c0_i32, %c0_i32_0, %c0_i32_1 : i32, i32, i32
  }
  func.func @transform_11(%arg0: i32) -> (i32, i32, i32) {
    %c0_i32 = arith.constant 0 : i32
    %c0_i32_0 = arith.constant 0 : i32
    %c0_i32_1 = arith.constant 0 : i32
    %c0_i32_2 = arith.constant 0 : i32
    return %c0_i32, %c0_i32_0, %c0_i32_1 : i32, i32, i32
  }
  func.func @transform_12(%arg0: i32) -> (i32, i32, i32) {
    %c0_i32 = arith.constant 0 : i32
    %c0_i32_0 = arith.constant 0 : i32
    %c0_i32_1 = arith.constant 0 : i32
    %c0_i32_2 = arith.constant 0 : i32
    return %c0_i32, %c0_i32_0, %c0_i32_1 : i32, i32, i32
  }
  func.func @transform_13(%arg0: i32) -> (i32, i32, i32) {
    %c0_i32 = arith.constant 0 : i32
    %c0_i32_0 = arith.constant 0 : i32
    %c0_i32_1 = arith.constant 0 : i32
    %c0_i32_2 = arith.constant 0 : i32
    return %c0_i32, %c0_i32_0, %c0_i32_1 : i32, i32, i32
  }
  func.func @transform_14(%arg0: i32) -> (i32, i32) {
    %c0_i32 = arith.constant 0 : i32
    %c0_i32_0 = arith.constant 0 : i32
    %c0_i32_1 = arith.constant 0 : i32
    return %c0_i32, %c0_i32_0 : i32, i32
  }
  func.func @transform_15(%arg0: i32) -> (i32, i32) {
    %c0_i32 = arith.constant 0 : i32
    %c0_i32_0 = arith.constant 0 : i32
    %c0_i32_1 = arith.constant 0 : i32
    return %c0_i32, %c0_i32_0 : i32, i32
  }
  func.func @transform_16(%arg0: i32) -> (i32, i32, i32) {
    %c0_i32 = arith.constant 0 : i32
    %c0_i32_0 = arith.constant 0 : i32
    %c0_i32_1 = arith.constant 0 : i32
    %c0_i32_2 = arith.constant 0 : i32
    return %c0_i32, %c0_i32_0, %c0_i32_1 : i32, i32, i32
  }
  func.func @transform_17(%arg0: i32) -> (i32, i32, i32) {
    %c0_i32 = arith.constant 0 : i32
    %c0_i32_0 = arith.constant 0 : i32
    %c0_i32_1 = arith.constant 0 : i32
    %c0_i32_2 = arith.constant 0 : i32
    return %c0_i32, %c0_i32_0, %c0_i32_1 : i32, i32, i32
  }
  func.func @transform_18(%arg0: i32) -> (i32, i32, i32) {
    %c0_i32 = arith.constant 0 : i32
    %c0_i32_0 = arith.constant 0 : i32
    %c0_i32_1 = arith.constant 0 : i32
    %c0_i32_2 = arith.constant 0 : i32
    return %c0_i32, %c0_i32_0, %c0_i32_1 : i32, i32, i32
  }
  func.func @transform_19(%arg0: i32) -> (i32, i32, i32) {
    %c0_i32 = arith.constant 0 : i32
    %c0_i32_0 = arith.constant 0 : i32
    %c0_i32_1 = arith.constant 0 : i32
    %c0_i32_2 = arith.constant 0 : i32
    return %c0_i32, %c0_i32_0, %c0_i32_1 : i32, i32, i32
  }
  func.func @transform_20(%arg0: i32) -> (i32, i32) {
    %c0_i32 = arith.constant 0 : i32
    %c0_i32_0 = arith.constant 0 : i32
    %c0_i32_1 = arith.constant 0 : i32
    return %c0_i32, %c0_i32_0 : i32, i32
  }
  func.func @transform_21(%arg0: i32) -> (i32, i32) {
    %c0_i32 = arith.constant 0 : i32
    %c0_i32_0 = arith.constant 0 : i32
    %c0_i32_1 = arith.constant 0 : i32
    return %c0_i32, %c0_i32_0 : i32, i32
  }
  func.func @transform_22(%arg0: i32) -> (i32, i32, i32) {
    %c0_i32 = arith.constant 0 : i32
    %c0_i32_0 = arith.constant 0 : i32
    %c0_i32_1 = arith.constant 0 : i32
    return %arg0, %c0_i32, %c0_i32_0 : i32, i32, i32
  }
}

</mosaic_0001>

<llo_original>
// kernel: transformer_forward.1
$region0: #{transformer_forward.1}
  #allocation0 [shape = 'u32[]', space=smem, size = 0x4, offset = 0x4, fixed_abs, tag = 'smem constant byte address 0x4 - core index']
  #allocation1 [shape = 'u32[72,128]{1,0:T(1,128)}', space=vmem, size = 0x9000, scoped, tag = 'internal scratch']
  %s0 = inlined_call_operand.vmem [shape: f32[2,8,32], index: 0, kind: input, shape index: {}]
  %s1 = inlined_call_operand.vmem [shape: f32[8,32], index: 1, kind: input, shape index: {}]
  %s2 = inlined_call_operand.vmem [shape: f32[2,1,32], index: 2, kind: input, shape index: {}]
  %s3 = inlined_call_operand.vmem [shape: f32[2,1,32], index: 3, kind: input, shape index: {}]
  %s4 = inlined_call_operand.vmem [shape: f32[2,12,32,8], index: 4, kind: input, shape index: {}]
  %s5 = inlined_call_operand.vmem [shape: f32[2,12,1,8], index: 5, kind: input, shape index: {}]
  %s6 = inlined_call_operand.vmem [shape: f32[2,4,8,32], index: 6, kind: input, shape index: {}]
  %s7 = inlined_call_operand.vmem [shape: f32[2,1,32], index: 7, kind: input, shape index: {}]
  %s8 = inlined_call_operand.vmem [shape: f32[2,1,32], index: 8, kind: input, shape index: {}]
  %s9 = inlined_call_operand.vmem [shape: f32[2,1,32], index: 9, kind: input, shape index: {}]
  %s10 = inlined_call_operand.vmem [shape: f32[2,32,128], index: 10, kind: input, shape index: {}]
  %s11 = inlined_call_operand.vmem [shape: f32[2,1,128], index: 11, kind: input, shape index: {}]
  %s12 = inlined_call_operand.vmem [shape: f32[2,128,32], index: 12, kind: input, shape index: {}]
  %s13 = inlined_call_operand.vmem [shape: f32[2,1,32], index: 13, kind: input, shape index: {}]
  %s14 = inlined_call_operand.vmem [shape: f32[1,32], index: 14, kind: input, shape index: {}]
  %s15 = inlined_call_operand.vmem [shape: f32[1,32], index: 15, kind: input, shape index: {}]
  %s16 = inlined_call_operand.vmem [shape: f32[4,32,32], index: 16, kind: input, shape index: {}]
  %s17 = inlined_call_operand.vmem [shape: f32[4,32,32], index: 17, kind: input, shape index: {}]
  %s18 = inlined_call_operand.vmem [shape: f32[4,1,32], index: 18, kind: input, shape index: {}]
  %s19 = inlined_call_operand.vmem [shape: f32[4,1,32], index: 19, kind: input, shape index: {}]
  %s20 = inlined_call_operand.vmem [shape: f32[32,128], index: 20, kind: input, shape index: {}]
  %s21 = inlined_call_operand.vmem [shape: f32[1,128], index: 21, kind: input, shape index: {}]
  %s22 = inlined_call_operand.hbm [shape: f32[2,1,128], index: 22, kind: output, shape index: {}]
  %s23 = sld [smem:[#allocation0]]
  $region121: #{transformer_forward.1} parent=0
    _
  %s25 = ssub.s32 1, %s23
  %s26 = scalar_select 0, %s25, %s23
  $region1: #{transformer_forward.1} parent=0
    #allocation2 [shape = 'u8[1024]{0}', space=vmem, size = 0x400, scoped, tag = 'output window, operand 0']
    #allocation3 [shape = 's32[2]{0}', space=sflag, size = 0x8, scoped, tag = 'scoped memory for transformer_forward.1']
    %27 = vsyncpa [#allocation3], 0
    %s28 = scalar_lea.sflag [#allocation3], 1
    %29 = vsyncpa %s28, 0
    loop: start=0, step=1, limit=4
    $region2: #{transformer_forward.1} parent=1 // loop_pre_header
      _
    $region3: #{transformer_forward.1} parent=1 // loop_header
      %s31 = sphi 0, %s35
      %p32 = scmp.ge.s32.totalorder %s31, 4
      %s41 = sphi 0, %s43
      %s44 = sphi 0, %s41
      %s45 = sphi 0, %s44
      %s61 = sphi 0, %s45
      %s65 = sphi 0, %s65
      %s67 = sphi 0, %s65
      %s68 = sphi 0, %s67
      %s82 = sphi 0, %s68
      %s86 = sphi 0, %s86
      %s88 = sphi 0, %s86
      %s89 = sphi 0, %s88
      %s103 = sphi 0, %s89
      %s107 = sphi 0, %s107
      %s109 = sphi 0, %s107
      %s110 = sphi 0, %s109
      %s124 = sphi 0, %s110
      %s128 = sphi 0, %s128
      %s130 = sphi 0, %s128
      %s131 = sphi 0, %s130
      %s145 = sphi 0, %s131
      %s149 = sphi 0, %s149
      %s151 = sphi 0, %s149
      %s152 = sphi 0, %s151
      %s166 = sphi 0, %s152
      %s170 = sphi 0, %s170
      %s172 = sphi 0, %s170
      %s173 = sphi 0, %s172
      %s187 = sphi 0, %s173
      %s191 = sphi 0, %s191
      %s193 = sphi 0, %s191
      %s194 = sphi 0, %s193
      %s208 = sphi 0, %s194
      %s212 = sphi 0, %s212
      %s214 = sphi 0, %s212
      %s215 = sphi 0, %s214
      %s229 = sphi 0, %s215
      %s233 = sphi 0, %s233
      %s235 = sphi 0, %s233
      %s236 = sphi 0, %s235
      %s250 = sphi 0, %s236
      %s254 = sphi 0, %s254
      %s256 = sphi 0, %s254
      %s257 = sphi 0, %s256
      %s271 = sphi 0, %s257
      %s275 = sphi 0, %s275
      %s277 = sphi 0, %s275
      %s278 = sphi 0, %s277
      %s292 = sphi 0, %s278
      %s296 = sphi 0, %s296
      %s298 = sphi 0, %s296
      %s299 = sphi 0, %s298
      %s313 = sphi 0, %s299
      %s317 = sphi 0, %s317
      %s319 = sphi 0, %s317
      %s320 = sphi 0, %s319
      %s334 = sphi 0, %s320
      %s338 = sphi 0, %s338
      %s340 = sphi 0, %s338
      %s341 = sphi 0, %s340
      %s355 = sphi 0, %s341
      %s359 = sphi 0, %s359
      %s361 = sphi 0, %s359
      %s362 = sphi 0, %s361
      %s376 = sphi 0, %s362
      %s380 = sphi 0, %s380
      %s382 = sphi 0, %s380
      %s383 = sphi 0, %s382
      %s397 = sphi 0, %s383
      %s401 = sphi 0, %s401
      %s403 = sphi 0, %s401
      %s404 = sphi 0, %s403
      %s418 = sphi 0, %s404
      %s422 = sphi 0, %s422
      %s424 = sphi 0, %s422
      %s425 = sphi 0, %s424
      %s439 = sphi 0, %s425
      %s443 = sphi 0, %s443
      %s445 = sphi 0, %s443
      %s446 = sphi 0, %s445
      %s460 = sphi 0, %s446
      %s464 = sphi 0, %s464
      %s466 = sphi 0, %s464
      %s467 = sphi 0, %s466
      %s481 = sphi 0, %s467
      %s485 = sphi 0, %s485
      %s487 = sphi 0, %s485
      %s488 = sphi 0, %s487
      %s502 = sphi 0, %s488
      %s508 = sphi 0, %s510
      %s511 = sphi 0, %s508
      %s512 = sphi 0, %s511
      %s528 = sphi 0, %s512
    $region4: #{transformer_forward.1} parent=1 // loop_header_branch
      %34 = sbr.rel (%p32) target = $region8
    $region5: #{transformer_forward.1} parent=1 // loop_body
      %s36 = ssub.s32 %s31, 1
      %s37 = ssub.s32 %s31, 2
      %s38 = sadd.s32 %s31, 1
      %s39 = ssub.s32 %s31, %s38
      %p40 = scmp.eq.s32.totalorder %s39, 0
      %s42 = sadd.s32 %s41, 1
      %s43 = scalar_select %p40, %s41, %s42
      %p46 = pneg %p40
      %p47 = scmp.eq.s32.totalorder %s31, 1
      %p48 = por %p46, %p47
      %p49 = scmp.ne.s32.totalorder %s41, %s44
      %p50 = scmp.eq.s32.totalorder %s31, 0
      %p51 = por %p49, %p50
      %p52 = scmp.ne.s32.totalorder %s41, %s44
      %p53 = scmp.eq.s32.totalorder %s36, 1
      %p54 = por %p52, %p53
      %p55 = scmp.ne.s32.totalorder %s44, %s45
      %p56 = scmp.eq.s32.totalorder %s36, 0
      %p57 = por %p55, %p56
      %p58 = scmp.ne.s32.totalorder %s44, %s45
      %p59 = scmp.eq.s32.totalorder %s37, 1
      %p60 = por %p58, %p59
      %p62 = scmp.ne.s32.totalorder %s45, %s61
      %p63 = scmp.eq.s32.totalorder %s37, 0
      %p64 = por %p62, %p63
      %s66 = sadd.s32 %s65, 1
      %p69 = scmp.eq.s32.totalorder %s31, 1
      %p70 = scmp.ne.s32.totalorder %s65, %s67
      %p71 = scmp.eq.s32.totalorder %s31, 0
      %p72 = por %p70, %p71
      %p73 = scmp.ne.s32.totalorder %s65, %s67
      %p74 = scmp.eq.s32.totalorder %s36, 1
      %p75 = por %p73, %p74
      %p76 = scmp.ne.s32.totalorder %s67, %s68
      %p77 = scmp.eq.s32.totalorder %s36, 0
      %p78 = por %p76, %p77
      %p79 = scmp.ne.s32.totalorder %s67, %s68
      %p80 = scmp.eq.s32.totalorder %s37, 1
      %p81 = por %p79, %p80
      %p83 = scmp.ne.s32.totalorder %s68, %s82
      %p84 = scmp.eq.s32.totalorder %s37, 0
      %p85 = por %p83, %p84
      %s87 = sadd.s32 %s86, 1
      %p90 = scmp.eq.s32.totalorder %s31, 1
      %p91 = scmp.ne.s32.totalorder %s86, %s88
      %p92 = scmp.eq.s32.totalorder %s31, 0
      %p93 = por %p91, %p92
      %p94 = scmp.ne.s32.totalorder %s86, %s88
      %p95 = scmp.eq.s32.totalorder %s36, 1
      %p96 = por %p94, %p95
      %p97 = scmp.ne.s32.totalorder %s88, %s89
      %p98 = scmp.eq.s32.totalorder %s36, 0
      %p99 = por %p97, %p98
      %p100 = scmp.ne.s32.totalorder %s88, %s89
      %p101 = scmp.eq.s32.totalorder %s37, 1
      %p102 = por %p100, %p101
      %p104 = scmp.ne.s32.totalorder %s89, %s103
      %p105 = scmp.eq.s32.totalorder %s37, 0
      %p106 = por %p104, %p105
      %s108 = sadd.s32 %s107, 1
      %p111 = scmp.eq.s32.totalorder %s31, 1
      %p112 = scmp.ne.s32.totalorder %s107, %s109
      %p113 = scmp.eq.s32.totalorder %s31, 0
      %p114 = por %p112, %p113
      %p115 = scmp.ne.s32.totalorder %s107, %s109
      %p116 = scmp.eq.s32.totalorder %s36, 1
      %p117 = por %p115, %p116
      %p118 = scmp.ne.s32.totalorder %s109, %s110
      %p119 = scmp.eq.s32.totalorder %s36, 0
      %p120 = por %p118, %p119
      %p121 = scmp.ne.s32.totalorder %s109, %s110
      %p122 = scmp.eq.s32.totalorder %s37, 1
      %p123 = por %p121, %p122
      %p125 = scmp.ne.s32.totalorder %s110, %s124
      %p126 = scmp.eq.s32.totalorder %s37, 0
      %p127 = por %p125, %p126
      %s129 = sadd.s32 %s128, 1
      %p132 = scmp.eq.s32.totalorder %s31, 1
      %p133 = scmp.ne.s32.totalorder %s128, %s130
      %p134 = scmp.eq.s32.totalorder %s31, 0
      %p135 = por %p133, %p134
      %p136 = scmp.ne.s32.totalorder %s128, %s130
      %p137 = scmp.eq.s32.totalorder %s36, 1
      %p138 = por %p136, %p137
      %p139 = scmp.ne.s32.totalorder %s130, %s131
      %p140 = scmp.eq.s32.totalorder %s36, 0
      %p141 = por %p139, %p140
      %p142 = scmp.ne.s32.totalorder %s130, %s131
      %p143 = scmp.eq.s32.totalorder %s37, 1
      %p144 = por %p142, %p143
      %p146 = scmp.ne.s32.totalorder %s131, %s145
      %p147 = scmp.eq.s32.totalorder %s37, 0
      %p148 = por %p146, %p147
      %s150 = sadd.s32 %s149, 1
      %p153 = scmp.eq.s32.totalorder %s31, 1
      %p154 = scmp.ne.s32.totalorder %s149, %s151
      %p155 = scmp.eq.s32.totalorder %s31, 0
      %p156 = por %p154, %p155
      %p157 = scmp.ne.s32.totalorder %s149, %s151
      %p158 = scmp.eq.s32.totalorder %s36, 1
      %p159 = por %p157, %p158
      %p160 = scmp.ne.s32.totalorder %s151, %s152
      %p161 = scmp.eq.s32.totalorder %s36, 0
      %p162 = por %p160, %p161
      %p163 = scmp.ne.s32.totalorder %s151, %s152
      %p164 = scmp.eq.s32.totalorder %s37, 1
      %p165 = por %p163, %p164
      %p167 = scmp.ne.s32.totalorder %s152, %s166
      %p168 = scmp.eq.s32.totalorder %s37, 0
      %p169 = por %p167, %p168
      %s171 = sadd.s32 %s170, 1
      %p174 = scmp.eq.s32.totalorder %s31, 1
      %p175 = scmp.ne.s32.totalorder %s170, %s172
      %p176 = scmp.eq.s32.totalorder %s31, 0
      %p177 = por %p175, %p176
      %p178 = scmp.ne.s32.totalorder %s170, %s172
      %p179 = scmp.eq.s32.totalorder %s36, 1
      %p180 = por %p178, %p179
      %p181 = scmp.ne.s32.totalorder %s172, %s173
      %p182 = scmp.eq.s32.totalorder %s36, 0
      %p183 = por %p181, %p182
      %p184 = scmp.ne.s32.totalorder %s172, %s173
      %p185 = scmp.eq.s32.totalorder %s37, 1
      %p186 = por %p184, %p185
      %p188 = scmp.ne.s32.totalorder %s173, %s187
      %p189 = scmp.eq.s32.totalorder %s37, 0
      %p190 = por %p188, %p189
      %s192 = sadd.s32 %s191, 1
      %p195 = scmp.eq.s32.totalorder %s31, 1
      %p196 = scmp.ne.s32.totalorder %s191, %s193
      %p197 = scmp.eq.s32.totalorder %s31, 0
      %p198 = por %p196, %p197
      %p199 = scmp.ne.s32.totalorder %s191, %s193
      %p200 = scmp.eq.s32.totalorder %s36, 1
      %p201 = por %p199, %p200
      %p202 = scmp.ne.s32.totalorder %s193, %s194
      %p203 = scmp.eq.s32.totalorder %s36, 0
      %p204 = por %p202, %p203
      %p205 = scmp.ne.s32.totalorder %s193, %s194
      %p206 = scmp.eq.s32.totalorder %s37, 1
      %p207 = por %p205, %p206
      %p209 = scmp.ne.s32.totalorder %s194, %s208
      %p210 = scmp.eq.s32.totalorder %s37, 0
      %p211 = por %p209, %p210
      %s213 = sadd.s32 %s212, 1
      %p216 = scmp.eq.s32.totalorder %s31, 1
      %p217 = scmp.ne.s32.totalorder %s212, %s214
      %p218 = scmp.eq.s32.totalorder %s31, 0
      %p219 = por %p217, %p218
      %p220 = scmp.ne.s32.totalorder %s212, %s214
      %p221 = scmp.eq.s32.totalorder %s36, 1
      %p222 = por %p220, %p221
      %p223 = scmp.ne.s32.totalorder %s214, %s215
      %p224 = scmp.eq.s32.totalorder %s36, 0
      %p225 = por %p223, %p224
      %p226 = scmp.ne.s32.totalorder %s214, %s215
      %p227 = scmp.eq.s32.totalorder %s37, 1
      %p228 = por %p226, %p227
      %p230 = scmp.ne.s32.totalorder %s215, %s229
      %p231 = scmp.eq.s32.totalorder %s37, 0
      %p232 = por %p230, %p231
      %s234 = sadd.s32 %s233, 1
      %p237 = scmp.eq.s32.totalorder %s31, 1
      %p238 = scmp.ne.s32.totalorder %s233, %s235
      %p239 = scmp.eq.s32.totalorder %s31, 0
      %p240 = por %p238, %p239
      %p241 = scmp.ne.s32.totalorder %s233, %s235
      %p242 = scmp.eq.s32.totalorder %s36, 1
      %p243 = por %p241, %p242
      %p244 = scmp.ne.s32.totalorder %s235, %s236
      %p245 = scmp.eq.s32.totalorder %s36, 0
      %p246 = por %p244, %p245
      %p247 = scmp.ne.s32.totalorder %s235, %s236
      %p248 = scmp.eq.s32.totalorder %s37, 1
      %p249 = por %p247, %p248
      %p251 = scmp.ne.s32.totalorder %s236, %s250
      %p252 = scmp.eq.s32.totalorder %s37, 0
      %p253 = por %p251, %p252
      %s255 = sadd.s32 %s254, 1
      %p258 = scmp.eq.s32.totalorder %s31, 1
      %p259 = scmp.ne.s32.totalorder %s254, %s256
      %p260 = scmp.eq.s32.totalorder %s31, 0
      %p261 = por %p259, %p260
      %p262 = scmp.ne.s32.totalorder %s254, %s256
      %p263 = scmp.eq.s32.totalorder %s36, 1
      %p264 = por %p262, %p263
      %p265 = scmp.ne.s32.totalorder %s256, %s257
      %p266 = scmp.eq.s32.totalorder %s36, 0
      %p267 = por %p265, %p266
      %p268 = scmp.ne.s32.totalorder %s256, %s257
      %p269 = scmp.eq.s32.totalorder %s37, 1
      %p270 = por %p268, %p269
      %p272 = scmp.ne.s32.totalorder %s257, %s271
      %p273 = scmp.eq.s32.totalorder %s37, 0
      %p274 = por %p272, %p273
      %s276 = sadd.s32 %s275, 1
      %p279 = scmp.eq.s32.totalorder %s31, 1
      %p280 = scmp.ne.s32.totalorder %s275, %s277
      %p281 = scmp.eq.s32.totalorder %s31, 0
      %p282 = por %p280, %p281
      %p283 = scmp.ne.s32.totalorder %s275, %s277
      %p284 = scmp.eq.s32.totalorder %s36, 1
      %p285 = por %p283, %p284
      %p286 = scmp.ne.s32.totalorder %s277, %s278
      %p287 = scmp.eq.s32.totalorder %s36, 0
      %p288 = por %p286, %p287
      %p289 = scmp.ne.s32.totalorder %s277, %s278
      %p290 = scmp.eq.s32.totalorder %s37, 1
      %p291 = por %p289, %p290
      %p293 = scmp.ne.s32.totalorder %s278, %s292
      %p294 = scmp.eq.s32.totalorder %s37, 0
      %p295 = por %p293, %p294
      %s297 = sadd.s32 %s296, 1
      %p300 = scmp.eq.s32.totalorder %s31, 1
      %p301 = scmp.ne.s32.totalorder %s296, %s298
      %p302 = scmp.eq.s32.totalorder %s31, 0
      %p303 = por %p301, %p302
      %p304 = scmp.ne.s32.totalorder %s296, %s298
      %p305 = scmp.eq.s32.totalorder %s36, 1
      %p306 = por %p304, %p305
      %p307 = scmp.ne.s32.totalorder %s298, %s299
      %p308 = scmp.eq.s32.totalorder %s36, 0
      %p309 = por %p307, %p308
      %p310 = scmp.ne.s32.totalorder %s298, %s299
      %p311 = scmp.eq.s32.totalorder %s37, 1
      %p312 = por %p310, %p311
      %p314 = scmp.ne.s32.totalorder %s299, %s313
      %p315 = scmp.eq.s32.totalorder %s37, 0
      %p316 = por %p314, %p315
      %s318 = sadd.s32 %s317, 1
      %p321 = scmp.eq.s32.totalorder %s31, 1
      %p322 = scmp.ne.s32.totalorder %s317, %s319
      %p323 = scmp.eq.s32.totalorder %s31, 0
      %p324 = por %p322, %p323
      %p325 = scmp.ne.s32.totalorder %s317, %s319
      %p326 = scmp.eq.s32.totalorder %s36, 1
      %p327 = por %p325, %p326
      %p328 = scmp.ne.s32.totalorder %s319, %s320
      %p329 = scmp.eq.s32.totalorder %s36, 0
      %p330 = por %p328, %p329
      %p331 = scmp.ne.s32.totalorder %s319, %s320
      %p332 = scmp.eq.s32.totalorder %s37, 1
      %p333 = por %p331, %p332
      %p335 = scmp.ne.s32.totalorder %s320, %s334
      %p336 = scmp.eq.s32.totalorder %s37, 0
      %p337 = por %p335, %p336
      %s339 = sadd.s32 %s338, 1
      %p342 = scmp.eq.s32.totalorder %s31, 1
      %p343 = scmp.ne.s32.totalorder %s338, %s340
      %p344 = scmp.eq.s32.totalorder %s31, 0
      %p345 = por %p343, %p344
      %p346 = scmp.ne.s32.totalorder %s338, %s340
      %p347 = scmp.eq.s32.totalorder %s36, 1
      %p348 = por %p346, %p347
      %p349 = scmp.ne.s32.totalorder %s340, %s341
      %p350 = scmp.eq.s32.totalorder %s36, 0
      %p351 = por %p349, %p350
      %p352 = scmp.ne.s32.totalorder %s340, %s341
      %p353 = scmp.eq.s32.totalorder %s37, 1
      %p354 = por %p352, %p353
      %p356 = scmp.ne.s32.totalorder %s341, %s355
      %p357 = scmp.eq.s32.totalorder %s37, 0
      %p358 = por %p356, %p357
      %s360 = sadd.s32 %s359, 1
      %p363 = scmp.eq.s32.totalorder %s31, 1
      %p364 = scmp.ne.s32.totalorder %s359, %s361
      %p365 = scmp.eq.s32.totalorder %s31, 0
      %p366 = por %p364, %p365
      %p367 = scmp.ne.s32.totalorder %s359, %s361
      %p368 = scmp.eq.s32.totalorder %s36, 1
      %p369 = por %p367, %p368
      %p370 = scmp.ne.s32.totalorder %s361, %s362
      %p371 = scmp.eq.s32.totalorder %s36, 0
      %p372 = por %p370, %p371
      %p373 = scmp.ne.s32.totalorder %s361, %s362
      %p374 = scmp.eq.s32.totalorder %s37, 1
      %p375 = por %p373, %p374
      %p377 = scmp.ne.s32.totalorder %s362, %s376
      %p378 = scmp.eq.s32.totalorder %s37, 0
      %p379 = por %p377, %p378
      %s381 = sadd.s32 %s380, 1
      %p384 = scmp.eq.s32.totalorder %s31, 1
      %p385 = scmp.ne.s32.totalorder %s380, %s382
      %p386 = scmp.eq.s32.totalorder %s31, 0
      %p387 = por %p385, %p386
      %p388 = scmp.ne.s32.totalorder %s380, %s382
      %p389 = scmp.eq.s32.totalorder %s36, 1
      %p390 = por %p388, %p389
      %p391 = scmp.ne.s32.totalorder %s382, %s383
      %p392 = scmp.eq.s32.totalorder %s36, 0
      %p393 = por %p391, %p392
      %p394 = scmp.ne.s32.totalorder %s382, %s383
      %p395 = scmp.eq.s32.totalorder %s37, 1
      %p396 = por %p394, %p395
      %p398 = scmp.ne.s32.totalorder %s383, %s397
      %p399 = scmp.eq.s32.totalorder %s37, 0
      %p400 = por %p398, %p399
      %s402 = sadd.s32 %s401, 1
      %p405 = scmp.eq.s32.totalorder %s31, 1
      %p406 = scmp.ne.s32.totalorder %s401, %s403
      %p407 = scmp.eq.s32.totalorder %s31, 0
      %p408 = por %p406, %p407
      %p409 = scmp.ne.s32.totalorder %s401, %s403
      %p410 = scmp.eq.s32.totalorder %s36, 1
      %p411 = por %p409, %p410
      %p412 = scmp.ne.s32.totalorder %s403, %s404
      %p413 = scmp.eq.s32.totalorder %s36, 0
      %p414 = por %p412, %p413
      %p415 = scmp.ne.s32.totalorder %s403, %s404
      %p416 = scmp.eq.s32.totalorder %s37, 1
      %p417 = por %p415, %p416
      %p419 = scmp.ne.s32.totalorder %s404, %s418
      %p420 = scmp.eq.s32.totalorder %s37, 0
      %p421 = por %p419, %p420
      %s423 = sadd.s32 %s422, 1
      %p426 = scmp.eq.s32.totalorder %s31, 1
      %p427 = scmp.ne.s32.totalorder %s422, %s424
      %p428 = scmp.eq.s32.totalorder %s31, 0
      %p429 = por %p427, %p428
      %p430 = scmp.ne.s32.totalorder %s422, %s424
      %p431 = scmp.eq.s32.totalorder %s36, 1
      %p432 = por %p430, %p431
      %p433 = scmp.ne.s32.totalorder %s424, %s425
      %p434 = scmp.eq.s32.totalorder %s36, 0
      %p435 = por %p433, %p434
      %p436 = scmp.ne.s32.totalorder %s424, %s425
      %p437 = scmp.eq.s32.totalorder %s37, 1
      %p438 = por %p436, %p437
      %p440 = scmp.ne.s32.totalorder %s425, %s439
      %p441 = scmp.eq.s32.totalorder %s37, 0
      %p442 = por %p440, %p441
      %s444 = sadd.s32 %s443, 1
      %p447 = scmp.eq.s32.totalorder %s31, 1
      %p448 = scmp.ne.s32.totalorder %s443, %s445
      %p449 = scmp.eq.s32.totalorder %s31, 0
      %p450 = por %p448, %p449
      %p451 = scmp.ne.s32.totalorder %s443, %s445
      %p452 = scmp.eq.s32.totalorder %s36, 1
      %p453 = por %p451, %p452
      %p454 = scmp.ne.s32.totalorder %s445, %s446
      %p455 = scmp.eq.s32.totalorder %s36, 0
      %p456 = por %p454, %p455
      %p457 = scmp.ne.s32.totalorder %s445, %s446
      %p458 = scmp.eq.s32.totalorder %s37, 1
      %p459 = por %p457, %p458
      %p461 = scmp.ne.s32.totalorder %s446, %s460
      %p462 = scmp.eq.s32.totalorder %s37, 0
      %p463 = por %p461, %p462
      %s465 = sadd.s32 %s464, 1
      %p468 = scmp.eq.s32.totalorder %s31, 1
      %p469 = scmp.ne.s32.totalorder %s464, %s466
      %p470 = scmp.eq.s32.totalorder %s31, 0
      %p471 = por %p469, %p470
      %p472 = scmp.ne.s32.totalorder %s464, %s466
      %p473 = scmp.eq.s32.totalorder %s36, 1
      %p474 = por %p472, %p473
      %p475 = scmp.ne.s32.totalorder %s466, %s467
      %p476 = scmp.eq.s32.totalorder %s36, 0
      %p477 = por %p475, %p476
      %p478 = scmp.ne.s32.totalorder %s466, %s467
      %p479 = scmp.eq.s32.totalorder %s37, 1
      %p480 = por %p478, %p479
      %p482 = scmp.ne.s32.totalorder %s467, %s481
      %p483 = scmp.eq.s32.totalorder %s37, 0
      %p484 = por %p482, %p483
      %s486 = sadd.s32 %s485, 1
      %p489 = scmp.eq.s32.totalorder %s31, 1
      %p490 = scmp.ne.s32.totalorder %s485, %s487
      %p491 = scmp.eq.s32.totalorder %s31, 0
      %p492 = por %p490, %p491
      %p493 = scmp.ne.s32.totalorder %s485, %s487
      %p494 = scmp.eq.s32.totalorder %s36, 1
      %p495 = por %p493, %p494
      %p496 = scmp.ne.s32.totalorder %s487, %s488
      %p497 = scmp.eq.s32.totalorder %s36, 0
      %p498 = por %p496, %p497
      %p499 = scmp.ne.s32.totalorder %s487, %s488
      %p500 = scmp.eq.s32.totalorder %s37, 1
      %p501 = por %p499, %p500
      %p503 = scmp.ne.s32.totalorder %s488, %s502
      %p504 = scmp.eq.s32.totalorder %s37, 0
      %p505 = por %p503, %p504
      %s506 = ssub.s32 %s31, %s38
      %p507 = scmp.eq.s32.totalorder %s506, 0
      %s509 = sadd.s32 %s508, 1
      %s510 = scalar_select %p507, %s508, %s509
      %p513 = pneg %p507
      %p514 = scmp.eq.s32.totalorder %s31, 1
      %p515 = por %p513, %p514
      %p516 = scmp.ne.s32.totalorder %s508, %s511
      %p517 = scmp.eq.s32.totalorder %s31, 0
      %p518 = por %p516, %p517
      %p519 = scmp.ne.s32.totalorder %s508, %s511
      %p520 = scmp.eq.s32.totalorder %s36, 1
      %p521 = por %p519, %p520
      %p522 = scmp.ne.s32.totalorder %s511, %s512
      %p523 = scmp.eq.s32.totalorder %s36, 0
      %p524 = por %p522, %p523
      %p525 = scmp.ne.s32.totalorder %s511, %s512
      %p526 = scmp.eq.s32.totalorder %s37, 1
      %p527 = por %p525, %p526
      %p529 = scmp.ne.s32.totalorder %s512, %s528
      %p530 = scmp.eq.s32.totalorder %s37, 0
      %p531 = por %p529, %p530
      %p532 = scmp.le.s32.totalorder 1, %s31
      %p533 = scmp.lt.s32.totalorder %s31, 3
      %p534 = pnand %p532, %p533
      %p535 = pneg %p534
      // Predicated region
      $region9: #{transformer_forward.1} parent=5 // pred_check
        _
      $region10: #{transformer_forward.1} parent=5 // pred_check_branch
        %537 = sbr.rel (%p534) target = $region12
      $region11: #{transformer_forward.1} parent=5 // pred_region
        %s538 = ssub.s32 %s31, 1
        // Predicated region
        $region13: #{transformer_forward.1} parent=11 // pred_check
          %p539 = pneg %p78
        $region14: #{transformer_forward.1} parent=11 // pred_check_branch
          %541 = sbr.rel (%p539) target = $region16
        $region15: #{transformer_forward.1} parent=11 // pred_region
          _
        $region16: #{transformer_forward.1} parent=11 // pred_fallthru
          _
        // Predicated region
        $region17: #{transformer_forward.1} parent=11 // pred_check
          %p542 = pneg %p99
        $region18: #{transformer_forward.1} parent=11 // pred_check_branch
          %544 = sbr.rel (%p542) target = $region20
        $region19: #{transformer_forward.1} parent=11 // pred_region
          _
        $region20: #{transformer_forward.1} parent=11 // pred_fallthru
          _
        // Predicated region
        $region21: #{transformer_forward.1} parent=11 // pred_check
          %p545 = pneg %p120
        $region22: #{transformer_forward.1} parent=11 // pred_check_branch
          %547 = sbr.rel (%p545) target = $region24
        $region23: #{transformer_forward.1} parent=11 // pred_region
          _
        $region24: #{transformer_forward.1} parent=11 // pred_fallthru
          _
        // Predicated region
        $region25: #{transformer_forward.1} parent=11 // pred_check
          %p548 = pneg %p141
        $region26: #{transformer_forward.1} parent=11 // pred_check_branch
          %550 = sbr.rel (%p548) target = $region28
        $region27: #{transformer_forward.1} parent=11 // pred_region
          _
        $region28: #{transformer_forward.1} parent=11 // pred_fallthru
          _
        // Predicated region
        $region29: #{transformer_forward.1} parent=11 // pred_check
          %p551 = pneg %p162
        $region30: #{transformer_forward.1} parent=11 // pred_check_branch
          %553 = sbr.rel (%p551) target = $region32
        $region31: #{transformer_forward.1} parent=11 // pred_region
          _
        $region32: #{transformer_forward.1} parent=11 // pred_fallthru
          _
        // Predicated region
        $region33: #{transformer_forward.1} parent=11 // pred_check
          %p554 = pneg %p183
        $region34: #{transformer_forward.1} parent=11 // pred_check_branch
          %556 = sbr.rel (%p554) target = $region36
        $region35: #{transformer_forward.1} parent=11 // pred_region
          _
        $region36: #{transformer_forward.1} parent=11 // pred_fallthru
          _
        // Predicated region
        $region37: #{transformer_forward.1} parent=11 // pred_check
          %p557 = pneg %p204
        $region38: #{transformer_forward.1} parent=11 // pred_check_branch
          %559 = sbr.rel (%p557) target = $region40
        $region39: #{transformer_forward.1} parent=11 // pred_region
          _
        $region40: #{transformer_forward.1} parent=11 // pred_fallthru
          _
        // Predicated region
        $region41: #{transformer_forward.1} parent=11 // pred_check
          %p560 = pneg %p225
        $region42: #{transformer_forward.1} parent=11 // pred_check_branch
          %562 = sbr.rel (%p560) target = $region44
        $region43: #{transformer_forward.1} parent=11 // pred_region
          _
        $region44: #{transformer_forward.1} parent=11 // pred_fallthru
          _
        // Predicated region
        $region45: #{transformer_forward.1} parent=11 // pred_check
          %p563 = pneg %p246
        $region46: #{transformer_forward.1} parent=11 // pred_check_branch
          %565 = sbr.rel (%p563) target = $region48
        $region47: #{transformer_forward.1} parent=11 // pred_region
          _
        $region48: #{transformer_forward.1} parent=11 // pred_fallthru
          _
        // Predicated region
        $region49: #{transformer_forward.1} parent=11 // pred_check
          %p566 = pneg %p267
        $region50: #{transformer_forward.1} parent=11 // pred_check_branch
          %568 = sbr.rel (%p566) target = $region52
        $region51: #{transformer_forward.1} parent=11 // pred_region
          _
        $region52: #{transformer_forward.1} parent=11 // pred_fallthru
          _
        // Predicated region
        $region53: #{transformer_forward.1} parent=11 // pred_check
          %p569 = pneg %p288
        $region54: #{transformer_forward.1} parent=11 // pred_check_branch
          %571 = sbr.rel (%p569) target = $region56
        $region55: #{transformer_forward.1} parent=11 // pred_region
          _
        $region56: #{transformer_forward.1} parent=11 // pred_fallthru
          _
        // Predicated region
        $region57: #{transformer_forward.1} parent=11 // pred_check
          %p572 = pneg %p309
        $region58: #{transformer_forward.1} parent=11 // pred_check_branch
          %574 = sbr.rel (%p572) target = $region60
        $region59: #{transformer_forward.1} parent=11 // pred_region
          _
        $region60: #{transformer_forward.1} parent=11 // pred_fallthru
          _
        // Predicated region
        $region61: #{transformer_forward.1} parent=11 // pred_check
          %p575 = pneg %p330
        $region62: #{transformer_forward.1} parent=11 // pred_check_branch
          %577 = sbr.rel (%p575) target = $region64
        $region63: #{transformer_forward.1} parent=11 // pred_region
          _
        $region64: #{transformer_forward.1} parent=11 // pred_fallthru
          _
        // Predicated region
        $region65: #{transformer_forward.1} parent=11 // pred_check
          %p578 = pneg %p351
        $region66: #{transformer_forward.1} parent=11 // pred_check_branch
          %580 = sbr.rel (%p578) target = $region68
        $region67: #{transformer_forward.1} parent=11 // pred_region
          _
        $region68: #{transformer_forward.1} parent=11 // pred_fallthru
          _
        // Predicated region
        $region69: #{transformer_forward.1} parent=11 // pred_check
          %p581 = pneg %p372
        $region70: #{transformer_forward.1} parent=11 // pred_check_branch
          %583 = sbr.rel (%p581) target = $region72
        $region71: #{transformer_forward.1} parent=11 // pred_region
          _
        $region72: #{transformer_forward.1} parent=11 // pred_fallthru
          _
        // Predicated region
        $region73: #{transformer_forward.1} parent=11 // pred_check
          %p584 = pneg %p393
        $region74: #{transformer_forward.1} parent=11 // pred_check_branch
          %586 = sbr.rel (%p584) target = $region76
        $region75: #{transformer_forward.1} parent=11 // pred_region
          _
        $region76: #{transformer_forward.1} parent=11 // pred_fallthru
          _
        // Predicated region
        $region77: #{transformer_forward.1} parent=11 // pred_check
          %p587 = pneg %p414
        $region78: #{transformer_forward.1} parent=11 // pred_check_branch
          %589 = sbr.rel (%p587) target = $region80
        $region79: #{transformer_forward.1} parent=11 // pred_region
          _
        $region80: #{transformer_forward.1} parent=11 // pred_fallthru
          _
        // Predicated region
        $region81: #{transformer_forward.1} parent=11 // pred_check
          %p590 = pneg %p435
        $region82: #{transformer_forward.1} parent=11 // pred_check_branch
          %592 = sbr.rel (%p590) target = $region84
        $region83: #{transformer_forward.1} parent=11 // pred_region
          _
        $region84: #{transformer_forward.1} parent=11 // pred_fallthru
          _
        // Predicated region
        $region85: #{transformer_forward.1} parent=11 // pred_check
          %p593 = pneg %p456
        $region86: #{transformer_forward.1} parent=11 // pred_check_branch
          %595 = sbr.rel (%p593) target = $region88
        $region87: #{transformer_forward.1} parent=11 // pred_region
          _
        $region88: #{transformer_forward.1} parent=11 // pred_fallthru
          _
        // Predicated region
        $region89: #{transformer_forward.1} parent=11 // pred_check
          %p596 = pneg %p477
        $region90: #{transformer_forward.1} parent=11 // pred_check_branch
          %598 = sbr.rel (%p596) target = $region92
        $region91: #{transformer_forward.1} parent=11 // pred_region
          _
        $region92: #{transformer_forward.1} parent=11 // pred_fallthru
          _
        // Predicated region
        $region93: #{transformer_forward.1} parent=11 // pred_check
          %p599 = pneg %p498
        $region94: #{transformer_forward.1} parent=11 // pred_check_branch
          %601 = sbr.rel (%p599) target = $region96
        $region95: #{transformer_forward.1} parent=11 // pred_region
          _
        $region96: #{transformer_forward.1} parent=11 // pred_fallthru
          _
      $region12: #{transformer_forward.1} parent=5 // pred_fallthru
        _
      %p602 = scmp.lt.s32.totalorder %s31, 2
      // Predicated region
      $region97: #{transformer_forward.1} parent=5 // pred_check
        %p603 = pneg %p602
      $region98: #{transformer_forward.1} parent=5 // pred_check_branch
        %605 = sbr.rel (%p603) target = $region100
      $region99: #{transformer_forward.1} parent=5 // pred_region
        // Predicated region
        $region101: #{transformer_forward.1} parent=99 // pred_check
          %p606 = pneg %p51
        $region102: #{transformer_forward.1} parent=99 // pred_check_branch
          %608 = sbr.rel (%p606) target = $region104
        $region103: #{transformer_forward.1} parent=99 // pred_region
          %p609 = scmp.lt.s32.totalorder %s31, 1
          %s610 = scalar_select %p609, %s31, 1
          %s611 = smul.addr %s610, 8
          %s612 = scalar_lea.vmem %s0, %s611
        $region104: #{transformer_forward.1} parent=99 // pred_fallthru
          _
      $region100: #{transformer_forward.1} parent=5 // pred_fallthru
        _
      %p613 = scmp.le.s32.totalorder 1, %s31
      %p614 = scmp.lt.s32.totalorder %s31, 3
      %p615 = pnand %p613, %p614
      %p616 = pneg %p615
      // Predicated region
      $region105: #{transformer_forward.1} parent=5 // pred_check
        _
      $region106: #{transformer_forward.1} parent=5 // pred_check_branch
        %618 = sbr.rel (%p615) target = $region108
      $region107: #{transformer_forward.1} parent=5 // pred_region
        %s619 = ssub.s32 %s31, 1
        %p620 = scmp.lt.s32.totalorder %s36, 1
        %s621 = scalar_select %p620, %s36, 1
        %s622 = smul.addr %s621, 8
        %s623 = scalar_lea.vmem %s0, %s622
        %p624 = pneg %p57
        %p625 = pneg %p54
        %p626 = pneg %p78
        %p627 = pneg %p75
        %p628 = pneg %p99
        %p629 = pneg %p96
        %p630 = pneg %p120
        %p631 = pneg %p117
        %p632 = pneg %p141
        %p633 = pneg %p138
        %p634 = pneg %p162
        %p635 = pneg %p159
        %p636 = pneg %p183
        %p637 = pneg %p180
        %p638 = pneg %p204
        %p639 = pneg %p201
        %p640 = pneg %p225
        %p641 = pneg %p222
        %p642 = pneg %p246
        %p643 = pneg %p243
        %p644 = pneg %p267
        %p645 = pneg %p264
        %p646 = pneg %p288
        %p647 = pneg %p285
        %p648 = pneg %p309
        %p649 = pneg %p306
        %p650 = pneg %p330
        %p651 = pneg %p327
        %p652 = pneg %p351
        %p653 = pneg %p348
        %p654 = pneg %p372
        %p655 = pneg %p369
        %p656 = pneg %p393
        %p657 = pneg %p390
        %p658 = pneg %p414
        %p659 = pneg %p411
        %p660 = pneg %p435
        %p661 = pneg %p432
        %p662 = pneg %p456
        %p663 = pneg %p453
        %p664 = pneg %p477
        %p665 = pneg %p474
        %p666 = pneg %p498
        %p667 = pneg %p495
        %p668 = pneg %p524
        %p669 = pneg %p521
        %s670 = sand.u32 %s511, 1
        %s671 = scalar_lea.sflag [#allocation3], %s670
        %s672 = sand.u32 %s511, 1
        %s673 = scalar_lea.vmem [#allocation2], %s672
        %p674 = scmp.lt.s32.totalorder %s36, 1
        %s675 = scalar_select %p674, %s36, 1
        %s676 = smul.addr %s675, 8
        %s677 = scalar_lea.vmem %s0, %s676
        %v678 = vld [vmem:[%s677] sm:$0xff]
        %v679 = vld [vmem:[%s1] sm:$0xff]
        %v680 = vadd.f32 %v678, %v679
        %v681 = vld [vmem:[%s2] sm:$0x1]
        %v682 = vld [vmem:[%s3] sm:$0x1]
        %vm683 = vcmask 261120
        %v684 = vsel %vm683, %v680, 0.0
        %685 = vadd.xlane.f32.xlu0 %v684
        %v686 = vpop.xlane.xlu0 %685
        %v687 = vrcp.pop 32.0
        %v688 = vmul.f32 32.0, %v687
        %v689 = vsub.f32 1.0, %v688
        %v690 = vmul.f32 %v687, %v689
        %v691 = vadd.f32 %v687, %v690
        %vm692 = vweird.f32 %v687
        %v693 = vsel %vm692, %v687, %v691
        %v694 = vmul.f32 %v686, %v693
        %v695 = vsub.f32 %v680, %v694
        %v696 = vmul.f32 %v695, %v695
        %v697 = vsel %vm683, %v696, 0.0
        %698 = vadd.xlane.f32.xlu0 %v697
        %v699 = vpop.xlane.xlu0 %698
        %v700 = vmul.f32 %v699, %v693
        %v701 = vadd.f32 %v700, 1e-06
        %v702 = vrsqrt.pop %v701
        %v703 = vmul.f32 %v702, %v701
        %v704 = vmul.f32 %v703, %v702
        %v705 = vmul.f32 0.5, %v704
        %v706 = vsub.f32 1.5, %v705
        %v707 = vmul.f32 %v702, %v706
        %vm708 = vweird.f32 %v701
        %vm709 = vweird.f32 %v702
        %vm710 = vmor %vm708, %vm709
        %v711 = vsel %vm710, %v702, %v707
        %v712 = vmul.f32 %v695, %v711
        %v714 = vperm.slane %v681, 0
        %v716 = vmul.f32 %v712, %v714
        %v718 = vperm.slane %v682, 0
        %v720 = vadd.f32 %v716, %v718
        %v721 = vld [vmem:[%s4] sm:$0xff]
        %v722 = vld [vmem:[%s4 + $0x8] sm:$0xff]
        %v723 = vld [vmem:[%s4 + $0x10] sm:$0xff]
        %v724 = vld [vmem:[%s4 + $0x18] sm:$0xff]
        %v725 = vld [vmem:[%s4 + $0x20] sm:$0xff]
        %v726 = vld [vmem:[%s4 + $0x28] sm:$0xff]
        %v727 = vld [vmem:[%s4 + $0x30] sm:$0xff]
        %v728 = vld [vmem:[%s4 + $0x38] sm:$0xff]
        %v729 = vld [vmem:[%s4 + $0x40] sm:$0xff]
        %v730 = vld [vmem:[%s4 + $0x48] sm:$0xff]
        %v731 = vld [vmem:[%s4 + $0x50] sm:$0xff]
        %v732 = vld [vmem:[%s4 + $0x58] sm:$0xff]
        %v733 = vld [vmem:[%s4 + $0x60] sm:$0xff]
        %v734 = vld [vmem:[%s4 + $0x68] sm:$0xff]
        %v735 = vld [vmem:[%s4 + $0x70] sm:$0xff]
        %v736 = vld [vmem:[%s4 + $0x78] sm:$0xff]
        %v737 = vld [vmem:[%s4 + $0x80] sm:$0xff]
        %v738 = vld [vmem:[%s4 + $0x88] sm:$0xff]
        %v739 = vld [vmem:[%s4 + $0x90] sm:$0xff]
        %v740 = vld [vmem:[%s4 + $0x98] sm:$0xff]
        %v741 = vld [vmem:[%s4 + $0xa0] sm:$0xff]
        %v742 = vld [vmem:[%s4 + $0xa8] sm:$0xff]
        %v743 = vld [vmem:[%s4 + $0xb0] sm:$0xff]
        %v744 = vld [vmem:[%s4 + $0xb8] sm:$0xff]
        %v745 = vld [vmem:[%s4 + $0xc0] sm:$0xff]
        %v746 = vld [vmem:[%s4 + $0xc8] sm:$0xff]
        %v747 = vld [vmem:[%s4 + $0xd0] sm:$0xff]
        %v748 = vld [vmem:[%s4 + $0xd8] sm:$0xff]
        %v749 = vld [vmem:[%s4 + $0xe0] sm:$0xff]
        %v750 = vld [vmem:[%s4 + $0xe8] sm:$0xff]
        %v751 = vld [vmem:[%s4 + $0xf0] sm:$0xff]
        %v752 = vld [vmem:[%s4 + $0xf8] sm:$0xff]
        %v753 = vld [vmem:[%s4 + $0x100] sm:$0xff]
        %v754 = vld [vmem:[%s4 + $0x108] sm:$0xff]
        %v755 = vld [vmem:[%s4 + $0x110] sm:$0xff]
        %v756 = vld [vmem:[%s4 + $0x118] sm:$0xff]
        %v757 = vld [vmem:[%s4 + $0x120] sm:$0xff]
        %v758 = vld [vmem:[%s4 + $0x128] sm:$0xff]
        %v759 = vld [vmem:[%s4 + $0x130] sm:$0xff]
        %v760 = vld [vmem:[%s4 + $0x138] sm:$0xff]
        %v761 = vld [vmem:[%s4 + $0x140] sm:$0xff]
        %v762 = vld [vmem:[%s4 + $0x148] sm:$0xff]
        %v763 = vld [vmem:[%s4 + $0x150] sm:$0xff]
        %v764 = vld [vmem:[%s4 + $0x158] sm:$0xff]
        %v765 = vld [vmem:[%s4 + $0x160] sm:$0xff]
        %v766 = vld [vmem:[%s4 + $0x168] sm:$0xff]
        %v767 = vld [vmem:[%s4 + $0x170] sm:$0xff]
        %v768 = vld [vmem:[%s4 + $0x178] sm:$0xff]
        %v769 = vld [vmem:[%s5] sm:$0x1]
        %v770 = vld [vmem:[%s5 + $0x1] sm:$0x1]
        %v771 = vld [vmem:[%s5 + $0x2] sm:$0x1]
        %v772 = vld [vmem:[%s5 + $0x3] sm:$0x1]
        %v773 = vld [vmem:[%s5 + $0x4] sm:$0x1]
        %v774 = vld [vmem:[%s5 + $0x5] sm:$0x1]
        %v775 = vld [vmem:[%s5 + $0x6] sm:$0x1]
        %v776 = vld [vmem:[%s5 + $0x7] sm:$0x1]
        %v777 = vld [vmem:[%s5 + $0x8] sm:$0x1]
        %v778 = vld [vmem:[%s5 + $0x9] sm:$0x1]
        %v779 = vld [vmem:[%s5 + $0xa] sm:$0x1]
        %v780 = vld [vmem:[%s5 + $0xb] sm:$0x1]
        %v793 = vperm.slane %v769, 0
        %v794 = vperm.slane %v770, 0
        %v795 = vperm.slane %v771, 0
        %v796 = vperm.slane %v772, 0
        %v797 = vperm.slane %v773, 0
        %v798 = vperm.slane %v774, 0
        %v799 = vperm.slane %v775, 0
        %v800 = vperm.slane %v776, 0
        %v801 = vperm.slane %v777, 0
        %v802 = vperm.slane %v778, 0
        %v803 = vperm.slane %v779, 0
        %v804 = vperm.slane %v780, 0
        %v818 = vsel %vm683, %v720, 0
        %820 = vmatpush.msra.mxu0 0.0
        %821 = vmatpush.msra.mxu0 0.0
        %822 = vmatpush.msra.mxu0 0.0
        %823 = vmatpush.msra.mxu0 0.0
        %824 = vmatpush.msra.mxu0 0.0
        %825 = vmatpush.msra.mxu0 0.0
        %826 = vmatpush.msra.mxu0 0.0
        %827 = vmatpush.msra.mxu0 0.0
        %828 = vmatpush.msra.mxu0 0.0
        %829 = vmatpush.msra.mxu0 0.0
        %830 = vmatpush.msra.mxu0 0.0
        %831 = vmatpush.msra.mxu0 0.0
        %832 = vmatpush.msra.mxu0 %v724
        %833 = vmatpush.msra.mxu0 %v723
        %834 = vmatpush.msra.mxu0 %v722
        %835 = vmatpush.msra.mxu0 %v721
        %836 = vmatmul.f32.gmra.mxu0 %v818
        %v837 = vpop.f32.mrf.mxu0
        %v838 = vadd.f32 %v793, %v837
        %839 = vdwg.mxu0
        %840 = vmatpush.msra.mxu0 0.0
        %841 = vmatpush.msra.mxu0 0.0
        %842 = vmatpush.msra.mxu0 0.0
        %843 = vmatpush.msra.mxu0 0.0
        %844 = vmatpush.msra.mxu0 0.0
        %845 = vmatpush.msra.mxu0 0.0
        %846 = vmatpush.msra.mxu0 0.0
        %847 = vmatpush.msra.mxu0 0.0
        %848 = vmatpush.msra.mxu0 0.0
        %849 = vmatpush.msra.mxu0 0.0
        %850 = vmatpush.msra.mxu0 0.0
        %851 = vmatpush.msra.mxu0 0.0
        %852 = vmatpush.msra.mxu0 %v728
        %853 = vmatpush.msra.mxu0 %v727
        %854 = vmatpush.msra.mxu0 %v726
        %855 = vmatpush.msra.mxu0 %v725
        %856 = vmatmul.f32.gmra.mxu0 %v818
        %v857 = vpop.f32.mrf.mxu0
        %v858 = vadd.f32 %v794, %v857
        %859 = vdwg.mxu0
        %860 = vmatpush.msra.mxu0 0.0
        %861 = vmatpush.msra.mxu0 0.0
        %862 = vmatpush.msra.mxu0 0.0
        %863 = vmatpush.msra.mxu0 0.0
        %864 = vmatpush.msra.mxu0 0.0
        %865 = vmatpush.msra.mxu0 0.0
        %866 = vmatpush.msra.mxu0 0.0
        %867 = vmatpush.msra.mxu0 0.0
        %868 = vmatpush.msra.mxu0 0.0
        %869 = vmatpush.msra.mxu0 0.0
        %870 = vmatpush.msra.mxu0 0.0
        %871 = vmatpush.msra.mxu0 0.0
        %872 = vmatpush.msra.mxu0 %v732
        %873 = vmatpush.msra.mxu0 %v731
        %874 = vmatpush.msra.mxu0 %v730
        %875 = vmatpush.msra.mxu0 %v729
        %876 = vmatmul.f32.gmra.mxu0 %v818
        %v877 = vpop.f32.mrf.mxu0
        %v878 = vadd.f32 %v795, %v877
        %879 = vdwg.mxu0
        %880 = vmatpush.msra.mxu0 0.0
        %881 = vmatpush.msra.mxu0 0.0
        %882 = vmatpush.msra.mxu0 0.0
        %883 = vmatpush.msra.mxu0 0.0
        %884 = vmatpush.msra.mxu0 0.0
        %885 = vmatpush.msra.mxu0 0.0
        %886 = vmatpush.msra.mxu0 0.0
        %887 = vmatpush.msra.mxu0 0.0
        %888 = vmatpush.msra.mxu0 0.0
        %889 = vmatpush.msra.mxu0 0.0
        %890 = vmatpush.msra.mxu0 0.0
        %891 = vmatpush.msra.mxu0 0.0
        %892 = vmatpush.msra.mxu0 %v736
        %893 = vmatpush.msra.mxu0 %v735
        %894 = vmatpush.msra.mxu0 %v734
        %895 = vmatpush.msra.mxu0 %v733
        %896 = vmatmul.f32.gmra.mxu0 %v818
        %v897 = vpop.f32.mrf.mxu0
        %v898 = vadd.f32 %v796, %v897
        %899 = vdwg.mxu0
        %900 = vmatpush.msra.mxu0 0.0
        %901 = vmatpush.msra.mxu0 0.0
        %902 = vmatpush.msra.mxu0 0.0
        %903 = vmatpush.msra.mxu0 0.0
        %904 = vmatpush.msra.mxu0 0.0
        %905 = vmatpush.msra.mxu0 0.0
        %906 = vmatpush.msra.mxu0 0.0
        %907 = vmatpush.msra.mxu0 0.0
        %908 = vmatpush.msra.mxu0 0.0
        %909 = vmatpush.msra.mxu0 0.0
        %910 = vmatpush.msra.mxu0 0.0
        %911 = vmatpush.msra.mxu0 0.0
        %912 = vmatpush.msra.mxu0 %v740
        %913 = vmatpush.msra.mxu0 %v739
        %914 = vmatpush.msra.mxu0 %v738
        %915 = vmatpush.msra.mxu0 %v737
        %916 = vmatmul.f32.gmra.mxu0 %v818
        %v917 = vpop.f32.mrf.mxu0
        %v918 = vadd.f32 %v797, %v917
        %919 = vdwg.mxu0
        %920 = vmatpush.msra.mxu0 0.0
        %921 = vmatpush.msra.mxu0 0.0
        %922 = vmatpush.msra.mxu0 0.0
        %923 = vmatpush.msra.mxu0 0.0
        %924 = vmatpush.msra.mxu0 0.0
        %925 = vmatpush.msra.mxu0 0.0
        %926 = vmatpush.msra.mxu0 0.0
        %927 = vmatpush.msra.mxu0 0.0
        %928 = vmatpush.msra.mxu0 0.0
        %929 = vmatpush.msra.mxu0 0.0
        %930 = vmatpush.msra.mxu0 0.0
        %931 = vmatpush.msra.mxu0 0.0
        %932 = vmatpush.msra.mxu0 %v744
        %933 = vmatpush.msra.mxu0 %v743
        %934 = vmatpush.msra.mxu0 %v742
        %935 = vmatpush.msra.mxu0 %v741
        %936 = vmatmul.f32.gmra.mxu0 %v818
        %v937 = vpop.f32.mrf.mxu0
        %v938 = vadd.f32 %v798, %v937
        %939 = vdwg.mxu0
        %940 = vmatpush.msra.mxu0 0.0
        %941 = vmatpush.msra.mxu0 0.0
        %942 = vmatpush.msra.mxu0 0.0
        %943 = vmatpush.msra.mxu0 0.0
        %944 = vmatpush.msra.mxu0 0.0
        %945 = vmatpush.msra.mxu0 0.0
        %946 = vmatpush.msra.mxu0 0.0
        %947 = vmatpush.msra.mxu0 0.0
        %948 = vmatpush.msra.mxu0 0.0
        %949 = vmatpush.msra.mxu0 0.0
        %950 = vmatpush.msra.mxu0 0.0
        %951 = vmatpush.msra.mxu0 0.0
        %952 = vmatpush.msra.mxu0 %v748
        %953 = vmatpush.msra.mxu0 %v747
        %954 = vmatpush.msra.mxu0 %v746
        %955 = vmatpush.msra.mxu0 %v745
        %956 = vmatmul.f32.gmra.mxu0 %v818
        %v957 = vpop.f32.mrf.mxu0
        %v958 = vadd.f32 %v799, %v957
        %959 = vdwg.mxu0
        %960 = vmatpush.msra.mxu0 0.0
        %961 = vmatpush.msra.mxu0 0.0
        %962 = vmatpush.msra.mxu0 0.0
        %963 = vmatpush.msra.mxu0 0.0
        %964 = vmatpush.msra.mxu0 0.0
        %965 = vmatpush.msra.mxu0 0.0
        %966 = vmatpush.msra.mxu0 0.0
        %967 = vmatpush.msra.mxu0 0.0
        %968 = vmatpush.msra.mxu0 0.0
        %969 = vmatpush.msra.mxu0 0.0
        %970 = vmatpush.msra.mxu0 0.0
        %971 = vmatpush.msra.mxu0 0.0
        %972 = vmatpush.msra.mxu0 %v752
        %973 = vmatpush.msra.mxu0 %v751
        %974 = vmatpush.msra.mxu0 %v750
        %975 = vmatpush.msra.mxu0 %v749
        %976 = vmatmul.f32.gmra.mxu0 %v818
        %v977 = vpop.f32.mrf.mxu0
        %v978 = vadd.f32 %v800, %v977
        %979 = vdwg.mxu0
        %980 = vmatpush.msra.mxu0 0.0
        %981 = vmatpush.msra.mxu0 0.0
        %982 = vmatpush.msra.mxu0 0.0
        %983 = vmatpush.msra.mxu0 0.0
        %984 = vmatpush.msra.mxu0 0.0
        %985 = vmatpush.msra.mxu0 0.0
        %986 = vmatpush.msra.mxu0 0.0
        %987 = vmatpush.msra.mxu0 0.0
        %988 = vmatpush.msra.mxu0 0.0
        %989 = vmatpush.msra.mxu0 0.0
        %990 = vmatpush.msra.mxu0 0.0
        %991 = vmatpush.msra.mxu0 0.0
        %992 = vmatpush.msra.mxu0 %v756
        %993 = vmatpush.msra.mxu0 %v755
        %994 = vmatpush.msra.mxu0 %v754
        %995 = vmatpush.msra.mxu0 %v753
        %996 = vmatmul.f32.gmra.mxu0 %v818
        %v997 = vpop.f32.mrf.mxu0
        %v998 = vadd.f32 %v801, %v997
        %999 = vdwg.mxu0
        %1000 = vmatpush.msra.mxu0 0.0
        %1001 = vmatpush.msra.mxu0 0.0
        %1002 = vmatpush.msra.mxu0 0.0
        %1003 = vmatpush.msra.mxu0 0.0
        %1004 = vmatpush.msra.mxu0 0.0
        %1005 = vmatpush.msra.mxu0 0.0
        %1006 = vmatpush.msra.mxu0 0.0
        %1007 = vmatpush.msra.mxu0 0.0
        %1008 = vmatpush.msra.mxu0 0.0
        %1009 = vmatpush.msra.mxu0 0.0
        %1010 = vmatpush.msra.mxu0 0.0
        %1011 = vmatpush.msra.mxu0 0.0
        %1012 = vmatpush.msra.mxu0 %v760
        %1013 = vmatpush.msra.mxu0 %v759
        %1014 = vmatpush.msra.mxu0 %v758
        %1015 = vmatpush.msra.mxu0 %v757
        %1016 = vmatmul.f32.gmra.mxu0 %v818
        %v1017 = vpop.f32.mrf.mxu0
        %v1018 = vadd.f32 %v802, %v1017
        %1019 = vdwg.mxu0
        %1020 = vmatpush.msra.mxu0 0.0
        %1021 = vmatpush.msra.mxu0 0.0
        %1022 = vmatpush.msra.mxu0 0.0
        %1023 = vmatpush.msra.mxu0 0.0
        %1024 = vmatpush.msra.mxu0 0.0
        %1025 = vmatpush.msra.mxu0 0.0
        %1026 = vmatpush.msra.mxu0 0.0
        %1027 = vmatpush.msra.mxu0 0.0
        %1028 = vmatpush.msra.mxu0 0.0
        %1029 = vmatpush.msra.mxu0 0.0
        %1030 = vmatpush.msra.mxu0 0.0
        %1031 = vmatpush.msra.mxu0 0.0
        %1032 = vmatpush.msra.mxu0 %v764
        %1033 = vmatpush.msra.mxu0 %v763
        %1034 = vmatpush.msra.mxu0 %v762
        %1035 = vmatpush.msra.mxu0 %v761
        %1036 = vmatmul.f32.gmra.mxu0 %v818
        %v1037 = vpop.f32.mrf.mxu0
        %v1038 = vadd.f32 %v803, %v1037
        %1039 = vdwg.mxu0
        %1040 = vmatpush.msra.mxu0 0.0
        %1041 = vmatpush.msra.mxu0 0.0
        %1042 = vmatpush.msra.mxu0 0.0
        %1043 = vmatpush.msra.mxu0 0.0
        %1044 = vmatpush.msra.mxu0 0.0
        %1045 = vmatpush.msra.mxu0 0.0
        %1046 = vmatpush.msra.mxu0 0.0
        %1047 = vmatpush.msra.mxu0 0.0
        %1048 = vmatpush.msra.mxu0 0.0
        %1049 = vmatpush.msra.mxu0 0.0
        %1050 = vmatpush.msra.mxu0 0.0
        %1051 = vmatpush.msra.mxu0 0.0
        %1052 = vmatpush.msra.mxu0 %v768
        %1053 = vmatpush.msra.mxu0 %v767
        %1054 = vmatpush.msra.mxu0 %v766
        %1055 = vmatpush.msra.mxu0 %v765
        %1056 = vmatmul.f32.gmra.mxu0 %v818
        %v1057 = vpop.f32.mrf.mxu0
        %v1058 = vadd.f32 %v804, %v1057
        %1059 = vdwg.mxu0
        %vm1060 = vcmask 64512
        %v1062 = vsel %vm1060, %v838, 0
        %v1065 = vsel %vm1060, %v918, 0
        %1067 = vmatpush.xpose.msra.mxu0 0.0
        %1068 = vmatpush.xpose.msra.mxu0 0.0
        %1069 = vmatpush.xpose.msra.mxu0 0.0
        %1070 = vmatpush.xpose.msra.mxu0 0.0
        %1071 = vmatpush.xpose.msra.mxu0 0.0
        %1072 = vmatpush.xpose.msra.mxu0 0.0
        %1073 = vmatpush.xpose.msra.mxu0 0.0
        %1074 = vmatpush.xpose.msra.mxu0 0.0
        %1075 = vmatpush.xpose.msra.mxu0 0.0
        %1076 = vmatpush.xpose.msra.mxu0 0.0
        %1077 = vmatpush.xpose.msra.mxu0 0.0
        %1078 = vmatpush.xpose.msra.mxu0 0.0
        %1079 = vmatpush.xpose.msra.mxu0 0.0
        %1080 = vmatpush.xpose.msra.mxu0 0.0
        %1081 = vmatpush.xpose.msra.mxu0 0.0
        %1082 = vmatpush.xpose.msra.mxu0 %v1065
        %1083 = vmatmul.f32.gmra.mxu0 %v1062
        %v1084 = vpop.f32.mrf.mxu0
        %v1085 = vadd.f32 0.0, %v1084
        %1086 = vdwg.mxu0
        %v1088 = vsel %vm1060, %v858, 0
        %v1091 = vsel %vm1060, %v938, 0
        %1093 = vmatpush.xpose.msra.mxu0 0.0
        %1094 = vmatpush.xpose.msra.mxu0 0.0
        %1095 = vmatpush.xpose.msra.mxu0 0.0
        %1096 = vmatpush.xpose.msra.mxu0 0.0
        %1097 = vmatpush.xpose.msra.mxu0 0.0
        %1098 = vmatpush.xpose.msra.mxu0 0.0
        %1099 = vmatpush.xpose.msra.mxu0 0.0
        %1100 = vmatpush.xpose.msra.mxu0 0.0
        %1101 = vmatpush.xpose.msra.mxu0 0.0
        %1102 = vmatpush.xpose.msra.mxu0 0.0
        %1103 = vmatpush.xpose.msra.mxu0 0.0
        %1104 = vmatpush.xpose.msra.mxu0 0.0
        %1105 = vmatpush.xpose.msra.mxu0 0.0
        %1106 = vmatpush.xpose.msra.mxu0 0.0
        %1107 = vmatpush.xpose.msra.mxu0 0.0
        %1108 = vmatpush.xpose.msra.mxu0 %v1091
        %1109 = vmatmul.f32.gmra.mxu0 %v1088
        %v1110 = vpop.f32.mrf.mxu0
        %v1111 = vadd.f32 0.0, %v1110
        %1112 = vdwg.mxu0
        %v1114 = vsel %vm1060, %v878, 0
        %v1117 = vsel %vm1060, %v958, 0
        %1119 = vmatpush.xpose.msra.mxu0 0.0
        %1120 = vmatpush.xpose.msra.mxu0 0.0
        %1121 = vmatpush.xpose.msra.mxu0 0.0
        %1122 = vmatpush.xpose.msra.mxu0 0.0
        %1123 = vmatpush.xpose.msra.mxu0 0.0
        %1124 = vmatpush.xpose.msra.mxu0 0.0
        %1125 = vmatpush.xpose.msra.mxu0 0.0
        %1126 = vmatpush.xpose.msra.mxu0 0.0
        %1127 = vmatpush.xpose.msra.mxu0 0.0
        %1128 = vmatpush.xpose.msra.mxu0 0.0
        %1129 = vmatpush.xpose.msra.mxu0 0.0
        %1130 = vmatpush.xpose.msra.mxu0 0.0
        %1131 = vmatpush.xpose.msra.mxu0 0.0
        %1132 = vmatpush.xpose.msra.mxu0 0.0
        %1133 = vmatpush.xpose.msra.mxu0 0.0
        %1134 = vmatpush.xpose.msra.mxu0 %v1117
        %1135 = vmatmul.f32.gmra.mxu0 %v1114
        %v1136 = vpop.f32.mrf.mxu0
        %v1137 = vadd.f32 0.0, %v1136
        %1138 = vdwg.mxu0
        %v1140 = vsel %vm1060, %v898, 0
        %v1143 = vsel %vm1060, %v978, 0
        %1145 = vmatpush.xpose.msra.mxu0 0.0
        %1146 = vmatpush.xpose.msra.mxu0 0.0
        %1147 = vmatpush.xpose.msra.mxu0 0.0
        %1148 = vmatpush.xpose.msra.mxu0 0.0
        %1149 = vmatpush.xpose.msra.mxu0 0.0
        %1150 = vmatpush.xpose.msra.mxu0 0.0
        %1151 = vmatpush.xpose.msra.mxu0 0.0
        %1152 = vmatpush.xpose.msra.mxu0 0.0
        %1153 = vmatpush.xpose.msra.mxu0 0.0
        %1154 = vmatpush.xpose.msra.mxu0 0.0
        %1155 = vmatpush.xpose.msra.mxu0 0.0
        %1156 = vmatpush.xpose.msra.mxu0 0.0
        %1157 = vmatpush.xpose.msra.mxu0 0.0
        %1158 = vmatpush.xpose.msra.mxu0 0.0
        %1159 = vmatpush.xpose.msra.mxu0 0.0
        %1160 = vmatpush.xpose.msra.mxu0 %v1143
        %1161 = vmatmul.f32.gmra.mxu0 %v1140
        %v1162 = vpop.f32.mrf.mxu0
        %v1163 = vadd.f32 0.0, %v1162
        %1164 = vdwg.mxu0
        %v1165 = vmul.f32 %v1085, 0.35355338
        %v1166 = vmul.f32 %v1111, 0.35355338
        %v1167 = vmul.f32 %v1137, 0.35355338
        %v1168 = vmul.f32 %v1163, 0.35355338
        %v1169 = vsel %vm1060, %v1165, -inf
        %1170 = vmax.xlane.f32.xlu0 %v1169
        %v1171 = vpop.xlane.xlu0 %1170
        %v1172 = vsel %vm1060, %v1166, -inf
        %1173 = vmax.xlane.f32.xlu0 %v1172
        %v1174 = vpop.xlane.xlu0 %1173
        %v1175 = vsel %vm1060, %v1167, -inf
        %1176 = vmax.xlane.f32.xlu0 %v1175
        %v1177 = vpop.xlane.xlu0 %1176
        %v1178 = vsel %vm1060, %v1168, -inf
        %1179 = vmax.xlane.f32.xlu0 %v1178
        %v1180 = vpop.xlane.xlu0 %1179
        %v1181 = vsub.f32 %v1165, %v1171
        %v1182 = vsub.f32 %v1166, %v1174
        %v1183 = vsub.f32 %v1167, %v1177
        %v1184 = vsub.f32 %v1168, %v1180
        %v1185 = vmul.f32 %v1181, 1.442695
        %v1186 = vpow.pop %v1185
        %v1187 = vmul.f32 %v1182, 1.442695
        %v1188 = vpow.pop %v1187
        %v1189 = vmul.f32 %v1183, 1.442695
        %v1190 = vpow.pop %v1189
        %v1191 = vmul.f32 %v1184, 1.442695
        %v1192 = vpow.pop %v1191
        %v1193 = vsel %vm1060, %v1186, 0.0
        %1194 = vadd.xlane.f32.xlu0 %v1193
        %v1195 = vpop.xlane.xlu0 %1194
        %v1196 = vsel %vm1060, %v1188, 0.0
        %1197 = vadd.xlane.f32.xlu0 %v1196
        %v1198 = vpop.xlane.xlu0 %1197
        %v1199 = vsel %vm1060, %v1190, 0.0
        %1200 = vadd.xlane.f32.xlu0 %v1199
        %v1201 = vpop.xlane.xlu0 %1200
        %v1202 = vsel %vm1060, %v1192, 0.0
        %1203 = vadd.xlane.f32.xlu0 %v1202
        %v1204 = vpop.xlane.xlu0 %1203
        %v1205 = vrcp.pop %v1195
        %v1206 = vrcp.pop %v1198
        %v1207 = vrcp.pop %v1201
        %v1208 = vrcp.pop %v1204
        %v1209 = vmul.f32 %v1186, %v1205
        %v1210 = vmul.f32 %v1188, %v1206
        %v1211 = vmul.f32 %v1190, %v1207
        %v1212 = vmul.f32 %v1192, %v1208
        %v1214 = vsel %vm1060, %v1209, 0
        %1216 = vmatpush.msra.mxu0 0.0
        %1217 = vmatpush.msra.mxu0 0.0
        %1218 = vmatpush.msra.mxu0 0.0
        %1219 = vmatpush.msra.mxu0 0.0
        %1220 = vmatpush.msra.mxu0 0.0
        %1221 = vmatpush.msra.mxu0 0.0
        %1222 = vmatpush.msra.mxu0 0.0
        %1223 = vmatpush.msra.mxu0 0.0
        %1224 = vmatpush.msra.mxu0 0.0
        %1225 = vmatpush.msra.mxu0 0.0
        %1226 = vmatpush.msra.mxu0 0.0
        %1227 = vmatpush.msra.mxu0 0.0
        %1228 = vmatpush.msra.mxu0 0.0
        %1229 = vmatpush.msra.mxu0 0.0
        %1230 = vmatpush.msra.mxu0 0.0
        %1231 = vmatpush.msra.mxu0 %v998
        %1232 = vmatmul.f32.gmra.mxu0 %v1214
        %v1233 = vpop.f32.mrf.mxu0
        %v1234 = vadd.f32 0.0, %v1233
        %1235 = vdwg.mxu0
        %v1237 = vsel %vm1060, %v1210, 0
        %1239 = vmatpush.msra.mxu0 0.0
        %1240 = vmatpush.msra.mxu0 0.0
        %1241 = vmatpush.msra.mxu0 0.0
        %1242 = vmatpush.msra.mxu0 0.0
        %1243 = vmatpush.msra.mxu0 0.0
        %1244 = vmatpush.msra.mxu0 0.0
        %1245 = vmatpush.msra.mxu0 0.0
        %1246 = vmatpush.msra.mxu0 0.0
        %1247 = vmatpush.msra.mxu0 0.0
        %1248 = vmatpush.msra.mxu0 0.0
        %1249 = vmatpush.msra.mxu0 0.0
        %1250 = vmatpush.msra.mxu0 0.0
        %1251 = vmatpush.msra.mxu0 0.0
        %1252 = vmatpush.msra.mxu0 0.0
        %1253 = vmatpush.msra.mxu0 0.0
        %1254 = vmatpush.msra.mxu0 %v1018
        %1255 = vmatmul.f32.gmra.mxu0 %v1237
        %v1256 = vpop.f32.mrf.mxu0
        %v1257 = vadd.f32 0.0, %v1256
        %1258 = vdwg.mxu0
        %v1260 = vsel %vm1060, %v1211, 0
        %1262 = vmatpush.msra.mxu0 0.0
        %1263 = vmatpush.msra.mxu0 0.0
        %1264 = vmatpush.msra.mxu0 0.0
        %1265 = vmatpush.msra.mxu0 0.0
        %1266 = vmatpush.msra.mxu0 0.0
        %1267 = vmatpush.msra.mxu0 0.0
        %1268 = vmatpush.msra.mxu0 0.0
        %1269 = vmatpush.msra.mxu0 0.0
        %1270 = vmatpush.msra.mxu0 0.0
        %1271 = vmatpush.msra.mxu0 0.0
        %1272 = vmatpush.msra.mxu0 0.0
        %1273 = vmatpush.msra.mxu0 0.0
        %1274 = vmatpush.msra.mxu0 0.0
        %1275 = vmatpush.msra.mxu0 0.0
        %1276 = vmatpush.msra.mxu0 0.0
        %1277 = vmatpush.msra.mxu0 %v1038
        %1278 = vmatmul.f32.gmra.mxu0 %v1260
        %v1279 = vpop.f32.mrf.mxu0
        %v1280 = vadd.f32 0.0, %v1279
        %1281 = vdwg.mxu0
        %v1283 = vsel %vm1060, %v1212, 0
        %1285 = vmatpush.msra.mxu0 0.0
        %1286 = vmatpush.msra.mxu0 0.0
        %1287 = vmatpush.msra.mxu0 0.0
        %1288 = vmatpush.msra.mxu0 0.0
        %1289 = vmatpush.msra.mxu0 0.0
        %1290 = vmatpush.msra.mxu0 0.0
        %1291 = vmatpush.msra.mxu0 0.0
        %1292 = vmatpush.msra.mxu0 0.0
        %1293 = vmatpush.msra.mxu0 0.0
        %1294 = vmatpush.msra.mxu0 0.0
        %1295 = vmatpush.msra.mxu0 0.0
        %1296 = vmatpush.msra.mxu0 0.0
        %1297 = vmatpush.msra.mxu0 0.0
        %1298 = vmatpush.msra.mxu0 0.0
        %1299 = vmatpush.msra.mxu0 0.0
        %1300 = vmatpush.msra.mxu0 %v1058
        %1301 = vmatmul.f32.gmra.mxu0 %v1283
        %v1302 = vpop.f32.mrf.mxu0
        %v1303 = vadd.f32 0.0, %v1302
        %1304 = vdwg.mxu0
        %v1305 = vld [vmem:[%s6] sm:$0xff]
        %v1306 = vld [vmem:[%s6 + $0x8] sm:$0xff]
        %v1307 = vld [vmem:[%s6 + $0x10] sm:$0xff]
        %v1308 = vld [vmem:[%s6 + $0x18] sm:$0xff]
        %v1310 = vsel %vm1060, %v1234, 0
        %1312 = vmatpush.msra.mxu0 0.0
        %1313 = vmatpush.msra.mxu0 0.0
        %1314 = vmatpush.msra.mxu0 0.0
        %1315 = vmatpush.msra.mxu0 0.0
        %1316 = vmatpush.msra.mxu0 0.0
        %1317 = vmatpush.msra.mxu0 0.0
        %1318 = vmatpush.msra.mxu0 0.0
        %1319 = vmatpush.msra.mxu0 0.0
        %1320 = vmatpush.msra.mxu0 0.0
        %1321 = vmatpush.msra.mxu0 0.0
        %1322 = vmatpush.msra.mxu0 0.0
        %1323 = vmatpush.msra.mxu0 0.0
        %1324 = vmatpush.msra.mxu0 0.0
        %1325 = vmatpush.msra.mxu0 0.0
        %1326 = vmatpush.msra.mxu0 0.0
        %1327 = vmatpush.msra.mxu0 %v1305
        %1328 = vmatmul.f32.gmra.mxu0 %v1310
        %v1329 = vpop.f32.mrf.mxu0
        %v1330 = vadd.f32 0.0, %v1329
        %1331 = vdwg.mxu0
        %v1333 = vsel %vm1060, %v1257, 0
        %1335 = vmatpush.msra.mxu0 0.0
        %1336 = vmatpush.msra.mxu0 0.0
        %1337 = vmatpush.msra.mxu0 0.0
        %1338 = vmatpush.msra.mxu0 0.0
        %1339 = vmatpush.msra.mxu0 0.0
        %1340 = vmatpush.msra.mxu0 0.0
        %1341 = vmatpush.msra.mxu0 0.0
        %1342 = vmatpush.msra.mxu0 0.0
        %1343 = vmatpush.msra.mxu0 0.0
        %1344 = vmatpush.msra.mxu0 0.0
        %1345 = vmatpush.msra.mxu0 0.0
        %1346 = vmatpush.msra.mxu0 0.0
        %1347 = vmatpush.msra.mxu0 0.0
        %1348 = vmatpush.msra.mxu0 0.0
        %1349 = vmatpush.msra.mxu0 0.0
        %1350 = vmatpush.msra.mxu0 %v1306
        %1351 = vmatmul.f32.gmra.mxu0 %v1333
        %v1352 = vpop.f32.mrf.mxu0
        %v1353 = vadd.f32 0.0, %v1352
        %1354 = vdwg.mxu0
        %v1356 = vsel %vm1060, %v1280, 0
        %1358 = vmatpush.msra.mxu0 0.0
        %1359 = vmatpush.msra.mxu0 0.0
        %1360 = vmatpush.msra.mxu0 0.0
        %1361 = vmatpush.msra.mxu0 0.0
        %1362 = vmatpush.msra.mxu0 0.0
        %1363 = vmatpush.msra.mxu0 0.0
        %1364 = vmatpush.msra.mxu0 0.0
        %1365 = vmatpush.msra.mxu0 0.0
        %1366 = vmatpush.msra.mxu0 0.0
        %1367 = vmatpush.msra.mxu0 0.0
        %1368 = vmatpush.msra.mxu0 0.0
        %1369 = vmatpush.msra.mxu0 0.0
        %1370 = vmatpush.msra.mxu0 0.0
        %1371 = vmatpush.msra.mxu0 0.0
        %1372 = vmatpush.msra.mxu0 0.0
        %1373 = vmatpush.msra.mxu0 %v1307
        %1374 = vmatmul.f32.gmra.mxu0 %v1356
        %v1375 = vpop.f32.mrf.mxu0
        %v1376 = vadd.f32 0.0, %v1375
        %1377 = vdwg.mxu0
        %v1379 = vsel %vm1060, %v1303, 0
        %1381 = vmatpush.msra.mxu0 0.0
        %1382 = vmatpush.msra.mxu0 0.0
        %1383 = vmatpush.msra.mxu0 0.0
        %1384 = vmatpush.msra.mxu0 0.0
        %1385 = vmatpush.msra.mxu0 0.0
        %1386 = vmatpush.msra.mxu0 0.0
        %1387 = vmatpush.msra.mxu0 0.0
        %1388 = vmatpush.msra.mxu0 0.0
        %1389 = vmatpush.msra.mxu0 0.0
        %1390 = vmatpush.msra.mxu0 0.0
        %1391 = vmatpush.msra.mxu0 0.0
        %1392 = vmatpush.msra.mxu0 0.0
        %1393 = vmatpush.msra.mxu0 0.0
        %1394 = vmatpush.msra.mxu0 0.0
        %1395 = vmatpush.msra.mxu0 0.0
        %1396 = vmatpush.msra.mxu0 %v1308
        %1397 = vmatmul.f32.gmra.mxu0 %v1379
        %v1398 = vpop.f32.mrf.mxu0
        %v1399 = vadd.f32 0.0, %v1398
        %1400 = vdwg.mxu0
        %v1401 = vsel %vm683, %v1330, 0.0
        %v1402 = vsel %vm683, %v1353, 0.0
        %v1403 = vadd.f32 %v1401, %v1402
        %v1404 = vsel %vm683, %v1376, 0.0
        %v1405 = vadd.f32 %v1403, %v1404
        %v1406 = vsel %vm683, %v1399, 0.0
        %v1407 = vadd.f32 %v1405, %v1406
        %v1408 = vld [vmem:[%s7] sm:$0x1]
        %v1410 = vperm.slane %v1408, 0
        %v1412 = vadd.f32 %v1407, %v1410
        %v1413 = vadd.f32 %v680, %v1412
        %v1414 = vld [vmem:[%s8] sm:$0x1]
        %v1415 = vld [vmem:[%s9] sm:$0x1]
        %v1416 = vsel %vm683, %v1413, 0.0
        %1417 = vadd.xlane.f32.xlu0 %v1416
        %v1418 = vpop.xlane.xlu0 %1417
        %v1419 = vmul.f32 %v1418, %v693
        %v1420 = vsub.f32 %v1413, %v1419
        %v1421 = vmul.f32 %v1420, %v1420
        %v1422 = vsel %vm683, %v1421, 0.0
        %1423 = vadd.xlane.f32.xlu0 %v1422
        %v1424 = vpop.xlane.xlu0 %1423
        %v1425 = vmul.f32 %v1424, %v693
        %v1426 = vadd.f32 %v1425, 1e-06
        %v1427 = vrsqrt.pop %v1426
        %v1428 = vmul.f32 %v1427, %v1426
        %v1429 = vmul.f32 %v1428, %v1427
        %v1430 = vmul.f32 0.5, %v1429
        %v1431 = vsub.f32 1.5, %v1430
        %v1432 = vmul.f32 %v1427, %v1431
        %vm1433 = vweird.f32 %v1426
        %vm1434 = vweird.f32 %v1427
        %vm1435 = vmor %vm1433, %vm1434
        %v1436 = vsel %vm1435, %v1427, %v1432
        %v1437 = vmul.f32 %v1420, %v1436
        %v1439 = vperm.slane %v1414, 0
        %v1441 = vmul.f32 %v1437, %v1439
        %v1443 = vperm.slane %v1415, 0
        %v1445 = vadd.f32 %v1441, %v1443
        %v1446 = vld [vmem:[%s10] sm:$0xff]
        %v1447 = vld [vmem:[%s10 + $0x8] sm:$0xff]
        %v1448 = vld [vmem:[%s10 + $0x10] sm:$0xff]
        %v1449 = vld [vmem:[%s10 + $0x18] sm:$0xff]
        %v1450 = vld [vmem:[%s11] sm:$0x1]
        %v1452 = vperm.slane %v1450, 0
        %v1455 = vsel %vm683, %v1445, 0
        %1457 = vmatpush.msra.mxu0 0.0
        %1458 = vmatpush.msra.mxu0 0.0
        %1459 = vmatpush.msra.mxu0 0.0
        %1460 = vmatpush.msra.mxu0 0.0
        %1461 = vmatpush.msra.mxu0 0.0
        %1462 = vmatpush.msra.mxu0 0.0
        %1463 = vmatpush.msra.mxu0 0.0
        %1464 = vmatpush.msra.mxu0 0.0
        %1465 = vmatpush.msra.mxu0 0.0
        %1466 = vmatpush.msra.mxu0 0.0
        %1467 = vmatpush.msra.mxu0 0.0
        %1468 = vmatpush.msra.mxu0 0.0
        %1469 = vmatpush.msra.mxu0 %v1449
        %1470 = vmatpush.msra.mxu0 %v1448
        %1471 = vmatpush.msra.mxu0 %v1447
        %1472 = vmatpush.msra.mxu0 %v1446
        %1473 = vmatmul.f32.gmra.mxu0 %v1455
        %v1474 = vpop.f32.mrf.mxu0
        %v1475 = vadd.f32 %v1452, %v1474
        %1476 = vdwg.mxu0
        %v1477 = vmul.f32 %v1475, 0.5
        %v1478 = vmul.f32 %v1475, 0.70710677
        %v1479 = vmul.f32 %v1478, %v1478
        %v1480 = vmin.f32 16.0, %v1479
        %v1481 = vmul.f32 %v1480, 2.1237322e-06
        %v1482 = vadd.f32 %v1481, 0.00028619796
        %v1483 = vmul.f32 %v1480, %v1482
        %v1484 = vadd.f32 %v1483, 0.0036580483
        %v1485 = vmul.f32 %v1480, %v1484
        %v1486 = vadd.f32 %v1485, 0.05243302
        %v1487 = vmul.f32 %v1480, %v1486
        %v1488 = vadd.f32 %v1487, 0.18741608
        %v1489 = vmul.f32 %v1480, %v1488
        %v1490 = vadd.f32 %v1489, 1.1283791
        %v1491 = vmul.f32 %v1478, %v1490
        %v1492 = vmul.f32 %v1480, 3.8918573e-05
        %v1493 = vadd.f32 %v1492, 0.001143296
        %v1494 = vmul.f32 %v1480, %v1493
        %v1495 = vadd.f32 %v1494, 0.014752088
        %v1496 = vmul.f32 %v1480, %v1495
        %v1497 = vadd.f32 %v1496, 0.112945676
        %v1498 = vmul.f32 %v1480, %v1497
        %v1499 = vadd.f32 %v1498, 0.4994258
        %v1500 = vmul.f32 %v1480, %v1499
        %v1501 = vadd.f32 %v1500, 1.0
        %v1502 = vrcp.pop %v1501
        %v1503 = vmul.f32 %v1501, %v1502
        %v1504 = vsub.f32 1.0, %v1503
        %v1505 = vmul.f32 %v1502, %v1504
        %v1506 = vadd.f32 %v1502, %v1505
        %vm1507 = vweird.f32 %v1501
        %vm1508 = vweird.f32 %v1502
        %vm1509 = vmor %vm1507, %vm1508
        %v1510 = vsel %vm1509, %v1502, %v1506
        %v1511 = vand.u32 2147483647, %v1501
        %vm1512 = vcmp.eq.f32.partialorder %v1511, 8.507059e+37
        %v1513 = vand.u32 %v1501, 2147483648
        %v1514 = vor.u32 1.1754944e-38, %v1513
        %v1515 = vsel %vm1512, %v1514, %v1510
        %v1516 = vmul.f32 %v1491, %v1515
        %v1517 = vmin.f32 %v1516, 1.0
        %v1518 = vmax.f32 %v1517, -1.0
        %v1519 = vadd.f32 %v1518, 1.0
        %v1520 = vmul.f32 %v1477, %v1519
        %v1521 = vld [vmem:[%s12] sm:$0xff]
        %v1522 = vld [vmem:[%s12 + $0x8] sm:$0xff]
        %v1523 = vld [vmem:[%s12 + $0x10] sm:$0xff]
        %v1524 = vld [vmem:[%s12 + $0x18] sm:$0xff]
        %v1525 = vld [vmem:[%s12 + $0x20] sm:$0xff]
        %v1526 = vld [vmem:[%s12 + $0x28] sm:$0xff]
        %v1527 = vld [vmem:[%s12 + $0x30] sm:$0xff]
        %v1528 = vld [vmem:[%s12 + $0x38] sm:$0xff]
        %v1529 = vld [vmem:[%s12 + $0x40] sm:$0xff]
        %v1530 = vld [vmem:[%s12 + $0x48] sm:$0xff]
        %v1531 = vld [vmem:[%s12 + $0x50] sm:$0xff]
        %v1532 = vld [vmem:[%s12 + $0x58] sm:$0xff]
        %v1533 = vld [vmem:[%s12 + $0x60] sm:$0xff]
        %v1534 = vld [vmem:[%s12 + $0x68] sm:$0xff]
        %v1535 = vld [vmem:[%s12 + $0x70] sm:$0xff]
        %v1536 = vld [vmem:[%s12 + $0x78] sm:$0xff]
        %v1537 = vld [vmem:[%s13] sm:$0x1]
        %v1539 = vperm.slane %v1537, 0
        %1541 = vmatpush.msra.mxu0 %v1536
        %1542 = vmatpush.msra.mxu0 %v1535
        %1543 = vmatpush.msra.mxu0 %v1534
        %1544 = vmatpush.msra.mxu0 %v1533
        %1545 = vmatpush.msra.mxu0 %v1532
        %1546 = vmatpush.msra.mxu0 %v1531
        %1547 = vmatpush.msra.mxu0 %v1530
        %1548 = vmatpush.msra.mxu0 %v1529
        %1549 = vmatpush.msra.mxu0 %v1528
        %1550 = vmatpush.msra.mxu0 %v1527
        %1551 = vmatpush.msra.mxu0 %v1526
        %1552 = vmatpush.msra.mxu0 %v1525
        %1553 = vmatpush.msra.mxu0 %v1524
        %1554 = vmatpush.msra.mxu0 %v1523
        %1555 = vmatpush.msra.mxu0 %v1522
        %1556 = vmatpush.msra.mxu0 %v1521
        %1557 = vmatmul.f32.gmra.mxu0 %v1520
        %v1558 = vpop.f32.mrf.mxu0
        %v1559 = vadd.f32 %v1539, %v1558
        %1560 = vdwg.mxu0
        %v1561 = vadd.f32 %v1413, %v1559
        %s1562 = scalar_lea.vmem %s2, 1
        %v1563 = vld [vmem:[%s1562] sm:$0x1]
        %s1564 = scalar_lea.vmem %s3, 1
        %v1565 = vld [vmem:[%s1564] sm:$0x1]
        %v1566 = vsel %vm683, %v1561, 0.0
        %1567 = vadd.xlane.f32.xlu0 %v1566
        %v1568 = vpop.xlane.xlu0 %1567
        %v1569 = vmul.f32 %v1568, %v693
        %v1570 = vsub.f32 %v1561, %v1569
        %v1571 = vmul.f32 %v1570, %v1570
        %v1572 = vsel %vm683, %v1571, 0.0
        %1573 = vadd.xlane.f32.xlu0 %v1572
        %v1574 = vpop.xlane.xlu0 %1573
        %v1575 = vmul.f32 %v1574, %v693
        %v1576 = vadd.f32 %v1575, 1e-06
        %v1577 = vrsqrt.pop %v1576
        %v1578 = vmul.f32 %v1577, %v1576
        %v1579 = vmul.f32 %v1578, %v1577
        %v1580 = vmul.f32 0.5, %v1579
        %v1581 = vsub.f32 1.5, %v1580
        %v1582 = vmul.f32 %v1577, %v1581
        %vm1583 = vweird.f32 %v1576
        %vm1584 = vweird.f32 %v1577
        %vm1585 = vmor %vm1583, %vm1584
        %v1586 = vsel %vm1585, %v1577, %v1582
        %v1587 = vmul.f32 %v1570, %v1586
        %v1589 = vperm.slane %v1563, 0
        %v1591 = vmul.f32 %v1587, %v1589
        %v1593 = vperm.slane %v1565, 0
        %v1595 = vadd.f32 %v1591, %v1593
        %s1596 = scalar_lea.vmem %s4, 384
        %v1597 = vld [vmem:[%s1596] sm:$0xff]
        %v1598 = vld [vmem:[%s1596 + $0x8] sm:$0xff]
        %v1599 = vld [vmem:[%s1596 + $0x10] sm:$0xff]
        %v1600 = vld [vmem:[%s1596 + $0x18] sm:$0xff]
        %v1601 = vld [vmem:[%s1596 + $0x20] sm:$0xff]
        %v1602 = vld [vmem:[%s1596 + $0x28] sm:$0xff]
        %v1603 = vld [vmem:[%s1596 + $0x30] sm:$0xff]
        %v1604 = vld [vmem:[%s1596 + $0x38] sm:$0xff]
        %v1605 = vld [vmem:[%s1596 + $0x40] sm:$0xff]
        %v1606 = vld [vmem:[%s1596 + $0x48] sm:$0xff]
        %v1607 = vld [vmem:[%s1596 + $0x50] sm:$0xff]
        %v1608 = vld [vmem:[%s1596 + $0x58] sm:$0xff]
        %v1609 = vld [vmem:[%s1596 + $0x60] sm:$0xff]
        %v1610 = vld [vmem:[%s1596 + $0x68] sm:$0xff]
        %v1611 = vld [vmem:[%s1596 + $0x70] sm:$0xff]
        %v1612 = vld [vmem:[%s1596 + $0x78] sm:$0xff]
        %v1613 = vld [vmem:[%s1596 + $0x80] sm:$0xff]
        %v1614 = vld [vmem:[%s1596 + $0x88] sm:$0xff]
        %v1615 = vld [vmem:[%s1596 + $0x90] sm:$0xff]
        %v1616 = vld [vmem:[%s1596 + $0x98] sm:$0xff]
        %v1617 = vld [vmem:[%s1596 + $0xa0] sm:$0xff]
        %v1618 = vld [vmem:[%s1596 + $0xa8] sm:$0xff]
        %v1619 = vld [vmem:[%s1596 + $0xb0] sm:$0xff]
        %v1620 = vld [vmem:[%s1596 + $0xb8] sm:$0xff]
        %v1621 = vld [vmem:[%s1596 + $0xc0] sm:$0xff]
        %v1622 = vld [vmem:[%s1596 + $0xc8] sm:$0xff]
        %v1623 = vld [vmem:[%s1596 + $0xd0] sm:$0xff]
        %v1624 = vld [vmem:[%s1596 + $0xd8] sm:$0xff]
        %v1625 = vld [vmem:[%s1596 + $0xe0] sm:$0xff]
        %v1626 = vld [vmem:[%s1596 + $0xe8] sm:$0xff]
        %v1627 = vld [vmem:[%s1596 + $0xf0] sm:$0xff]
        %v1628 = vld [vmem:[%s1596 + $0xf8] sm:$0xff]
        %v1629 = vld [vmem:[%s1596 + $0x100] sm:$0xff]
        %v1630 = vld [vmem:[%s1596 + $0x108] sm:$0xff]
        %v1631 = vld [vmem:[%s1596 + $0x110] sm:$0xff]
        %v1632 = vld [vmem:[%s1596 + $0x118] sm:$0xff]
        %v1633 = vld [vmem:[%s1596 + $0x120] sm:$0xff]
        %v1634 = vld [vmem:[%s1596 + $0x128] sm:$0xff]
        %v1635 = vld [vmem:[%s1596 + $0x130] sm:$0xff]
        %v1636 = vld [vmem:[%s1596 + $0x138] sm:$0xff]
        %v1637 = vld [vmem:[%s1596 + $0x140] sm:$0xff]
        %v1638 = vld [vmem:[%s1596 + $0x148] sm:$0xff]
        %v1639 = vld [vmem:[%s1596 + $0x150] sm:$0xff]
        %v1640 = vld [vmem:[%s1596 + $0x158] sm:$0xff]
        %v1641 = vld [vmem:[%s1596 + $0x160] sm:$0xff]
        %v1642 = vld [vmem:[%s1596 + $0x168] sm:$0xff]
        %v1643 = vld [vmem:[%s1596 + $0x170] sm:$0xff]
        %v1644 = vld [vmem:[%s1596 + $0x178] sm:$0xff]
        %s1645 = scalar_lea.vmem %s5, 12
        %v1646 = vld [vmem:[%s1645] sm:$0x1]
        %v1647 = vld [vmem:[%s1645 + $0x1] sm:$0x1]
        %v1648 = vld [vmem:[%s1645 + $0x2] sm:$0x1]
        %v1649 = vld [vmem:[%s1645 + $0x3] sm:$0x1]
        %v1650 = vld [vmem:[%s1645 + $0x4] sm:$0x1]
        %v1651 = vld [vmem:[%s1645 + $0x5] sm:$0x1]
        %v1652 = vld [vmem:[%s1645 + $0x6] sm:$0x1]
        %v1653 = vld [vmem:[%s1645 + $0x7] sm:$0x1]
        %v1654 = vld [vmem:[%s1645 + $0x8] sm:$0x1]
        %v1655 = vld [vmem:[%s1645 + $0x9] sm:$0x1]
        %v1656 = vld [vmem:[%s1645 + $0xa] sm:$0x1]
        %v1657 = vld [vmem:[%s1645 + $0xb] sm:$0x1]
        %v1670 = vperm.slane %v1646, 0
        %v1671 = vperm.slane %v1647, 0
        %v1672 = vperm.slane %v1648, 0
        %v1673 = vperm.slane %v1649, 0
        %v1674 = vperm.slane %v1650, 0
        %v1675 = vperm.slane %v1651, 0
        %v1676 = vperm.slane %v1652, 0
        %v1677 = vperm.slane %v1653, 0
        %v1678 = vperm.slane %v1654, 0
        %v1679 = vperm.slane %v1655, 0
        %v1680 = vperm.slane %v1656, 0
        %v1681 = vperm.slane %v1657, 0
        %v1695 = vsel %vm683, %v1595, 0
        %1697 = vmatpush.msra.mxu0 0.0
        %1698 = vmatpush.msra.mxu0 0.0
        %1699 = vmatpush.msra.mxu0 0.0
        %1700 = vmatpush.msra.mxu0 0.0
        %1701 = vmatpush.msra.mxu0 0.0
        %1702 = vmatpush.msra.mxu0 0.0
        %1703 = vmatpush.msra.mxu0 0.0
        %1704 = vmatpush.msra.mxu0 0.0
        %1705 = vmatpush.msra.mxu0 0.0
        %1706 = vmatpush.msra.mxu0 0.0
        %1707 = vmatpush.msra.mxu0 0.0
        %1708 = vmatpush.msra.mxu0 0.0
        %1709 = vmatpush.msra.mxu0 %v1600
        %1710 = vmatpush.msra.mxu0 %v1599
        %1711 = vmatpush.msra.mxu0 %v1598
        %1712 = vmatpush.msra.mxu0 %v1597
        %1713 = vmatmul.f32.gmra.mxu0 %v1695
        %v1714 = vpop.f32.mrf.mxu0
        %v1715 = vadd.f32 %v1670, %v1714
        %1716 = vdwg.mxu0
        %1717 = vmatpush.msra.mxu0 0.0
        %1718 = vmatpush.msra.mxu0 0.0
        %1719 = vmatpush.msra.mxu0 0.0
        %1720 = vmatpush.msra.mxu0 0.0
        %1721 = vmatpush.msra.mxu0 0.0
        %1722 = vmatpush.msra.mxu0 0.0
        %1723 = vmatpush.msra.mxu0 0.0
        %1724 = vmatpush.msra.mxu0 0.0
        %1725 = vmatpush.msra.mxu0 0.0
        %1726 = vmatpush.msra.mxu0 0.0
        %1727 = vmatpush.msra.mxu0 0.0
        %1728 = vmatpush.msra.mxu0 0.0
        %1729 = vmatpush.msra.mxu0 %v1604
        %1730 = vmatpush.msra.mxu0 %v1603
        %1731 = vmatpush.msra.mxu0 %v1602
        %1732 = vmatpush.msra.mxu0 %v1601
        %1733 = vmatmul.f32.gmra.mxu0 %v1695
        %v1734 = vpop.f32.mrf.mxu0
        %v1735 = vadd.f32 %v1671, %v1734
        %1736 = vdwg.mxu0
        %1737 = vmatpush.msra.mxu0 0.0
        %1738 = vmatpush.msra.mxu0 0.0
        %1739 = vmatpush.msra.mxu0 0.0
        %1740 = vmatpush.msra.mxu0 0.0
        %1741 = vmatpush.msra.mxu0 0.0
        %1742 = vmatpush.msra.mxu0 0.0
        %1743 = vmatpush.msra.mxu0 0.0
        %1744 = vmatpush.msra.mxu0 0.0
        %1745 = vmatpush.msra.mxu0 0.0
        %1746 = vmatpush.msra.mxu0 0.0
        %1747 = vmatpush.msra.mxu0 0.0
        %1748 = vmatpush.msra.mxu0 0.0
        %1749 = vmatpush.msra.mxu0 %v1608
        %1750 = vmatpush.msra.mxu0 %v1607
        %1751 = vmatpush.msra.mxu0 %v1606
        %1752 = vmatpush.msra.mxu0 %v1605
        %1753 = vmatmul.f32.gmra.mxu0 %v1695
        %v1754 = vpop.f32.mrf.mxu0
        %v1755 = vadd.f32 %v1672, %v1754
        %1756 = vdwg.mxu0
        %1757 = vmatpush.msra.mxu0 0.0
        %1758 = vmatpush.msra.mxu0 0.0
        %1759 = vmatpush.msra.mxu0 0.0
        %1760 = vmatpush.msra.mxu0 0.0
        %1761 = vmatpush.msra.mxu0 0.0
        %1762 = vmatpush.msra.mxu0 0.0
        %1763 = vmatpush.msra.mxu0 0.0
        %1764 = vmatpush.msra.mxu0 0.0
        %1765 = vmatpush.msra.mxu0 0.0
        %1766 = vmatpush.msra.mxu0 0.0
        %1767 = vmatpush.msra.mxu0 0.0
        %1768 = vmatpush.msra.mxu0 0.0
        %1769 = vmatpush.msra.mxu0 %v1612
        %1770 = vmatpush.msra.mxu0 %v1611
        %1771 = vmatpush.msra.mxu0 %v1610
        %1772 = vmatpush.msra.mxu0 %v1609
        %1773 = vmatmul.f32.gmra.mxu0 %v1695
        %v1774 = vpop.f32.mrf.mxu0
        %v1775 = vadd.f32 %v1673, %v1774
        %1776 = vdwg.mxu0
        %1777 = vmatpush.msra.mxu0 0.0
        %1778 = vmatpush.msra.mxu0 0.0
        %1779 = vmatpush.msra.mxu0 0.0
        %1780 = vmatpush.msra.mxu0 0.0
        %1781 = vmatpush.msra.mxu0 0.0
        %1782 = vmatpush.msra.mxu0 0.0
        %1783 = vmatpush.msra.mxu0 0.0
        %1784 = vmatpush.msra.mxu0 0.0
        %1785 = vmatpush.msra.mxu0 0.0
        %1786 = vmatpush.msra.mxu0 0.0
        %1787 = vmatpush.msra.mxu0 0.0
        %1788 = vmatpush.msra.mxu0 0.0
        %1789 = vmatpush.msra.mxu0 %v1616
        %1790 = vmatpush.msra.mxu0 %v1615
        %1791 = vmatpush.msra.mxu0 %v1614
        %1792 = vmatpush.msra.mxu0 %v1613
        %1793 = vmatmul.f32.gmra.mxu0 %v1695
        %v1794 = vpop.f32.mrf.mxu0
        %v1795 = vadd.f32 %v1674, %v1794
        %1796 = vdwg.mxu0
        %1797 = vmatpush.msra.mxu0 0.0
        %1798 = vmatpush.msra.mxu0 0.0
        %1799 = vmatpush.msra.mxu0 0.0
        %1800 = vmatpush.msra.mxu0 0.0
        %1801 = vmatpush.msra.mxu0 0.0
        %1802 = vmatpush.msra.mxu0 0.0
        %1803 = vmatpush.msra.mxu0 0.0
        %1804 = vmatpush.msra.mxu0 0.0
        %1805 = vmatpush.msra.mxu0 0.0
        %1806 = vmatpush.msra.mxu0 0.0
        %1807 = vmatpush.msra.mxu0 0.0
        %1808 = vmatpush.msra.mxu0 0.0
        %1809 = vmatpush.msra.mxu0 %v1620
        %1810 = vmatpush.msra.mxu0 %v1619
        %1811 = vmatpush.msra.mxu0 %v1618
        %1812 = vmatpush.msra.mxu0 %v1617
        %1813 = vmatmul.f32.gmra.mxu0 %v1695
        %v1814 = vpop.f32.mrf.mxu0
        %v1815 = vadd.f32 %v1675, %v1814
        %1816 = vdwg.mxu0
        %1817 = vmatpush.msra.mxu0 0.0
        %1818 = vmatpush.msra.mxu0 0.0
        %1819 = vmatpush.msra.mxu0 0.0
        %1820 = vmatpush.msra.mxu0 0.0
        %1821 = vmatpush.msra.mxu0 0.0
        %1822 = vmatpush.msra.mxu0 0.0
        %1823 = vmatpush.msra.mxu0 0.0
        %1824 = vmatpush.msra.mxu0 0.0
        %1825 = vmatpush.msra.mxu0 0.0
        %1826 = vmatpush.msra.mxu0 0.0
        %1827 = vmatpush.msra.mxu0 0.0
        %1828 = vmatpush.msra.mxu0 0.0
        %1829 = vmatpush.msra.mxu0 %v1624
        %1830 = vmatpush.msra.mxu0 %v1623
        %1831 = vmatpush.msra.mxu0 %v1622
        %1832 = vmatpush.msra.mxu0 %v1621
        %1833 = vmatmul.f32.gmra.mxu0 %v1695
        %v1834 = vpop.f32.mrf.mxu0
        %v1835 = vadd.f32 %v1676, %v1834
        %1836 = vdwg.mxu0
        %1837 = vmatpush.msra.mxu0 0.0
        %1838 = vmatpush.msra.mxu0 0.0
        %1839 = vmatpush.msra.mxu0 0.0
        %1840 = vmatpush.msra.mxu0 0.0
        %1841 = vmatpush.msra.mxu0 0.0
        %1842 = vmatpush.msra.mxu0 0.0
        %1843 = vmatpush.msra.mxu0 0.0
        %1844 = vmatpush.msra.mxu0 0.0
        %1845 = vmatpush.msra.mxu0 0.0
        %1846 = vmatpush.msra.mxu0 0.0
        %1847 = vmatpush.msra.mxu0 0.0
        %1848 = vmatpush.msra.mxu0 0.0
        %1849 = vmatpush.msra.mxu0 %v1628
        %1850 = vmatpush.msra.mxu0 %v1627
        %1851 = vmatpush.msra.mxu0 %v1626
        %1852 = vmatpush.msra.mxu0 %v1625
        %1853 = vmatmul.f32.gmra.mxu0 %v1695
        %v1854 = vpop.f32.mrf.mxu0
        %v1855 = vadd.f32 %v1677, %v1854
        %1856 = vdwg.mxu0
        %1857 = vmatpush.msra.mxu0 0.0
        %1858 = vmatpush.msra.mxu0 0.0
        %1859 = vmatpush.msra.mxu0 0.0
        %1860 = vmatpush.msra.mxu0 0.0
        %1861 = vmatpush.msra.mxu0 0.0
        %1862 = vmatpush.msra.mxu0 0.0
        %1863 = vmatpush.msra.mxu0 0.0
        %1864 = vmatpush.msra.mxu0 0.0
        %1865 = vmatpush.msra.mxu0 0.0
        %1866 = vmatpush.msra.mxu0 0.0
        %1867 = vmatpush.msra.mxu0 0.0
        %1868 = vmatpush.msra.mxu0 0.0
        %1869 = vmatpush.msra.mxu0 %v1632
        %1870 = vmatpush.msra.mxu0 %v1631
        %1871 = vmatpush.msra.mxu0 %v1630
        %1872 = vmatpush.msra.mxu0 %v1629
        %1873 = vmatmul.f32.gmra.mxu0 %v1695
        %v1874 = vpop.f32.mrf.mxu0
        %v1875 = vadd.f32 %v1678, %v1874
        %1876 = vdwg.mxu0
        %1877 = vmatpush.msra.mxu0 0.0
        %1878 = vmatpush.msra.mxu0 0.0
        %1879 = vmatpush.msra.mxu0 0.0
        %1880 = vmatpush.msra.mxu0 0.0
        %1881 = vmatpush.msra.mxu0 0.0
        %1882 = vmatpush.msra.mxu0 0.0
        %1883 = vmatpush.msra.mxu0 0.0
        %1884 = vmatpush.msra.mxu0 0.0
        %1885 = vmatpush.msra.mxu0 0.0
        %1886 = vmatpush.msra.mxu0 0.0
        %1887 = vmatpush.msra.mxu0 0.0
        %1888 = vmatpush.msra.mxu0 0.0
        %1889 = vmatpush.msra.mxu0 %v1636
        %1890 = vmatpush.msra.mxu0 %v1635
        %1891 = vmatpush.msra.mxu0 %v1634
        %1892 = vmatpush.msra.mxu0 %v1633
        %1893 = vmatmul.f32.gmra.mxu0 %v1695
        %v1894 = vpop.f32.mrf.mxu0
        %v1895 = vadd.f32 %v1679, %v1894
        %1896 = vdwg.mxu0
        %1897 = vmatpush.msra.mxu0 0.0
        %1898 = vmatpush.msra.mxu0 0.0
        %1899 = vmatpush.msra.mxu0 0.0
        %1900 = vmatpush.msra.mxu0 0.0
        %1901 = vmatpush.msra.mxu0 0.0
        %1902 = vmatpush.msra.mxu0 0.0
        %1903 = vmatpush.msra.mxu0 0.0
        %1904 = vmatpush.msra.mxu0 0.0
        %1905 = vmatpush.msra.mxu0 0.0
        %1906 = vmatpush.msra.mxu0 0.0
        %1907 = vmatpush.msra.mxu0 0.0
        %1908 = vmatpush.msra.mxu0 0.0
        %1909 = vmatpush.msra.mxu0 %v1640
        %1910 = vmatpush.msra.mxu0 %v1639
        %1911 = vmatpush.msra.mxu0 %v1638
        %1912 = vmatpush.msra.mxu0 %v1637
        %1913 = vmatmul.f32.gmra.mxu0 %v1695
        %v1914 = vpop.f32.mrf.mxu0
        %v1915 = vadd.f32 %v1680, %v1914
        %1916 = vdwg.mxu0
        %1917 = vmatpush.msra.mxu0 0.0
        %1918 = vmatpush.msra.mxu0 0.0
        %1919 = vmatpush.msra.mxu0 0.0
        %1920 = vmatpush.msra.mxu0 0.0
        %1921 = vmatpush.msra.mxu0 0.0
        %1922 = vmatpush.msra.mxu0 0.0
        %1923 = vmatpush.msra.mxu0 0.0
        %1924 = vmatpush.msra.mxu0 0.0
        %1925 = vmatpush.msra.mxu0 0.0
        %1926 = vmatpush.msra.mxu0 0.0
        %1927 = vmatpush.msra.mxu0 0.0
        %1928 = vmatpush.msra.mxu0 0.0
        %1929 = vmatpush.msra.mxu0 %v1644
        %1930 = vmatpush.msra.mxu0 %v1643
        %1931 = vmatpush.msra.mxu0 %v1642
        %1932 = vmatpush.msra.mxu0 %v1641
        %1933 = vmatmul.f32.gmra.mxu0 %v1695
        %v1934 = vpop.f32.mrf.mxu0
        %v1935 = vadd.f32 %v1681, %v1934
        %1936 = vdwg.mxu0
        %v1938 = vsel %vm1060, %v1715, 0
        %v1941 = vsel %vm1060, %v1795, 0
        %1943 = vmatpush.xpose.msra.mxu0 0.0
        %1944 = vmatpush.xpose.msra.mxu0 0.0
        %1945 = vmatpush.xpose.msra.mxu0 0.0
        %1946 = vmatpush.xpose.msra.mxu0 0.0
        %1947 = vmatpush.xpose.msra.mxu0 0.0
        %1948 = vmatpush.xpose.msra.mxu0 0.0
        %1949 = vmatpush.xpose.msra.mxu0 0.0
        %1950 = vmatpush.xpose.msra.mxu0 0.0
        %1951 = vmatpush.xpose.msra.mxu0 0.0
        %1952 = vmatpush.xpose.msra.mxu0 0.0
        %1953 = vmatpush.xpose.msra.mxu0 0.0
        %1954 = vmatpush.xpose.msra.mxu0 0.0
        %1955 = vmatpush.xpose.msra.mxu0 0.0
        %1956 = vmatpush.xpose.msra.mxu0 0.0
        %1957 = vmatpush.xpose.msra.mxu0 0.0
        %1958 = vmatpush.xpose.msra.mxu0 %v1941
        %1959 = vmatmul.f32.gmra.mxu0 %v1938
        %v1960 = vpop.f32.mrf.mxu0
        %v1961 = vadd.f32 0.0, %v1960
        %1962 = vdwg.mxu0
        %v1964 = vsel %vm1060, %v1735, 0
        %v1967 = vsel %vm1060, %v1815, 0
        %1969 = vmatpush.xpose.msra.mxu0 0.0
        %1970 = vmatpush.xpose.msra.mxu0 0.0
        %1971 = vmatpush.xpose.msra.mxu0 0.0
        %1972 = vmatpush.xpose.msra.mxu0 0.0
        %1973 = vmatpush.xpose.msra.mxu0 0.0
        %1974 = vmatpush.xpose.msra.mxu0 0.0
        %1975 = vmatpush.xpose.msra.mxu0 0.0
        %1976 = vmatpush.xpose.msra.mxu0 0.0
        %1977 = vmatpush.xpose.msra.mxu0 0.0
        %1978 = vmatpush.xpose.msra.mxu0 0.0
        %1979 = vmatpush.xpose.msra.mxu0 0.0
        %1980 = vmatpush.xpose.msra.mxu0 0.0
        %1981 = vmatpush.xpose.msra.mxu0 0.0
        %1982 = vmatpush.xpose.msra.mxu0 0.0
        %1983 = vmatpush.xpose.msra.mxu0 0.0
        %1984 = vmatpush.xpose.msra.mxu0 %v1967
        %1985 = vmatmul.f32.gmra.mxu0 %v1964
        %v1986 = vpop.f32.mrf.mxu0
        %v1987 = vadd.f32 0.0, %v1986
        %1988 = vdwg.mxu0
        %v1990 = vsel %vm1060, %v1755, 0
        %v1993 = vsel %vm1060, %v1835, 0
        %1995 = vmatpush.xpose.msra.mxu0 0.0
        %1996 = vmatpush.xpose.msra.mxu0 0.0
        %1997 = vmatpush.xpose.msra.mxu0 0.0
        %1998 = vmatpush.xpose.msra.mxu0 0.0
        %1999 = vmatpush.xpose.msra.mxu0 0.0
        %2000 = vmatpush.xpose.msra.mxu0 0.0
        %2001 = vmatpush.xpose.msra.mxu0 0.0
        %2002 = vmatpush.xpose.msra.mxu0 0.0
        %2003 = vmatpush.xpose.msra.mxu0 0.0
        %2004 = vmatpush.xpose.msra.mxu0 0.0
        %2005 = vmatpush.xpose.msra.mxu0 0.0
        %2006 = vmatpush.xpose.msra.mxu0 0.0
        %2007 = vmatpush.xpose.msra.mxu0 0.0
        %2008 = vmatpush.xpose.msra.mxu0 0.0
        %2009 = vmatpush.xpose.msra.mxu0 0.0
        %2010 = vmatpush.xpose.msra.mxu0 %v1993
        %2011 = vmatmul.f32.gmra.mxu0 %v1990
        %v2012 = vpop.f32.mrf.mxu0
        %v2013 = vadd.f32 0.0, %v2012
        %2014 = vdwg.mxu0
        %v2016 = vsel %vm1060, %v1775, 0
        %v2019 = vsel %vm1060, %v1855, 0
        %2021 = vmatpush.xpose.msra.mxu0 0.0
        %2022 = vmatpush.xpose.msra.mxu0 0.0
        %2023 = vmatpush.xpose.msra.mxu0 0.0
        %2024 = vmatpush.xpose.msra.mxu0 0.0
        %2025 = vmatpush.xpose.msra.mxu0 0.0
        %2026 = vmatpush.xpose.msra.mxu0 0.0
        %2027 = vmatpush.xpose.msra.mxu0 0.0
        %2028 = vmatpush.xpose.msra.mxu0 0.0
        %2029 = vmatpush.xpose.msra.mxu0 0.0
        %2030 = vmatpush.xpose.msra.mxu0 0.0
        %2031 = vmatpush.xpose.msra.mxu0 0.0
        %2032 = vmatpush.xpose.msra.mxu0 0.0
        %2033 = vmatpush.xpose.msra.mxu0 0.0
        %2034 = vmatpush.xpose.msra.mxu0 0.0
        %2035 = vmatpush.xpose.msra.mxu0 0.0
        %2036 = vmatpush.xpose.msra.mxu0 %v2019
        %2037 = vmatmul.f32.gmra.mxu0 %v2016
        %v2038 = vpop.f32.mrf.mxu0
        %v2039 = vadd.f32 0.0, %v2038
        %2040 = vdwg.mxu0
        %v2041 = vmul.f32 %v1961, 0.35355338
        %v2042 = vmul.f32 %v1987, 0.35355338
        %v2043 = vmul.f32 %v2013, 0.35355338
        %v2044 = vmul.f32 %v2039, 0.35355338
        %v2045 = vsel %vm1060, %v2041, -inf
        %2046 = vmax.xlane.f32.xlu0 %v2045
        %v2047 = vpop.xlane.xlu0 %2046
        %v2048 = vsel %vm1060, %v2042, -inf
        %2049 = vmax.xlane.f32.xlu0 %v2048
        %v2050 = vpop.xlane.xlu0 %2049
        %v2051 = vsel %vm1060, %v2043, -inf
        %2052 = vmax.xlane.f32.xlu0 %v2051
        %v2053 = vpop.xlane.xlu0 %2052
        %v2054 = vsel %vm1060, %v2044, -inf
        %2055 = vmax.xlane.f32.xlu0 %v2054
        %v2056 = vpop.xlane.xlu0 %2055
        %v2057 = vsub.f32 %v2041, %v2047
        %v2058 = vsub.f32 %v2042, %v2050
        %v2059 = vsub.f32 %v2043, %v2053
        %v2060 = vsub.f32 %v2044, %v2056
        %v2061 = vmul.f32 %v2057, 1.442695
        %v2062 = vpow.pop %v2061
        %v2063 = vmul.f32 %v2058, 1.442695
        %v2064 = vpow.pop %v2063
        %v2065 = vmul.f32 %v2059, 1.442695
        %v2066 = vpow.pop %v2065
        %v2067 = vmul.f32 %v2060, 1.442695
        %v2068 = vpow.pop %v2067
        %v2069 = vsel %vm1060, %v2062, 0.0
        %2070 = vadd.xlane.f32.xlu0 %v2069
        %v2071 = vpop.xlane.xlu0 %2070
        %v2072 = vsel %vm1060, %v2064, 0.0
        %2073 = vadd.xlane.f32.xlu0 %v2072
        %v2074 = vpop.xlane.xlu0 %2073
        %v2075 = vsel %vm1060, %v2066, 0.0
        %2076 = vadd.xlane.f32.xlu0 %v2075
        %v2077 = vpop.xlane.xlu0 %2076
        %v2078 = vsel %vm1060, %v2068, 0.0
        %2079 = vadd.xlane.f32.xlu0 %v2078
        %v2080 = vpop.xlane.xlu0 %2079
        %v2081 = vrcp.pop %v2071
        %v2082 = vrcp.pop %v2074
        %v2083 = vrcp.pop %v2077
        %v2084 = vrcp.pop %v2080
        %v2085 = vmul.f32 %v2062, %v2081
        %v2086 = vmul.f32 %v2064, %v2082
        %v2087 = vmul.f32 %v2066, %v2083
        %v2088 = vmul.f32 %v2068, %v2084
        %v2090 = vsel %vm1060, %v2085, 0
        %2092 = vmatpush.msra.mxu0 0.0
        %2093 = vmatpush.msra.mxu0 0.0
        %2094 = vmatpush.msra.mxu0 0.0
        %2095 = vmatpush.msra.mxu0 0.0
        %2096 = vmatpush.msra.mxu0 0.0
        %2097 = vmatpush.msra.mxu0 0.0
        %2098 = vmatpush.msra.mxu0 0.0
        %2099 = vmatpush.msra.mxu0 0.0
        %2100 = vmatpush.msra.mxu0 0.0
        %2101 = vmatpush.msra.mxu0 0.0
        %2102 = vmatpush.msra.mxu0 0.0
        %2103 = vmatpush.msra.mxu0 0.0
        %2104 = vmatpush.msra.mxu0 0.0
        %2105 = vmatpush.msra.mxu0 0.0
        %2106 = vmatpush.msra.mxu0 0.0
        %2107 = vmatpush.msra.mxu0 %v1875
        %2108 = vmatmul.f32.gmra.mxu0 %v2090
        %v2109 = vpop.f32.mrf.mxu0
        %v2110 = vadd.f32 0.0, %v2109
        %2111 = vdwg.mxu0
        %v2113 = vsel %vm1060, %v2086, 0
        %2115 = vmatpush.msra.mxu0 0.0
        %2116 = vmatpush.msra.mxu0 0.0
        %2117 = vmatpush.msra.mxu0 0.0
        %2118 = vmatpush.msra.mxu0 0.0
        %2119 = vmatpush.msra.mxu0 0.0
        %2120 = vmatpush.msra.mxu0 0.0
        %2121 = vmatpush.msra.mxu0 0.0
        %2122 = vmatpush.msra.mxu0 0.0
        %2123 = vmatpush.msra.mxu0 0.0
        %2124 = vmatpush.msra.mxu0 0.0
        %2125 = vmatpush.msra.mxu0 0.0
        %2126 = vmatpush.msra.mxu0 0.0
        %2127 = vmatpush.msra.mxu0 0.0
        %2128 = vmatpush.msra.mxu0 0.0
        %2129 = vmatpush.msra.mxu0 0.0
        %2130 = vmatpush.msra.mxu0 %v1895
        %2131 = vmatmul.f32.gmra.mxu0 %v2113
        %v2132 = vpop.f32.mrf.mxu0
        %v2133 = vadd.f32 0.0, %v2132
        %2134 = vdwg.mxu0
        %v2136 = vsel %vm1060, %v2087, 0
        %2138 = vmatpush.msra.mxu0 0.0
        %2139 = vmatpush.msra.mxu0 0.0
        %2140 = vmatpush.msra.mxu0 0.0
        %2141 = vmatpush.msra.mxu0 0.0
        %2142 = vmatpush.msra.mxu0 0.0
        %2143 = vmatpush.msra.mxu0 0.0
        %2144 = vmatpush.msra.mxu0 0.0
        %2145 = vmatpush.msra.mxu0 0.0
        %2146 = vmatpush.msra.mxu0 0.0
        %2147 = vmatpush.msra.mxu0 0.0
        %2148 = vmatpush.msra.mxu0 0.0
        %2149 = vmatpush.msra.mxu0 0.0
        %2150 = vmatpush.msra.mxu0 0.0
        %2151 = vmatpush.msra.mxu0 0.0
        %2152 = vmatpush.msra.mxu0 0.0
        %2153 = vmatpush.msra.mxu0 %v1915
        %2154 = vmatmul.f32.gmra.mxu0 %v2136
        %v2155 = vpop.f32.mrf.mxu0
        %v2156 = vadd.f32 0.0, %v2155
        %2157 = vdwg.mxu0
        %v2159 = vsel %vm1060, %v2088, 0
        %2161 = vmatpush.msra.mxu0 0.0
        %2162 = vmatpush.msra.mxu0 0.0
        %2163 = vmatpush.msra.mxu0 0.0
        %2164 = vmatpush.msra.mxu0 0.0
        %2165 = vmatpush.msra.mxu0 0.0
        %2166 = vmatpush.msra.mxu0 0.0
        %2167 = vmatpush.msra.mxu0 0.0
        %2168 = vmatpush.msra.mxu0 0.0
        %2169 = vmatpush.msra.mxu0 0.0
        %2170 = vmatpush.msra.mxu0 0.0
        %2171 = vmatpush.msra.mxu0 0.0
        %2172 = vmatpush.msra.mxu0 0.0
        %2173 = vmatpush.msra.mxu0 0.0
        %2174 = vmatpush.msra.mxu0 0.0
        %2175 = vmatpush.msra.mxu0 0.0
        %2176 = vmatpush.msra.mxu0 %v1935
        %2177 = vmatmul.f32.gmra.mxu0 %v2159
        %v2178 = vpop.f32.mrf.mxu0
        %v2179 = vadd.f32 0.0, %v2178
        %2180 = vdwg.mxu0
        %s2181 = scalar_lea.vmem %s6, 32
        %v2182 = vld [vmem:[%s2181] sm:$0xff]
        %v2183 = vld [vmem:[%s2181 + $0x8] sm:$0xff]
        %v2184 = vld [vmem:[%s2181 + $0x10] sm:$0xff]
        %v2185 = vld [vmem:[%s2181 + $0x18] sm:$0xff]
        %v2187 = vsel %vm1060, %v2110, 0
        %2189 = vmatpush.msra.mxu0 0.0
        %2190 = vmatpush.msra.mxu0 0.0
        %2191 = vmatpush.msra.mxu0 0.0
        %2192 = vmatpush.msra.mxu0 0.0
        %2193 = vmatpush.msra.mxu0 0.0
        %2194 = vmatpush.msra.mxu0 0.0
        %2195 = vmatpush.msra.mxu0 0.0
        %2196 = vmatpush.msra.mxu0 0.0
        %2197 = vmatpush.msra.mxu0 0.0
        %2198 = vmatpush.msra.mxu0 0.0
        %2199 = vmatpush.msra.mxu0 0.0
        %2200 = vmatpush.msra.mxu0 0.0
        %2201 = vmatpush.msra.mxu0 0.0
        %2202 = vmatpush.msra.mxu0 0.0
        %2203 = vmatpush.msra.mxu0 0.0
        %2204 = vmatpush.msra.mxu0 %v2182
        %2205 = vmatmul.f32.gmra.mxu0 %v2187
        %v2206 = vpop.f32.mrf.mxu0
        %v2207 = vadd.f32 0.0, %v2206
        %2208 = vdwg.mxu0
        %v2210 = vsel %vm1060, %v2133, 0
        %2212 = vmatpush.msra.mxu0 0.0
        %2213 = vmatpush.msra.mxu0 0.0
        %2214 = vmatpush.msra.mxu0 0.0
        %2215 = vmatpush.msra.mxu0 0.0
        %2216 = vmatpush.msra.mxu0 0.0
        %2217 = vmatpush.msra.mxu0 0.0
        %2218 = vmatpush.msra.mxu0 0.0
        %2219 = vmatpush.msra.mxu0 0.0
        %2220 = vmatpush.msra.mxu0 0.0
        %2221 = vmatpush.msra.mxu0 0.0
        %2222 = vmatpush.msra.mxu0 0.0
        %2223 = vmatpush.msra.mxu0 0.0
        %2224 = vmatpush.msra.mxu0 0.0
        %2225 = vmatpush.msra.mxu0 0.0
        %2226 = vmatpush.msra.mxu0 0.0
        %2227 = vmatpush.msra.mxu0 %v2183
        %2228 = vmatmul.f32.gmra.mxu0 %v2210
        %v2229 = vpop.f32.mrf.mxu0
        %v2230 = vadd.f32 0.0, %v2229
        %2231 = vdwg.mxu0
        %v2233 = vsel %vm1060, %v2156, 0
        %2235 = vmatpush.msra.mxu0 0.0
        %2236 = vmatpush.msra.mxu0 0.0
        %2237 = vmatpush.msra.mxu0 0.0
        %2238 = vmatpush.msra.mxu0 0.0
        %2239 = vmatpush.msra.mxu0 0.0
        %2240 = vmatpush.msra.mxu0 0.0
        %2241 = vmatpush.msra.mxu0 0.0
        %2242 = vmatpush.msra.mxu0 0.0
        %2243 = vmatpush.msra.mxu0 0.0
        %2244 = vmatpush.msra.mxu0 0.0
        %2245 = vmatpush.msra.mxu0 0.0
        %2246 = vmatpush.msra.mxu0 0.0
        %2247 = vmatpush.msra.mxu0 0.0
        %2248 = vmatpush.msra.mxu0 0.0
        %2249 = vmatpush.msra.mxu0 0.0
        %2250 = vmatpush.msra.mxu0 %v2184
        %2251 = vmatmul.f32.gmra.mxu0 %v2233
        %v2252 = vpop.f32.mrf.mxu0
        %v2253 = vadd.f32 0.0, %v2252
        %2254 = vdwg.mxu0
        %v2256 = vsel %vm1060, %v2179, 0
        %2258 = vmatpush.msra.mxu0 0.0
        %2259 = vmatpush.msra.mxu0 0.0
        %2260 = vmatpush.msra.mxu0 0.0
        %2261 = vmatpush.msra.mxu0 0.0
        %2262 = vmatpush.msra.mxu0 0.0
        %2263 = vmatpush.msra.mxu0 0.0
        %2264 = vmatpush.msra.mxu0 0.0
        %2265 = vmatpush.msra.mxu0 0.0
        %2266 = vmatpush.msra.mxu0 0.0
        %2267 = vmatpush.msra.mxu0 0.0
        %2268 = vmatpush.msra.mxu0 0.0
        %2269 = vmatpush.msra.mxu0 0.0
        %2270 = vmatpush.msra.mxu0 0.0
        %2271 = vmatpush.msra.mxu0 0.0
        %2272 = vmatpush.msra.mxu0 0.0
        %2273 = vmatpush.msra.mxu0 %v2185
        %2274 = vmatmul.f32.gmra.mxu0 %v2256
        %v2275 = vpop.f32.mrf.mxu0
        %v2276 = vadd.f32 0.0, %v2275
        %2277 = vdwg.mxu0
        %v2278 = vsel %vm683, %v2207, 0.0
        %v2279 = vsel %vm683, %v2230, 0.0
        %v2280 = vadd.f32 %v2278, %v2279
        %v2281 = vsel %vm683, %v2253, 0.0
        %v2282 = vadd.f32 %v2280, %v2281
        %v2283 = vsel %vm683, %v2276, 0.0
        %v2284 = vadd.f32 %v2282, %v2283
        %s2285 = scalar_lea.vmem %s7, 1
        %v2286 = vld [vmem:[%s2285] sm:$0x1]
        %v2288 = vperm.slane %v2286, 0
        %v2290 = vadd.f32 %v2284, %v2288
        %v2291 = vadd.f32 %v1561, %v2290
        %s2292 = scalar_lea.vmem %s8, 1
        %v2293 = vld [vmem:[%s2292] sm:$0x1]
        %s2294 = scalar_lea.vmem %s9, 1
        %v2295 = vld [vmem:[%s2294] sm:$0x1]
        %v2296 = vsel %vm683, %v2291, 0.0
        %2297 = vadd.xlane.f32.xlu0 %v2296
        %v2298 = vpop.xlane.xlu0 %2297
        %v2299 = vmul.f32 %v2298, %v693
        %v2300 = vsub.f32 %v2291, %v2299
        %v2301 = vmul.f32 %v2300, %v2300
        %v2302 = vsel %vm683, %v2301, 0.0
        %2303 = vadd.xlane.f32.xlu0 %v2302
        %v2304 = vpop.xlane.xlu0 %2303
        %v2305 = vmul.f32 %v2304, %v693
        %v2306 = vadd.f32 %v2305, 1e-06
        %v2307 = vrsqrt.pop %v2306
        %v2308 = vmul.f32 %v2307, %v2306
        %v2309 = vmul.f32 %v2308, %v2307
        %v2310 = vmul.f32 0.5, %v2309
        %v2311 = vsub.f32 1.5, %v2310
        %v2312 = vmul.f32 %v2307, %v2311
        %vm2313 = vweird.f32 %v2306
        %vm2314 = vweird.f32 %v2307
        %vm2315 = vmor %vm2313, %vm2314
        %v2316 = vsel %vm2315, %v2307, %v2312
        %v2317 = vmul.f32 %v2300, %v2316
        %v2319 = vperm.slane %v2293, 0
        %v2321 = vmul.f32 %v2317, %v2319
        %v2323 = vperm.slane %v2295, 0
        %v2325 = vadd.f32 %v2321, %v2323
        %s2326 = scalar_lea.vmem %s10, 32
        %v2327 = vld [vmem:[%s2326] sm:$0xff]
        %v2328 = vld [vmem:[%s2326 + $0x8] sm:$0xff]
        %v2329 = vld [vmem:[%s2326 + $0x10] sm:$0xff]
        %v2330 = vld [vmem:[%s2326 + $0x18] sm:$0xff]
        %s2331 = scalar_lea.vmem %s11, 1
        %v2332 = vld [vmem:[%s2331] sm:$0x1]
        %v2334 = vperm.slane %v2332, 0
        %v2337 = vsel %vm683, %v2325, 0
        %2339 = vmatpush.msra.mxu0 0.0
        %2340 = vmatpush.msra.mxu0 0.0
        %2341 = vmatpush.msra.mxu0 0.0
        %2342 = vmatpush.msra.mxu0 0.0
        %2343 = vmatpush.msra.mxu0 0.0
        %2344 = vmatpush.msra.mxu0 0.0
        %2345 = vmatpush.msra.mxu0 0.0
        %2346 = vmatpush.msra.mxu0 0.0
        %2347 = vmatpush.msra.mxu0 0.0
        %2348 = vmatpush.msra.mxu0 0.0
        %2349 = vmatpush.msra.mxu0 0.0
        %2350 = vmatpush.msra.mxu0 0.0
        %2351 = vmatpush.msra.mxu0 %v2330
        %2352 = vmatpush.msra.mxu0 %v2329
        %2353 = vmatpush.msra.mxu0 %v2328
        %2354 = vmatpush.msra.mxu0 %v2327
        %2355 = vmatmul.f32.gmra.mxu0 %v2337
        %v2356 = vpop.f32.mrf.mxu0
        %v2357 = vadd.f32 %v2334, %v2356
        %2358 = vdwg.mxu0
        %v2359 = vmul.f32 %v2357, 0.5
        %v2360 = vmul.f32 %v2357, 0.70710677
        %v2361 = vmul.f32 %v2360, %v2360
        %v2362 = vmin.f32 16.0, %v2361
        %v2363 = vmul.f32 %v2362, 2.1237322e-06
        %v2364 = vadd.f32 %v2363, 0.00028619796
        %v2365 = vmul.f32 %v2362, %v2364
        %v2366 = vadd.f32 %v2365, 0.0036580483
        %v2367 = vmul.f32 %v2362, %v2366
        %v2368 = vadd.f32 %v2367, 0.05243302
        %v2369 = vmul.f32 %v2362, %v2368
        %v2370 = vadd.f32 %v2369, 0.18741608
        %v2371 = vmul.f32 %v2362, %v2370
        %v2372 = vadd.f32 %v2371, 1.1283791
        %v2373 = vmul.f32 %v2360, %v2372
        %v2374 = vmul.f32 %v2362, 3.8918573e-05
        %v2375 = vadd.f32 %v2374, 0.001143296
        %v2376 = vmul.f32 %v2362, %v2375
        %v2377 = vadd.f32 %v2376, 0.014752088
        %v2378 = vmul.f32 %v2362, %v2377
        %v2379 = vadd.f32 %v2378, 0.112945676
        %v2380 = vmul.f32 %v2362, %v2379
        %v2381 = vadd.f32 %v2380, 0.4994258
        %v2382 = vmul.f32 %v2362, %v2381
        %v2383 = vadd.f32 %v2382, 1.0
        %v2384 = vrcp.pop %v2383
        %v2385 = vmul.f32 %v2383, %v2384
        %v2386 = vsub.f32 1.0, %v2385
        %v2387 = vmul.f32 %v2384, %v2386
        %v2388 = vadd.f32 %v2384, %v2387
        %vm2389 = vweird.f32 %v2383
        %vm2390 = vweird.f32 %v2384
        %vm2391 = vmor %vm2389, %vm2390
        %v2392 = vsel %vm2391, %v2384, %v2388
        %v2393 = vand.u32 2147483647, %v2383
        %vm2394 = vcmp.eq.f32.partialorder %v2393, 8.507059e+37
        %v2395 = vand.u32 %v2383, 2147483648
        %v2396 = vor.u32 1.1754944e-38, %v2395
        %v2397 = vsel %vm2394, %v2396, %v2392
        %v2398 = vmul.f32 %v2373, %v2397
        %v2399 = vmin.f32 %v2398, 1.0
        %v2400 = vmax.f32 %v2399, -1.0
        %v2401 = vadd.f32 %v2400, 1.0
        %v2402 = vmul.f32 %v2359, %v2401
        %s2403 = scalar_lea.vmem %s12, 128
        %v2404 = vld [vmem:[%s2403] sm:$0xff]
        %v2405 = vld [vmem:[%s2403 + $0x8] sm:$0xff]
        %v2406 = vld [vmem:[%s2403 + $0x10] sm:$0xff]
        %v2407 = vld [vmem:[%s2403 + $0x18] sm:$0xff]
        %v2408 = vld [vmem:[%s2403 + $0x20] sm:$0xff]
        %v2409 = vld [vmem:[%s2403 + $0x28] sm:$0xff]
        %v2410 = vld [vmem:[%s2403 + $0x30] sm:$0xff]
        %v2411 = vld [vmem:[%s2403 + $0x38] sm:$0xff]
        %v2412 = vld [vmem:[%s2403 + $0x40] sm:$0xff]
        %v2413 = vld [vmem:[%s2403 + $0x48] sm:$0xff]
        %v2414 = vld [vmem:[%s2403 + $0x50] sm:$0xff]
        %v2415 = vld [vmem:[%s2403 + $0x58] sm:$0xff]
        %v2416 = vld [vmem:[%s2403 + $0x60] sm:$0xff]
        %v2417 = vld [vmem:[%s2403 + $0x68] sm:$0xff]
        %v2418 = vld [vmem:[%s2403 + $0x70] sm:$0xff]
        %v2419 = vld [vmem:[%s2403 + $0x78] sm:$0xff]
        %s2420 = scalar_lea.vmem %s13, 1
        %v2421 = vld [vmem:[%s2420] sm:$0x1]
        %v2423 = vperm.slane %v2421, 0
        %2425 = vmatpush.msra.mxu0 %v2419
        %2426 = vmatpush.msra.mxu0 %v2418
        %2427 = vmatpush.msra.mxu0 %v2417
        %2428 = vmatpush.msra.mxu0 %v2416
        %2429 = vmatpush.msra.mxu0 %v2415
        %2430 = vmatpush.msra.mxu0 %v2414
        %2431 = vmatpush.msra.mxu0 %v2413
        %2432 = vmatpush.msra.mxu0 %v2412
        %2433 = vmatpush.msra.mxu0 %v2411
        %2434 = vmatpush.msra.mxu0 %v2410
        %2435 = vmatpush.msra.mxu0 %v2409
        %2436 = vmatpush.msra.mxu0 %v2408
        %2437 = vmatpush.msra.mxu0 %v2407
        %2438 = vmatpush.msra.mxu0 %v2406
        %2439 = vmatpush.msra.mxu0 %v2405
        %2440 = vmatpush.msra.mxu0 %v2404
        %2441 = vmatmul.f32.gmra.mxu0 %v2402
        %v2442 = vpop.f32.mrf.mxu0
        %v2443 = vadd.f32 %v2423, %v2442
        %2444 = vdwg.mxu0
        %v2445 = vadd.f32 %v2291, %v2443
        %v2446 = vld [vmem:[%s14] sm:$0x1]
        %v2447 = vld [vmem:[%s15] sm:$0x1]
        %v2448 = vsel %vm683, %v2445, 0.0
        %2449 = vadd.xlane.f32.xlu0 %v2448
        %v2450 = vpop.xlane.xlu0 %2449
        %v2451 = vmul.f32 %v2450, %v693
        %v2452 = vsub.f32 %v2445, %v2451
        %v2453 = vmul.f32 %v2452, %v2452
        %v2454 = vsel %vm683, %v2453, 0.0
        %2455 = vadd.xlane.f32.xlu0 %v2454
        %v2456 = vpop.xlane.xlu0 %2455
        %v2457 = vmul.f32 %v2456, %v693
        %v2458 = vadd.f32 %v2457, 1e-06
        %v2459 = vrsqrt.pop %v2458
        %v2460 = vmul.f32 %v2459, %v2458
        %v2461 = vmul.f32 %v2460, %v2459
        %v2462 = vmul.f32 0.5, %v2461
        %v2463 = vsub.f32 1.5, %v2462
        %v2464 = vmul.f32 %v2459, %v2463
        %vm2465 = vweird.f32 %v2458
        %vm2466 = vweird.f32 %v2459
        %vm2467 = vmor %vm2465, %vm2466
        %v2468 = vsel %vm2467, %v2459, %v2464
        %v2469 = vmul.f32 %v2452, %v2468
        %v2471 = vperm.slane %v2446, 0
        %v2473 = vmul.f32 %v2469, %v2471
        %v2475 = vperm.slane %v2447, 0
        %v2477 = vadd.f32 %v2473, %v2475
        %v2478 = vld [vmem:[%s16] sm:$0xff]
        %v2479 = vld [vmem:[%s16 + $0x8] sm:$0xff]
        %v2480 = vld [vmem:[%s16 + $0x10] sm:$0xff]
        %v2481 = vld [vmem:[%s16 + $0x18] sm:$0xff]
        %v2482 = vld [vmem:[%s16 + $0x20] sm:$0xff]
        %v2483 = vld [vmem:[%s16 + $0x28] sm:$0xff]
        %v2484 = vld [vmem:[%s16 + $0x30] sm:$0xff]
        %v2485 = vld [vmem:[%s16 + $0x38] sm:$0xff]
        %v2486 = vld [vmem:[%s16 + $0x40] sm:$0xff]
        %v2487 = vld [vmem:[%s16 + $0x48] sm:$0xff]
        %v2488 = vld [vmem:[%s16 + $0x50] sm:$0xff]
        %v2489 = vld [vmem:[%s16 + $0x58] sm:$0xff]
        %v2490 = vld [vmem:[%s16 + $0x60] sm:$0xff]
        %v2491 = vld [vmem:[%s16 + $0x68] sm:$0xff]
        %v2492 = vld [vmem:[%s16 + $0x70] sm:$0xff]
        %v2493 = vld [vmem:[%s16 + $0x78] sm:$0xff]
        %v2494 = vld [vmem:[%s18] sm:$0x1]
        %v2495 = vld [vmem:[%s18 + $0x1] sm:$0x1]
        %v2496 = vld [vmem:[%s18 + $0x2] sm:$0x1]
        %v2497 = vld [vmem:[%s18 + $0x3] sm:$0x1]
        %v2502 = vperm.slane %v2494, 0
        %v2503 = vperm.slane %v2495, 0
        %v2504 = vperm.slane %v2496, 0
        %v2505 = vperm.slane %v2497, 0
        %v2511 = vsel %vm683, %v2477, 0
        %2513 = vmatpush.msra.mxu0 0.0
        %2514 = vmatpush.msra.mxu0 0.0
        %2515 = vmatpush.msra.mxu0 0.0
        %2516 = vmatpush.msra.mxu0 0.0
        %2517 = vmatpush.msra.mxu0 0.0
        %2518 = vmatpush.msra.mxu0 0.0
        %2519 = vmatpush.msra.mxu0 0.0
        %2520 = vmatpush.msra.mxu0 0.0
        %2521 = vmatpush.msra.mxu0 0.0
        %2522 = vmatpush.msra.mxu0 0.0
        %2523 = vmatpush.msra.mxu0 0.0
        %2524 = vmatpush.msra.mxu0 0.0
        %2525 = vmatpush.msra.mxu0 %v2481
        %2526 = vmatpush.msra.mxu0 %v2480
        %2527 = vmatpush.msra.mxu0 %v2479
        %2528 = vmatpush.msra.mxu0 %v2478
        %2529 = vmatmul.f32.gmra.mxu0 %v2511
        %v2530 = vpop.f32.mrf.mxu0
        %v2531 = vadd.f32 %v2502, %v2530
        %2532 = vdwg.mxu0
        %2533 = vmatpush.msra.mxu0 0.0
        %2534 = vmatpush.msra.mxu0 0.0
        %2535 = vmatpush.msra.mxu0 0.0
        %2536 = vmatpush.msra.mxu0 0.0
        %2537 = vmatpush.msra.mxu0 0.0
        %2538 = vmatpush.msra.mxu0 0.0
        %2539 = vmatpush.msra.mxu0 0.0
        %2540 = vmatpush.msra.mxu0 0.0
        %2541 = vmatpush.msra.mxu0 0.0
        %2542 = vmatpush.msra.mxu0 0.0
        %2543 = vmatpush.msra.mxu0 0.0
        %2544 = vmatpush.msra.mxu0 0.0
        %2545 = vmatpush.msra.mxu0 %v2485
        %2546 = vmatpush.msra.mxu0 %v2484
        %2547 = vmatpush.msra.mxu0 %v2483
        %2548 = vmatpush.msra.mxu0 %v2482
        %2549 = vmatmul.f32.gmra.mxu0 %v2511
        %v2550 = vpop.f32.mrf.mxu0
        %v2551 = vadd.f32 %v2503, %v2550
        %2552 = vdwg.mxu0
        %2553 = vmatpush.msra.mxu0 0.0
        %2554 = vmatpush.msra.mxu0 0.0
        %2555 = vmatpush.msra.mxu0 0.0
        %2556 = vmatpush.msra.mxu0 0.0
        %2557 = vmatpush.msra.mxu0 0.0
        %2558 = vmatpush.msra.mxu0 0.0
        %2559 = vmatpush.msra.mxu0 0.0
        %2560 = vmatpush.msra.mxu0 0.0
        %2561 = vmatpush.msra.mxu0 0.0
        %2562 = vmatpush.msra.mxu0 0.0
        %2563 = vmatpush.msra.mxu0 0.0
        %2564 = vmatpush.msra.mxu0 0.0
        %2565 = vmatpush.msra.mxu0 %v2489
        %2566 = vmatpush.msra.mxu0 %v2488
        %2567 = vmatpush.msra.mxu0 %v2487
        %2568 = vmatpush.msra.mxu0 %v2486
        %2569 = vmatmul.f32.gmra.mxu0 %v2511
        %v2570 = vpop.f32.mrf.mxu0
        %v2571 = vadd.f32 %v2504, %v2570
        %2572 = vdwg.mxu0
        %2573 = vmatpush.msra.mxu0 0.0
        %2574 = vmatpush.msra.mxu0 0.0
        %2575 = vmatpush.msra.mxu0 0.0
        %2576 = vmatpush.msra.mxu0 0.0
        %2577 = vmatpush.msra.mxu0 0.0
        %2578 = vmatpush.msra.mxu0 0.0
        %2579 = vmatpush.msra.mxu0 0.0
        %2580 = vmatpush.msra.mxu0 0.0
        %2581 = vmatpush.msra.mxu0 0.0
        %2582 = vmatpush.msra.mxu0 0.0
        %2583 = vmatpush.msra.mxu0 0.0
        %2584 = vmatpush.msra.mxu0 0.0
        %2585 = vmatpush.msra.mxu0 %v2493
        %2586 = vmatpush.msra.mxu0 %v2492
        %2587 = vmatpush.msra.mxu0 %v2491
        %2588 = vmatpush.msra.mxu0 %v2490
        %2589 = vmatmul.f32.gmra.mxu0 %v2511
        %v2590 = vpop.f32.mrf.mxu0
        %v2591 = vadd.f32 %v2505, %v2590
        %2592 = vdwg.mxu0
        %v2593 = vld [vmem:[%s19] sm:$0x1]
        %v2594 = vld [vmem:[%s19 + $0x1] sm:$0x1]
        %v2595 = vld [vmem:[%s19 + $0x2] sm:$0x1]
        %v2596 = vld [vmem:[%s19 + $0x3] sm:$0x1]
        %v2601 = vperm.slane %v2593, 0
        %v2602 = vperm.slane %v2594, 0
        %v2603 = vperm.slane %v2595, 0
        %v2604 = vperm.slane %v2596, 0
        %v2609 = vadd.f32 %v2531, %v2601
        %v2610 = vadd.f32 %v2551, %v2602
        %v2611 = vadd.f32 %v2571, %v2603
        %v2612 = vadd.f32 %v2591, %v2604
        %v2613 = vld [vmem:[%s17] sm:$0xff]
        %v2614 = vld [vmem:[%s17 + $0x8] sm:$0xff]
        %v2615 = vld [vmem:[%s17 + $0x10] sm:$0xff]
        %v2616 = vld [vmem:[%s17 + $0x18] sm:$0xff]
        %v2617 = vld [vmem:[%s17 + $0x20] sm:$0xff]
        %v2618 = vld [vmem:[%s17 + $0x28] sm:$0xff]
        %v2619 = vld [vmem:[%s17 + $0x30] sm:$0xff]
        %v2620 = vld [vmem:[%s17 + $0x38] sm:$0xff]
        %v2621 = vld [vmem:[%s17 + $0x40] sm:$0xff]
        %v2622 = vld [vmem:[%s17 + $0x48] sm:$0xff]
        %v2623 = vld [vmem:[%s17 + $0x50] sm:$0xff]
        %v2624 = vld [vmem:[%s17 + $0x58] sm:$0xff]
        %v2625 = vld [vmem:[%s17 + $0x60] sm:$0xff]
        %v2626 = vld [vmem:[%s17 + $0x68] sm:$0xff]
        %v2627 = vld [vmem:[%s17 + $0x70] sm:$0xff]
        %v2628 = vld [vmem:[%s17 + $0x78] sm:$0xff]
        %v2630 = vsel %vm683, 0.0, 0
        %2632 = vmatpush.msra.mxu0 0.0
        %2633 = vmatpush.msra.mxu0 0.0
        %2634 = vmatpush.msra.mxu0 0.0
        %2635 = vmatpush.msra.mxu0 0.0
        %2636 = vmatpush.msra.mxu0 0.0
        %2637 = vmatpush.msra.mxu0 0.0
        %2638 = vmatpush.msra.mxu0 0.0
        %2639 = vmatpush.msra.mxu0 0.0
        %2640 = vmatpush.msra.mxu0 0.0
        %2641 = vmatpush.msra.mxu0 0.0
        %2642 = vmatpush.msra.mxu0 0.0
        %2643 = vmatpush.msra.mxu0 0.0
        %2644 = vmatpush.msra.mxu0 %v2616
        %2645 = vmatpush.msra.mxu0 %v2615
        %2646 = vmatpush.msra.mxu0 %v2614
        %2647 = vmatpush.msra.mxu0 %v2613
        %2648 = vmatmul.f32.gmra.mxu0 %v2630
        %v2649 = vpop.f32.mrf.mxu0
        %v2650 = vadd.f32 0.0, %v2649
        %2651 = vdwg.mxu0
        %2652 = vmatpush.msra.mxu0 0.0
        %2653 = vmatpush.msra.mxu0 0.0
        %2654 = vmatpush.msra.mxu0 0.0
        %2655 = vmatpush.msra.mxu0 0.0
        %2656 = vmatpush.msra.mxu0 0.0
        %2657 = vmatpush.msra.mxu0 0.0
        %2658 = vmatpush.msra.mxu0 0.0
        %2659 = vmatpush.msra.mxu0 0.0
        %2660 = vmatpush.msra.mxu0 0.0
        %2661 = vmatpush.msra.mxu0 0.0
        %2662 = vmatpush.msra.mxu0 0.0
        %2663 = vmatpush.msra.mxu0 0.0
        %2664 = vmatpush.msra.mxu0 %v2620
        %2665 = vmatpush.msra.mxu0 %v2619
        %2666 = vmatpush.msra.mxu0 %v2618
        %2667 = vmatpush.msra.mxu0 %v2617
        %2668 = vmatmul.f32.gmra.mxu0 %v2630
        %v2669 = vpop.f32.mrf.mxu0
        %v2670 = vadd.f32 0.0, %v2669
        %2671 = vdwg.mxu0
        %2672 = vmatpush.msra.mxu0 0.0
        %2673 = vmatpush.msra.mxu0 0.0
        %2674 = vmatpush.msra.mxu0 0.0
        %2675 = vmatpush.msra.mxu0 0.0
        %2676 = vmatpush.msra.mxu0 0.0
        %2677 = vmatpush.msra.mxu0 0.0
        %2678 = vmatpush.msra.mxu0 0.0
        %2679 = vmatpush.msra.mxu0 0.0
        %2680 = vmatpush.msra.mxu0 0.0
        %2681 = vmatpush.msra.mxu0 0.0
        %2682 = vmatpush.msra.mxu0 0.0
        %2683 = vmatpush.msra.mxu0 0.0
        %2684 = vmatpush.msra.mxu0 %v2624
        %2685 = vmatpush.msra.mxu0 %v2623
        %2686 = vmatpush.msra.mxu0 %v2622
        %2687 = vmatpush.msra.mxu0 %v2621
        %2688 = vmatmul.f32.gmra.mxu0 %v2630
        %v2689 = vpop.f32.mrf.mxu0
        %v2690 = vadd.f32 0.0, %v2689
        %2691 = vdwg.mxu0
        %2692 = vmatpush.msra.mxu0 0.0
        %2693 = vmatpush.msra.mxu0 0.0
        %2694 = vmatpush.msra.mxu0 0.0
        %2695 = vmatpush.msra.mxu0 0.0
        %2696 = vmatpush.msra.mxu0 0.0
        %2697 = vmatpush.msra.mxu0 0.0
        %2698 = vmatpush.msra.mxu0 0.0
        %2699 = vmatpush.msra.mxu0 0.0
        %2700 = vmatpush.msra.mxu0 0.0
        %2701 = vmatpush.msra.mxu0 0.0
        %2702 = vmatpush.msra.mxu0 0.0
        %2703 = vmatpush.msra.mxu0 0.0
        %2704 = vmatpush.msra.mxu0 %v2628
        %2705 = vmatpush.msra.mxu0 %v2627
        %2706 = vmatpush.msra.mxu0 %v2626
        %2707 = vmatpush.msra.mxu0 %v2625
        %2708 = vmatmul.f32.gmra.mxu0 %v2630
        %v2709 = vpop.f32.mrf.mxu0
        %v2710 = vadd.f32 0.0, %v2709
        %2711 = vdwg.mxu0
        %v2712 = vadd.f32 %v2609, %v2650
        %v2713 = vadd.f32 %v2610, %v2670
        %v2714 = vadd.f32 %v2611, %v2690
        %v2715 = vadd.f32 %v2612, %v2710
        %v2716 = vxor.u32 %v2712, 2147483648
        %v2717 = vmul.f32 %v2716, 1.442695
        %v2718 = vpow.pop %v2717
        %v2719 = vadd.f32 %v2718, 1.0
        %v2720 = vrcp.pop %v2719
        %v2721 = vmul.f32 %v2719, %v2720
        %v2722 = vsub.f32 1.0, %v2721
        %v2723 = vmul.f32 %v2720, %v2722
        %v2724 = vadd.f32 %v2720, %v2723
        %vm2725 = vweird.f32 %v2719
        %vm2726 = vweird.f32 %v2720
        %vm2727 = vmor %vm2725, %vm2726
        %v2728 = vsel %vm2727, %v2720, %v2724
        %v2729 = vand.u32 2147483647, %v2719
        %vm2730 = vcmp.eq.f32.partialorder %v2729, 8.507059e+37
        %v2731 = vand.u32 %v2719, 2147483648
        %v2732 = vor.u32 1.1754944e-38, %v2731
        %v2733 = vsel %vm2730, %v2732, %v2728
        %v2734 = vmul.f32 1.0, %v2733
        %v2735 = vxor.u32 %v2713, 2147483648
        %v2736 = vmul.f32 %v2735, 1.442695
        %v2737 = vpow.pop %v2736
        %v2738 = vadd.f32 %v2737, 1.0
        %v2739 = vrcp.pop %v2738
        %v2740 = vmul.f32 %v2738, %v2739
        %v2741 = vsub.f32 1.0, %v2740
        %v2742 = vmul.f32 %v2739, %v2741
        %v2743 = vadd.f32 %v2739, %v2742
        %vm2744 = vweird.f32 %v2738
        %vm2745 = vweird.f32 %v2739
        %vm2746 = vmor %vm2744, %vm2745
        %v2747 = vsel %vm2746, %v2739, %v2743
        %v2748 = vand.u32 2147483647, %v2738
        %vm2749 = vcmp.eq.f32.partialorder %v2748, 8.507059e+37
        %v2750 = vand.u32 %v2738, 2147483648
        %v2751 = vor.u32 1.1754944e-38, %v2750
        %v2752 = vsel %vm2749, %v2751, %v2747
        %v2753 = vmul.f32 1.0, %v2752
        %v2754 = vtanh.pop %v2714
        %v2755 = vxor.u32 %v2715, 2147483648
        %v2756 = vmul.f32 %v2755, 1.442695
        %v2757 = vpow.pop %v2756
        %v2758 = vadd.f32 %v2757, 1.0
        %v2759 = vrcp.pop %v2758
        %v2760 = vmul.f32 %v2758, %v2759
        %v2761 = vsub.f32 1.0, %v2760
        %v2762 = vmul.f32 %v2759, %v2761
        %v2763 = vadd.f32 %v2759, %v2762
        %vm2764 = vweird.f32 %v2758
        %vm2765 = vweird.f32 %v2759
        %vm2766 = vmor %vm2764, %vm2765
        %v2767 = vsel %vm2766, %v2759, %v2763
        %v2768 = vand.u32 2147483647, %v2758
        %vm2769 = vcmp.eq.f32.partialorder %v2768, 8.507059e+37
        %v2770 = vand.u32 %v2758, 2147483648
        %v2771 = vor.u32 1.1754944e-38, %v2770
        %v2772 = vsel %vm2769, %v2771, %v2767
        %v2773 = vmul.f32 1.0, %v2772
        %v2774 = vmul.f32 %v2753, 0.0
        %v2775 = vmul.f32 %v2734, %v2754
        %v2776 = vadd.f32 %v2774, %v2775
        %v2777 = vtanh.pop %v2776
        %v2778 = vmul.f32 %v2773, %v2777
        %v2779 = vld [vmem:[%s17] sm:$0xff]
        %v2780 = vld [vmem:[%s17 + $0x8] sm:$0xff]
        %v2781 = vld [vmem:[%s17 + $0x10] sm:$0xff]
        %v2782 = vld [vmem:[%s17 + $0x18] sm:$0xff]
        %v2783 = vld [vmem:[%s17 + $0x20] sm:$0xff]
        %v2784 = vld [vmem:[%s17 + $0x28] sm:$0xff]
        %v2785 = vld [vmem:[%s17 + $0x30] sm:$0xff]
        %v2786 = vld [vmem:[%s17 + $0x38] sm:$0xff]
        %v2787 = vld [vmem:[%s17 + $0x40] sm:$0xff]
        %v2788 = vld [vmem:[%s17 + $0x48] sm:$0xff]
        %v2789 = vld [vmem:[%s17 + $0x50] sm:$0xff]
        %v2790 = vld [vmem:[%s17 + $0x58] sm:$0xff]
        %v2791 = vld [vmem:[%s17 + $0x60] sm:$0xff]
        %v2792 = vld [vmem:[%s17 + $0x68] sm:$0xff]
        %v2793 = vld [vmem:[%s17 + $0x70] sm:$0xff]
        %v2794 = vld [vmem:[%s17 + $0x78] sm:$0xff]
        %v2796 = vsel %vm683, %v2778, 0
        %2798 = vmatpush.msra.mxu0 0.0
        %2799 = vmatpush.msra.mxu0 0.0
        %2800 = vmatpush.msra.mxu0 0.0
        %2801 = vmatpush.msra.mxu0 0.0
        %2802 = vmatpush.msra.mxu0 0.0
        %2803 = vmatpush.msra.mxu0 0.0
        %2804 = vmatpush.msra.mxu0 0.0
        %2805 = vmatpush.msra.mxu0 0.0
        %2806 = vmatpush.msra.mxu0 0.0
        %2807 = vmatpush.msra.mxu0 0.0
        %2808 = vmatpush.msra.mxu0 0.0
        %2809 = vmatpush.msra.mxu0 0.0
        %2810 = vmatpush.msra.mxu0 %v2782
        %2811 = vmatpush.msra.mxu0 %v2781
        %2812 = vmatpush.msra.mxu0 %v2780
        %2813 = vmatpush.msra.mxu0 %v2779
        %2814 = vmatmul.f32.gmra.mxu0 %v2796
        %v2815 = vpop.f32.mrf.mxu0
        %v2816 = vadd.f32 0.0, %v2815
        %2817 = vdwg.mxu0
        %2818 = vmatpush.msra.mxu0 0.0
        %2819 = vmatpush.msra.mxu0 0.0
        %2820 = vmatpush.msra.mxu0 0.0
        %2821 = vmatpush.msra.mxu0 0.0
        %2822 = vmatpush.msra.mxu0 0.0
        %2823 = vmatpush.msra.mxu0 0.0
        %2824 = vmatpush.msra.mxu0 0.0
        %2825 = vmatpush.msra.mxu0 0.0
        %2826 = vmatpush.msra.mxu0 0.0
        %2827 = vmatpush.msra.mxu0 0.0
        %2828 = vmatpush.msra.mxu0 0.0
        %2829 = vmatpush.msra.mxu0 0.0
        %2830 = vmatpush.msra.mxu0 %v2786
        %2831 = vmatpush.msra.mxu0 %v2785
        %2832 = vmatpush.msra.mxu0 %v2784
        %2833 = vmatpush.msra.mxu0 %v2783
        %2834 = vmatmul.f32.gmra.mxu0 %v2796
        %v2835 = vpop.f32.mrf.mxu0
        %v2836 = vadd.f32 0.0, %v2835
        %2837 = vdwg.mxu0
        %2838 = vmatpush.msra.mxu0 0.0
        %2839 = vmatpush.msra.mxu0 0.0
        %2840 = vmatpush.msra.mxu0 0.0
        %2841 = vmatpush.msra.mxu0 0.0
        %2842 = vmatpush.msra.mxu0 0.0
        %2843 = vmatpush.msra.mxu0 0.0
        %2844 = vmatpush.msra.mxu0 0.0
        %2845 = vmatpush.msra.mxu0 0.0
        %2846 = vmatpush.msra.mxu0 0.0
        %2847 = vmatpush.msra.mxu0 0.0
        %2848 = vmatpush.msra.mxu0 0.0
        %2849 = vmatpush.msra.mxu0 0.0
        %2850 = vmatpush.msra.mxu0 %v2790
        %2851 = vmatpush.msra.mxu0 %v2789
        %2852 = vmatpush.msra.mxu0 %v2788
        %2853 = vmatpush.msra.mxu0 %v2787
        %2854 = vmatmul.f32.gmra.mxu0 %v2796
        %v2855 = vpop.f32.mrf.mxu0
        %v2856 = vadd.f32 0.0, %v2855
        %2857 = vdwg.mxu0
        %2858 = vmatpush.msra.mxu0 0.0
        %2859 = vmatpush.msra.mxu0 0.0
        %2860 = vmatpush.msra.mxu0 0.0
        %2861 = vmatpush.msra.mxu0 0.0
        %2862 = vmatpush.msra.mxu0 0.0
        %2863 = vmatpush.msra.mxu0 0.0
        %2864 = vmatpush.msra.mxu0 0.0
        %2865 = vmatpush.msra.mxu0 0.0
        %2866 = vmatpush.msra.mxu0 0.0
        %2867 = vmatpush.msra.mxu0 0.0
        %2868 = vmatpush.msra.mxu0 0.0
        %2869 = vmatpush.msra.mxu0 0.0
        %2870 = vmatpush.msra.mxu0 %v2794
        %2871 = vmatpush.msra.mxu0 %v2793
        %2872 = vmatpush.msra.mxu0 %v2792
        %2873 = vmatpush.msra.mxu0 %v2791
        %2874 = vmatmul.f32.gmra.mxu0 %v2796
        %v2875 = vpop.f32.mrf.mxu0
        %v2876 = vadd.f32 0.0, %v2875
        %2877 = vdwg.mxu0
        %v2882 = vrot.slane %v2816, 7
        %v2883 = vrot.slane %v2836, 7
        %v2884 = vrot.slane %v2856, 7
        %v2885 = vrot.slane %v2876, 7
        %v2890 = vadd.f32 %v2609, %v2882
        %v2891 = vadd.f32 %v2610, %v2883
        %v2892 = vadd.f32 %v2611, %v2884
        %v2893 = vadd.f32 %v2612, %v2885
        %v2894 = vxor.u32 %v2890, 2147483648
        %v2895 = vmul.f32 %v2894, 1.442695
        %v2896 = vpow.pop %v2895
        %v2897 = vadd.f32 %v2896, 1.0
        %v2898 = vrcp.pop %v2897
        %v2899 = vmul.f32 %v2897, %v2898
        %v2900 = vsub.f32 1.0, %v2899
        %v2901 = vmul.f32 %v2898, %v2900
        %v2902 = vadd.f32 %v2898, %v2901
        %vm2903 = vweird.f32 %v2897
        %vm2904 = vweird.f32 %v2898
        %vm2905 = vmor %vm2903, %vm2904
        %v2906 = vsel %vm2905, %v2898, %v2902
        %v2907 = vand.u32 2147483647, %v2897
        %vm2908 = vcmp.eq.f32.partialorder %v2907, 8.507059e+37
        %v2909 = vand.u32 %v2897, 2147483648
        %v2910 = vor.u32 1.1754944e-38, %v2909
        %v2911 = vsel %vm2908, %v2910, %v2906
        %v2912 = vmul.f32 1.0, %v2911
        %v2913 = vxor.u32 %v2891, 2147483648
        %v2914 = vmul.f32 %v2913, 1.442695
        %v2915 = vpow.pop %v2914
        %v2916 = vadd.f32 %v2915, 1.0
        %v2917 = vrcp.pop %v2916
        %v2918 = vmul.f32 %v2916, %v2917
        %v2919 = vsub.f32 1.0, %v2918
        %v2920 = vmul.f32 %v2917, %v2919
        %v2921 = vadd.f32 %v2917, %v2920
        %vm2922 = vweird.f32 %v2916
        %vm2923 = vweird.f32 %v2917
        %vm2924 = vmor %vm2922, %vm2923
        %v2925 = vsel %vm2924, %v2917, %v2921
        %v2926 = vand.u32 2147483647, %v2916
        %vm2927 = vcmp.eq.f32.partialorder %v2926, 8.507059e+37
        %v2928 = vand.u32 %v2916, 2147483648
        %v2929 = vor.u32 1.1754944e-38, %v2928
        %v2930 = vsel %vm2927, %v2929, %v2925
        %v2931 = vmul.f32 1.0, %v2930
        %v2932 = vtanh.pop %v2892
        %v2933 = vxor.u32 %v2893, 2147483648
        %v2934 = vmul.f32 %v2933, 1.442695
        %v2935 = vpow.pop %v2934
        %v2936 = vadd.f32 %v2935, 1.0
        %v2937 = vrcp.pop %v2936
        %v2938 = vmul.f32 %v2936, %v2937
        %v2939 = vsub.f32 1.0, %v2938
        %v2940 = vmul.f32 %v2937, %v2939
        %v2941 = vadd.f32 %v2937, %v2940
        %vm2942 = vweird.f32 %v2936
        %vm2943 = vweird.f32 %v2937
        %vm2944 = vmor %vm2942, %vm2943
        %v2945 = vsel %vm2944, %v2937, %v2941
        %v2946 = vand.u32 2147483647, %v2936
        %vm2947 = vcmp.eq.f32.partialorder %v2946, 8.507059e+37
        %v2948 = vand.u32 %v2936, 2147483648
        %v2949 = vor.u32 1.1754944e-38, %v2948
        %v2950 = vsel %vm2947, %v2949, %v2945
        %v2951 = vmul.f32 1.0, %v2950
        %v2953 = vrot.slane %v2776, 7
        %v2955 = vmul.f32 %v2931, %v2953
        %v2956 = vmul.f32 %v2912, %v2932
        %v2957 = vadd.f32 %v2955, %v2956
        %v2958 = vtanh.pop %v2957
        %v2959 = vmul.f32 %v2951, %v2958
        %v2960 = vld [vmem:[%s17] sm:$0xff]
        %v2961 = vld [vmem:[%s17 + $0x8] sm:$0xff]
        %v2962 = vld [vmem:[%s17 + $0x10] sm:$0xff]
        %v2963 = vld [vmem:[%s17 + $0x18] sm:$0xff]
        %v2964 = vld [vmem:[%s17 + $0x20] sm:$0xff]
        %v2965 = vld [vmem:[%s17 + $0x28] sm:$0xff]
        %v2966 = vld [vmem:[%s17 + $0x30] sm:$0xff]
        %v2967 = vld [vmem:[%s17 + $0x38] sm:$0xff]
        %v2968 = vld [vmem:[%s17 + $0x40] sm:$0xff]
        %v2969 = vld [vmem:[%s17 + $0x48] sm:$0xff]
        %v2970 = vld [vmem:[%s17 + $0x50] sm:$0xff]
        %v2971 = vld [vmem:[%s17 + $0x58] sm:$0xff]
        %v2972 = vld [vmem:[%s17 + $0x60] sm:$0xff]
        %v2973 = vld [vmem:[%s17 + $0x68] sm:$0xff]
        %v2974 = vld [vmem:[%s17 + $0x70] sm:$0xff]
        %v2975 = vld [vmem:[%s17 + $0x78] sm:$0xff]
        %v2977 = vrot.slane %v2959, 1
        %v2978 = vsel %vm683, %v2977, 0
        %2980 = vmatpush.msra.mxu0 0.0
        %2981 = vmatpush.msra.mxu0 0.0
        %2982 = vmatpush.msra.mxu0 0.0
        %2983 = vmatpush.msra.mxu0 0.0
        %2984 = vmatpush.msra.mxu0 0.0
        %2985 = vmatpush.msra.mxu0 0.0
        %2986 = vmatpush.msra.mxu0 0.0
        %2987 = vmatpush.msra.mxu0 0.0
        %2988 = vmatpush.msra.mxu0 0.0
        %2989 = vmatpush.msra.mxu0 0.0
        %2990 = vmatpush.msra.mxu0 0.0
        %2991 = vmatpush.msra.mxu0 0.0
        %2992 = vmatpush.msra.mxu0 %v2963
        %2993 = vmatpush.msra.mxu0 %v2962
        %2994 = vmatpush.msra.mxu0 %v2961
        %2995 = vmatpush.msra.mxu0 %v2960
        %2996 = vmatmul.f32.gmra.mxu0 %v2978
        %v2997 = vpop.f32.mrf.mxu0
        %v2998 = vadd.f32 0.0, %v2997
        %2999 = vdwg.mxu0
        %3000 = vmatpush.msra.mxu0 0.0
        %3001 = vmatpush.msra.mxu0 0.0
        %3002 = vmatpush.msra.mxu0 0.0
        %3003 = vmatpush.msra.mxu0 0.0
        %3004 = vmatpush.msra.mxu0 0.0
        %3005 = vmatpush.msra.mxu0 0.0
        %3006 = vmatpush.msra.mxu0 0.0
        %3007 = vmatpush.msra.mxu0 0.0
        %3008 = vmatpush.msra.mxu0 0.0
        %3009 = vmatpush.msra.mxu0 0.0
        %3010 = vmatpush.msra.mxu0 0.0
        %3011 = vmatpush.msra.mxu0 0.0
        %3012 = vmatpush.msra.mxu0 %v2967
        %3013 = vmatpush.msra.mxu0 %v2966
        %3014 = vmatpush.msra.mxu0 %v2965
        %3015 = vmatpush.msra.mxu0 %v2964
        %3016 = vmatmul.f32.gmra.mxu0 %v2978
        %v3017 = vpop.f32.mrf.mxu0
        %v3018 = vadd.f32 0.0, %v3017
        %3019 = vdwg.mxu0
        %3020 = vmatpush.msra.mxu0 0.0
        %3021 = vmatpush.msra.mxu0 0.0
        %3022 = vmatpush.msra.mxu0 0.0
        %3023 = vmatpush.msra.mxu0 0.0
        %3024 = vmatpush.msra.mxu0 0.0
        %3025 = vmatpush.msra.mxu0 0.0
        %3026 = vmatpush.msra.mxu0 0.0
        %3027 = vmatpush.msra.mxu0 0.0
        %3028 = vmatpush.msra.mxu0 0.0
        %3029 = vmatpush.msra.mxu0 0.0
        %3030 = vmatpush.msra.mxu0 0.0
        %3031 = vmatpush.msra.mxu0 0.0
        %3032 = vmatpush.msra.mxu0 %v2971
        %3033 = vmatpush.msra.mxu0 %v2970
        %3034 = vmatpush.msra.mxu0 %v2969
        %3035 = vmatpush.msra.mxu0 %v2968
        %3036 = vmatmul.f32.gmra.mxu0 %v2978
        %v3037 = vpop.f32.mrf.mxu0
        %v3038 = vadd.f32 0.0, %v3037
        %3039 = vdwg.mxu0
        %3040 = vmatpush.msra.mxu0 0.0
        %3041 = vmatpush.msra.mxu0 0.0
        %3042 = vmatpush.msra.mxu0 0.0
        %3043 = vmatpush.msra.mxu0 0.0
        %3044 = vmatpush.msra.mxu0 0.0
        %3045 = vmatpush.msra.mxu0 0.0
        %3046 = vmatpush.msra.mxu0 0.0
        %3047 = vmatpush.msra.mxu0 0.0
        %3048 = vmatpush.msra.mxu0 0.0
        %3049 = vmatpush.msra.mxu0 0.0
        %3050 = vmatpush.msra.mxu0 0.0
        %3051 = vmatpush.msra.mxu0 0.0
        %3052 = vmatpush.msra.mxu0 %v2975
        %3053 = vmatpush.msra.mxu0 %v2974
        %3054 = vmatpush.msra.mxu0 %v2973
        %3055 = vmatpush.msra.mxu0 %v2972
        %3056 = vmatmul.f32.gmra.mxu0 %v2978
        %v3057 = vpop.f32.mrf.mxu0
        %v3058 = vadd.f32 0.0, %v3057
        %3059 = vdwg.mxu0
        %v3064 = vrot.slane %v2998, 6
        %v3065 = vrot.slane %v3018, 6
        %v3066 = vrot.slane %v3038, 6
        %v3067 = vrot.slane %v3058, 6
        %v3072 = vadd.f32 %v2609, %v3064
        %v3073 = vadd.f32 %v2610, %v3065
        %v3074 = vadd.f32 %v2611, %v3066
        %v3075 = vadd.f32 %v2612, %v3067
        %v3076 = vxor.u32 %v3072, 2147483648
        %v3077 = vmul.f32 %v3076, 1.442695
        %v3078 = vpow.pop %v3077
        %v3079 = vadd.f32 %v3078, 1.0
        %v3080 = vrcp.pop %v3079
        %v3081 = vmul.f32 %v3079, %v3080
        %v3082 = vsub.f32 1.0, %v3081
        %v3083 = vmul.f32 %v3080, %v3082
        %v3084 = vadd.f32 %v3080, %v3083
        %vm3085 = vweird.f32 %v3079
        %vm3086 = vweird.f32 %v3080
        %vm3087 = vmor %vm3085, %vm3086
        %v3088 = vsel %vm3087, %v3080, %v3084
        %v3089 = vand.u32 2147483647, %v3079
        %vm3090 = vcmp.eq.f32.partialorder %v3089, 8.507059e+37
        %v3091 = vand.u32 %v3079, 2147483648
        %v3092 = vor.u32 1.1754944e-38, %v3091
        %v3093 = vsel %vm3090, %v3092, %v3088
        %v3094 = vmul.f32 1.0, %v3093
        %v3095 = vxor.u32 %v3073, 2147483648
        %v3096 = vmul.f32 %v3095, 1.442695
        %v3097 = vpow.pop %v3096
        %v3098 = vadd.f32 %v3097, 1.0
        %v3099 = vrcp.pop %v3098
        %v3100 = vmul.f32 %v3098, %v3099
        %v3101 = vsub.f32 1.0, %v3100
        %v3102 = vmul.f32 %v3099, %v3101
        %v3103 = vadd.f32 %v3099, %v3102
        %vm3104 = vweird.f32 %v3098
        %vm3105 = vweird.f32 %v3099
        %vm3106 = vmor %vm3104, %vm3105
        %v3107 = vsel %vm3106, %v3099, %v3103
        %v3108 = vand.u32 2147483647, %v3098
        %vm3109 = vcmp.eq.f32.partialorder %v3108, 8.507059e+37
        %v3110 = vand.u32 %v3098, 2147483648
        %v3111 = vor.u32 1.1754944e-38, %v3110
        %v3112 = vsel %vm3109, %v3111, %v3107
        %v3113 = vmul.f32 1.0, %v3112
        %v3114 = vtanh.pop %v3074
        %v3115 = vxor.u32 %v3075, 2147483648
        %v3116 = vmul.f32 %v3115, 1.442695
        %v3117 = vpow.pop %v3116
        %v3118 = vadd.f32 %v3117, 1.0
        %v3119 = vrcp.pop %v3118
        %v3120 = vmul.f32 %v3118, %v3119
        %v3121 = vsub.f32 1.0, %v3120
        %v3122 = vmul.f32 %v3119, %v3121
        %v3123 = vadd.f32 %v3119, %v3122
        %vm3124 = vweird.f32 %v3118
        %vm3125 = vweird.f32 %v3119
        %vm3126 = vmor %vm3124, %vm3125
        %v3127 = vsel %vm3126, %v3119, %v3123
        %v3128 = vand.u32 2147483647, %v3118
        %vm3129 = vcmp.eq.f32.partialorder %v3128, 8.507059e+37
        %v3130 = vand.u32 %v3118, 2147483648
        %v3131 = vor.u32 1.1754944e-38, %v3130
        %v3132 = vsel %vm3129, %v3131, %v3127
        %v3133 = vmul.f32 1.0, %v3132
        %v3135 = vrot.slane %v2957, 7
        %v3137 = vmul.f32 %v3113, %v3135
        %v3138 = vmul.f32 %v3094, %v3114
        %v3139 = vadd.f32 %v3137, %v3138
        %v3140 = vtanh.pop %v3139
        %v3141 = vmul.f32 %v3133, %v3140
        %v3142 = vld [vmem:[%s17] sm:$0xff]
        %v3143 = vld [vmem:[%s17 + $0x8] sm:$0xff]
        %v3144 = vld [vmem:[%s17 + $0x10] sm:$0xff]
        %v3145 = vld [vmem:[%s17 + $0x18] sm:$0xff]
        %v3146 = vld [vmem:[%s17 + $0x20] sm:$0xff]
        %v3147 = vld [vmem:[%s17 + $0x28] sm:$0xff]
        %v3148 = vld [vmem:[%s17 + $0x30] sm:$0xff]
        %v3149 = vld [vmem:[%s17 + $0x38] sm:$0xff]
        %v3150 = vld [vmem:[%s17 + $0x40] sm:$0xff]
        %v3151 = vld [vmem:[%s17 + $0x48] sm:$0xff]
        %v3152 = vld [vmem:[%s17 + $0x50] sm:$0xff]
        %v3153 = vld [vmem:[%s17 + $0x58] sm:$0xff]
        %v3154 = vld [vmem:[%s17 + $0x60] sm:$0xff]
        %v3155 = vld [vmem:[%s17 + $0x68] sm:$0xff]
        %v3156 = vld [vmem:[%s17 + $0x70] sm:$0xff]
        %v3157 = vld [vmem:[%s17 + $0x78] sm:$0xff]
        %v3159 = vrot.slane %v3141, 2
        %v3160 = vsel %vm683, %v3159, 0
        %3162 = vmatpush.msra.mxu0 0.0
        %3163 = vmatpush.msra.mxu0 0.0
        %3164 = vmatpush.msra.mxu0 0.0
        %3165 = vmatpush.msra.mxu0 0.0
        %3166 = vmatpush.msra.mxu0 0.0
        %3167 = vmatpush.msra.mxu0 0.0
        %3168 = vmatpush.msra.mxu0 0.0
        %3169 = vmatpush.msra.mxu0 0.0
        %3170 = vmatpush.msra.mxu0 0.0
        %3171 = vmatpush.msra.mxu0 0.0
        %3172 = vmatpush.msra.mxu0 0.0
        %3173 = vmatpush.msra.mxu0 0.0
        %3174 = vmatpush.msra.mxu0 %v3145
        %3175 = vmatpush.msra.mxu0 %v3144
        %3176 = vmatpush.msra.mxu0 %v3143
        %3177 = vmatpush.msra.mxu0 %v3142
        %3178 = vmatmul.f32.gmra.mxu0 %v3160
        %v3179 = vpop.f32.mrf.mxu0
        %v3180 = vadd.f32 0.0, %v3179
        %3181 = vdwg.mxu0
        %3182 = vmatpush.msra.mxu0 0.0
        %3183 = vmatpush.msra.mxu0 0.0
        %3184 = vmatpush.msra.mxu0 0.0
        %3185 = vmatpush.msra.mxu0 0.0
        %3186 = vmatpush.msra.mxu0 0.0
        %3187 = vmatpush.msra.mxu0 0.0
        %3188 = vmatpush.msra.mxu0 0.0
        %3189 = vmatpush.msra.mxu0 0.0
        %3190 = vmatpush.msra.mxu0 0.0
        %3191 = vmatpush.msra.mxu0 0.0
        %3192 = vmatpush.msra.mxu0 0.0
        %3193 = vmatpush.msra.mxu0 0.0
        %3194 = vmatpush.msra.mxu0 %v3149
        %3195 = vmatpush.msra.mxu0 %v3148
        %3196 = vmatpush.msra.mxu0 %v3147
        %3197 = vmatpush.msra.mxu0 %v3146
        %3198 = vmatmul.f32.gmra.mxu0 %v3160
        %v3199 = vpop.f32.mrf.mxu0
        %v3200 = vadd.f32 0.0, %v3199
        %3201 = vdwg.mxu0
        %3202 = vmatpush.msra.mxu0 0.0
        %3203 = vmatpush.msra.mxu0 0.0
        %3204 = vmatpush.msra.mxu0 0.0
        %3205 = vmatpush.msra.mxu0 0.0
        %3206 = vmatpush.msra.mxu0 0.0
        %3207 = vmatpush.msra.mxu0 0.0
        %3208 = vmatpush.msra.mxu0 0.0
        %3209 = vmatpush.msra.mxu0 0.0
        %3210 = vmatpush.msra.mxu0 0.0
        %3211 = vmatpush.msra.mxu0 0.0
        %3212 = vmatpush.msra.mxu0 0.0
        %3213 = vmatpush.msra.mxu0 0.0
        %3214 = vmatpush.msra.mxu0 %v3153
        %3215 = vmatpush.msra.mxu0 %v3152
        %3216 = vmatpush.msra.mxu0 %v3151
        %3217 = vmatpush.msra.mxu0 %v3150
        %3218 = vmatmul.f32.gmra.mxu0 %v3160
        %v3219 = vpop.f32.mrf.mxu0
        %v3220 = vadd.f32 0.0, %v3219
        %3221 = vdwg.mxu0
        %3222 = vmatpush.msra.mxu0 0.0
        %3223 = vmatpush.msra.mxu0 0.0
        %3224 = vmatpush.msra.mxu0 0.0
        %3225 = vmatpush.msra.mxu0 0.0
        %3226 = vmatpush.msra.mxu0 0.0
        %3227 = vmatpush.msra.mxu0 0.0
        %3228 = vmatpush.msra.mxu0 0.0
        %3229 = vmatpush.msra.mxu0 0.0
        %3230 = vmatpush.msra.mxu0 0.0
        %3231 = vmatpush.msra.mxu0 0.0
        %3232 = vmatpush.msra.mxu0 0.0
        %3233 = vmatpush.msra.mxu0 0.0
        %3234 = vmatpush.msra.mxu0 %v3157
        %3235 = vmatpush.msra.mxu0 %v3156
        %3236 = vmatpush.msra.mxu0 %v3155
        %3237 = vmatpush.msra.mxu0 %v3154
        %3238 = vmatmul.f32.gmra.mxu0 %v3160
        %v3239 = vpop.f32.mrf.mxu0
        %v3240 = vadd.f32 0.0, %v3239
        %3241 = vdwg.mxu0
        %v3246 = vrot.slane %v3180, 5
        %v3247 = vrot.slane %v3200, 5
        %v3248 = vrot.slane %v3220, 5
        %v3249 = vrot.slane %v3240, 5
        %v3254 = vadd.f32 %v2609, %v3246
        %v3255 = vadd.f32 %v2610, %v3247
        %v3256 = vadd.f32 %v2611, %v3248
        %v3257 = vadd.f32 %v2612, %v3249
        %v3258 = vxor.u32 %v3254, 2147483648
        %v3259 = vmul.f32 %v3258, 1.442695
        %v3260 = vpow.pop %v3259
        %v3261 = vadd.f32 %v3260, 1.0
        %v3262 = vrcp.pop %v3261
        %v3263 = vmul.f32 %v3261, %v3262
        %v3264 = vsub.f32 1.0, %v3263
        %v3265 = vmul.f32 %v3262, %v3264
        %v3266 = vadd.f32 %v3262, %v3265
        %vm3267 = vweird.f32 %v3261
        %vm3268 = vweird.f32 %v3262
        %vm3269 = vmor %vm3267, %vm3268
        %v3270 = vsel %vm3269, %v3262, %v3266
        %v3271 = vand.u32 2147483647, %v3261
        %vm3272 = vcmp.eq.f32.partialorder %v3271, 8.507059e+37
        %v3273 = vand.u32 %v3261, 2147483648
        %v3274 = vor.u32 1.1754944e-38, %v3273
        %v3275 = vsel %vm3272, %v3274, %v3270
        %v3276 = vmul.f32 1.0, %v3275
        %v3277 = vxor.u32 %v3255, 2147483648
        %v3278 = vmul.f32 %v3277, 1.442695
        %v3279 = vpow.pop %v3278
        %v3280 = vadd.f32 %v3279, 1.0
        %v3281 = vrcp.pop %v3280
        %v3282 = vmul.f32 %v3280, %v3281
        %v3283 = vsub.f32 1.0, %v3282
        %v3284 = vmul.f32 %v3281, %v3283
        %v3285 = vadd.f32 %v3281, %v3284
        %vm3286 = vweird.f32 %v3280
        %vm3287 = vweird.f32 %v3281
        %vm3288 = vmor %vm3286, %vm3287
        %v3289 = vsel %vm3288, %v3281, %v3285
        %v3290 = vand.u32 2147483647, %v3280
        %vm3291 = vcmp.eq.f32.partialorder %v3290, 8.507059e+37
        %v3292 = vand.u32 %v3280, 2147483648
        %v3293 = vor.u32 1.1754944e-38, %v3292
        %v3294 = vsel %vm3291, %v3293, %v3289
        %v3295 = vmul.f32 1.0, %v3294
        %v3296 = vtanh.pop %v3256
        %v3297 = vxor.u32 %v3257, 2147483648
        %v3298 = vmul.f32 %v3297, 1.442695
        %v3299 = vpow.pop %v3298
        %v3300 = vadd.f32 %v3299, 1.0
        %v3301 = vrcp.pop %v3300
        %v3302 = vmul.f32 %v3300, %v3301
        %v3303 = vsub.f32 1.0, %v3302
        %v3304 = vmul.f32 %v3301, %v3303
        %v3305 = vadd.f32 %v3301, %v3304
        %vm3306 = vweird.f32 %v3300
        %vm3307 = vweird.f32 %v3301
        %vm3308 = vmor %vm3306, %vm3307
        %v3309 = vsel %vm3308, %v3301, %v3305
        %v3310 = vand.u32 2147483647, %v3300
        %vm3311 = vcmp.eq.f32.partialorder %v3310, 8.507059e+37
        %v3312 = vand.u32 %v3300, 2147483648
        %v3313 = vor.u32 1.1754944e-38, %v3312
        %v3314 = vsel %vm3311, %v3313, %v3309
        %v3315 = vmul.f32 1.0, %v3314
        %v3317 = vrot.slane %v3139, 7
        %v3319 = vmul.f32 %v3295, %v3317
        %v3320 = vmul.f32 %v3276, %v3296
        %v3321 = vadd.f32 %v3319, %v3320
        %v3322 = vtanh.pop %v3321
        %v3323 = vmul.f32 %v3315, %v3322
        %v3324 = vld [vmem:[%s17] sm:$0xff]
        %v3325 = vld [vmem:[%s17 + $0x8] sm:$0xff]
        %v3326 = vld [vmem:[%s17 + $0x10] sm:$0xff]
        %v3327 = vld [vmem:[%s17 + $0x18] sm:$0xff]
        %v3328 = vld [vmem:[%s17 + $0x20] sm:$0xff]
        %v3329 = vld [vmem:[%s17 + $0x28] sm:$0xff]
        %v3330 = vld [vmem:[%s17 + $0x30] sm:$0xff]
        %v3331 = vld [vmem:[%s17 + $0x38] sm:$0xff]
        %v3332 = vld [vmem:[%s17 + $0x40] sm:$0xff]
        %v3333 = vld [vmem:[%s17 + $0x48] sm:$0xff]
        %v3334 = vld [vmem:[%s17 + $0x50] sm:$0xff]
        %v3335 = vld [vmem:[%s17 + $0x58] sm:$0xff]
        %v3336 = vld [vmem:[%s17 + $0x60] sm:$0xff]
        %v3337 = vld [vmem:[%s17 + $0x68] sm:$0xff]
        %v3338 = vld [vmem:[%s17 + $0x70] sm:$0xff]
        %v3339 = vld [vmem:[%s17 + $0x78] sm:$0xff]
        %v3341 = vrot.slane %v3323, 3
        %v3342 = vsel %vm683, %v3341, 0
        %3344 = vmatpush.msra.mxu0 0.0
        %3345 = vmatpush.msra.mxu0 0.0
        %3346 = vmatpush.msra.mxu0 0.0
        %3347 = vmatpush.msra.mxu0 0.0
        %3348 = vmatpush.msra.mxu0 0.0
        %3349 = vmatpush.msra.mxu0 0.0
        %3350 = vmatpush.msra.mxu0 0.0
        %3351 = vmatpush.msra.mxu0 0.0
        %3352 = vmatpush.msra.mxu0 0.0
        %3353 = vmatpush.msra.mxu0 0.0
        %3354 = vmatpush.msra.mxu0 0.0
        %3355 = vmatpush.msra.mxu0 0.0
        %3356 = vmatpush.msra.mxu0 %v3327
        %3357 = vmatpush.msra.mxu0 %v3326
        %3358 = vmatpush.msra.mxu0 %v3325
        %3359 = vmatpush.msra.mxu0 %v3324
        %3360 = vmatmul.f32.gmra.mxu0 %v3342
        %v3361 = vpop.f32.mrf.mxu0
        %v3362 = vadd.f32 0.0, %v3361
        %3363 = vdwg.mxu0
        %3364 = vmatpush.msra.mxu0 0.0
        %3365 = vmatpush.msra.mxu0 0.0
        %3366 = vmatpush.msra.mxu0 0.0
        %3367 = vmatpush.msra.mxu0 0.0
        %3368 = vmatpush.msra.mxu0 0.0
        %3369 = vmatpush.msra.mxu0 0.0
        %3370 = vmatpush.msra.mxu0 0.0
        %3371 = vmatpush.msra.mxu0 0.0
        %3372 = vmatpush.msra.mxu0 0.0
        %3373 = vmatpush.msra.mxu0 0.0
        %3374 = vmatpush.msra.mxu0 0.0
        %3375 = vmatpush.msra.mxu0 0.0
        %3376 = vmatpush.msra.mxu0 %v3331
        %3377 = vmatpush.msra.mxu0 %v3330
        %3378 = vmatpush.msra.mxu0 %v3329
        %3379 = vmatpush.msra.mxu0 %v3328
        %3380 = vmatmul.f32.gmra.mxu0 %v3342
        %v3381 = vpop.f32.mrf.mxu0
        %v3382 = vadd.f32 0.0, %v3381
        %3383 = vdwg.mxu0
        %3384 = vmatpush.msra.mxu0 0.0
        %3385 = vmatpush.msra.mxu0 0.0
        %3386 = vmatpush.msra.mxu0 0.0
        %3387 = vmatpush.msra.mxu0 0.0
        %3388 = vmatpush.msra.mxu0 0.0
        %3389 = vmatpush.msra.mxu0 0.0
        %3390 = vmatpush.msra.mxu0 0.0
        %3391 = vmatpush.msra.mxu0 0.0
        %3392 = vmatpush.msra.mxu0 0.0
        %3393 = vmatpush.msra.mxu0 0.0
        %3394 = vmatpush.msra.mxu0 0.0
        %3395 = vmatpush.msra.mxu0 0.0
        %3396 = vmatpush.msra.mxu0 %v3335
        %3397 = vmatpush.msra.mxu0 %v3334
        %3398 = vmatpush.msra.mxu0 %v3333
        %3399 = vmatpush.msra.mxu0 %v3332
        %3400 = vmatmul.f32.gmra.mxu0 %v3342
        %v3401 = vpop.f32.mrf.mxu0
        %v3402 = vadd.f32 0.0, %v3401
        %3403 = vdwg.mxu0
        %3404 = vmatpush.msra.mxu0 0.0
        %3405 = vmatpush.msra.mxu0 0.0
        %3406 = vmatpush.msra.mxu0 0.0
        %3407 = vmatpush.msra.mxu0 0.0
        %3408 = vmatpush.msra.mxu0 0.0
        %3409 = vmatpush.msra.mxu0 0.0
        %3410 = vmatpush.msra.mxu0 0.0
        %3411 = vmatpush.msra.mxu0 0.0
        %3412 = vmatpush.msra.mxu0 0.0
        %3413 = vmatpush.msra.mxu0 0.0
        %3414 = vmatpush.msra.mxu0 0.0
        %3415 = vmatpush.msra.mxu0 0.0
        %3416 = vmatpush.msra.mxu0 %v3339
        %3417 = vmatpush.msra.mxu0 %v3338
        %3418 = vmatpush.msra.mxu0 %v3337
        %3419 = vmatpush.msra.mxu0 %v3336
        %3420 = vmatmul.f32.gmra.mxu0 %v3342
        %v3421 = vpop.f32.mrf.mxu0
        %v3422 = vadd.f32 0.0, %v3421
        %3423 = vdwg.mxu0
        %v3428 = vrot.slane %v3362, 4
        %v3429 = vrot.slane %v3382, 4
        %v3430 = vrot.slane %v3402, 4
        %v3431 = vrot.slane %v3422, 4
        %v3436 = vadd.f32 %v2609, %v3428
        %v3437 = vadd.f32 %v2610, %v3429
        %v3438 = vadd.f32 %v2611, %v3430
        %v3439 = vadd.f32 %v2612, %v3431
        %v3440 = vxor.u32 %v3436, 2147483648
        %v3441 = vmul.f32 %v3440, 1.442695
        %v3442 = vpow.pop %v3441
        %v3443 = vadd.f32 %v3442, 1.0
        %v3444 = vrcp.pop %v3443
        %v3445 = vmul.f32 %v3443, %v3444
        %v3446 = vsub.f32 1.0, %v3445
        %v3447 = vmul.f32 %v3444, %v3446
        %v3448 = vadd.f32 %v3444, %v3447
        %vm3449 = vweird.f32 %v3443
        %vm3450 = vweird.f32 %v3444
        %vm3451 = vmor %vm3449, %vm3450
        %v3452 = vsel %vm3451, %v3444, %v3448
        %v3453 = vand.u32 2147483647, %v3443
        %vm3454 = vcmp.eq.f32.partialorder %v3453, 8.507059e+37
        %v3455 = vand.u32 %v3443, 2147483648
        %v3456 = vor.u32 1.1754944e-38, %v3455
        %v3457 = vsel %vm3454, %v3456, %v3452
        %v3458 = vmul.f32 1.0, %v3457
        %v3459 = vxor.u32 %v3437, 2147483648
        %v3460 = vmul.f32 %v3459, 1.442695
        %v3461 = vpow.pop %v3460
        %v3462 = vadd.f32 %v3461, 1.0
        %v3463 = vrcp.pop %v3462
        %v3464 = vmul.f32 %v3462, %v3463
        %v3465 = vsub.f32 1.0, %v3464
        %v3466 = vmul.f32 %v3463, %v3465
        %v3467 = vadd.f32 %v3463, %v3466
        %vm3468 = vweird.f32 %v3462
        %vm3469 = vweird.f32 %v3463
        %vm3470 = vmor %vm3468, %vm3469
        %v3471 = vsel %vm3470, %v3463, %v3467
        %v3472 = vand.u32 2147483647, %v3462
        %vm3473 = vcmp.eq.f32.partialorder %v3472, 8.507059e+37
        %v3474 = vand.u32 %v3462, 2147483648
        %v3475 = vor.u32 1.1754944e-38, %v3474
        %v3476 = vsel %vm3473, %v3475, %v3471
        %v3477 = vmul.f32 1.0, %v3476
        %v3478 = vtanh.pop %v3438
        %v3479 = vxor.u32 %v3439, 2147483648
        %v3480 = vmul.f32 %v3479, 1.442695
        %v3481 = vpow.pop %v3480
        %v3482 = vadd.f32 %v3481, 1.0
        %v3483 = vrcp.pop %v3482
        %v3484 = vmul.f32 %v3482, %v3483
        %v3485 = vsub.f32 1.0, %v3484
        %v3486 = vmul.f32 %v3483, %v3485
        %v3487 = vadd.f32 %v3483, %v3486
        %vm3488 = vweird.f32 %v3482
        %vm3489 = vweird.f32 %v3483
        %vm3490 = vmor %vm3488, %vm3489
        %v3491 = vsel %vm3490, %v3483, %v3487
        %v3492 = vand.u32 2147483647, %v3482
        %vm3493 = vcmp.eq.f32.partialorder %v3492, 8.507059e+37
        %v3494 = vand.u32 %v3482, 2147483648
        %v3495 = vor.u32 1.1754944e-38, %v3494
        %v3496 = vsel %vm3493, %v3495, %v3491
        %v3497 = vmul.f32 1.0, %v3496
        %v3499 = vrot.slane %v3321, 7
        %v3501 = vmul.f32 %v3477, %v3499
        %v3502 = vmul.f32 %v3458, %v3478
        %v3503 = vadd.f32 %v3501, %v3502
        %v3504 = vtanh.pop %v3503
        %v3505 = vmul.f32 %v3497, %v3504
        %v3506 = vld [vmem:[%s17] sm:$0xff]
        %v3507 = vld [vmem:[%s17 + $0x8] sm:$0xff]
        %v3508 = vld [vmem:[%s17 + $0x10] sm:$0xff]
        %v3509 = vld [vmem:[%s17 + $0x18] sm:$0xff]
        %v3510 = vld [vmem:[%s17 + $0x20] sm:$0xff]
        %v3511 = vld [vmem:[%s17 + $0x28] sm:$0xff]
        %v3512 = vld [vmem:[%s17 + $0x30] sm:$0xff]
        %v3513 = vld [vmem:[%s17 + $0x38] sm:$0xff]
        %v3514 = vld [vmem:[%s17 + $0x40] sm:$0xff]
        %v3515 = vld [vmem:[%s17 + $0x48] sm:$0xff]
        %v3516 = vld [vmem:[%s17 + $0x50] sm:$0xff]
        %v3517 = vld [vmem:[%s17 + $0x58] sm:$0xff]
        %v3518 = vld [vmem:[%s17 + $0x60] sm:$0xff]
        %v3519 = vld [vmem:[%s17 + $0x68] sm:$0xff]
        %v3520 = vld [vmem:[%s17 + $0x70] sm:$0xff]
        %v3521 = vld [vmem:[%s17 + $0x78] sm:$0xff]
        %v3523 = vrot.slane %v3505, 4
        %v3524 = vsel %vm683, %v3523, 0
        %3526 = vmatpush.msra.mxu0 0.0
        %3527 = vmatpush.msra.mxu0 0.0
        %3528 = vmatpush.msra.mxu0 0.0
        %3529 = vmatpush.msra.mxu0 0.0
        %3530 = vmatpush.msra.mxu0 0.0
        %3531 = vmatpush.msra.mxu0 0.0
        %3532 = vmatpush.msra.mxu0 0.0
        %3533 = vmatpush.msra.mxu0 0.0
        %3534 = vmatpush.msra.mxu0 0.0
        %3535 = vmatpush.msra.mxu0 0.0
        %3536 = vmatpush.msra.mxu0 0.0
        %3537 = vmatpush.msra.mxu0 0.0
        %3538 = vmatpush.msra.mxu0 %v3509
        %3539 = vmatpush.msra.mxu0 %v3508
        %3540 = vmatpush.msra.mxu0 %v3507
        %3541 = vmatpush.msra.mxu0 %v3506
        %3542 = vmatmul.f32.gmra.mxu0 %v3524
        %v3543 = vpop.f32.mrf.mxu0
        %v3544 = vadd.f32 0.0, %v3543
        %3545 = vdwg.mxu0
        %3546 = vmatpush.msra.mxu0 0.0
        %3547 = vmatpush.msra.mxu0 0.0
        %3548 = vmatpush.msra.mxu0 0.0
        %3549 = vmatpush.msra.mxu0 0.0
        %3550 = vmatpush.msra.mxu0 0.0
        %3551 = vmatpush.msra.mxu0 0.0
        %3552 = vmatpush.msra.mxu0 0.0
        %3553 = vmatpush.msra.mxu0 0.0
        %3554 = vmatpush.msra.mxu0 0.0
        %3555 = vmatpush.msra.mxu0 0.0
        %3556 = vmatpush.msra.mxu0 0.0
        %3557 = vmatpush.msra.mxu0 0.0
        %3558 = vmatpush.msra.mxu0 %v3513
        %3559 = vmatpush.msra.mxu0 %v3512
        %3560 = vmatpush.msra.mxu0 %v3511
        %3561 = vmatpush.msra.mxu0 %v3510
        %3562 = vmatmul.f32.gmra.mxu0 %v3524
        %v3563 = vpop.f32.mrf.mxu0
        %v3564 = vadd.f32 0.0, %v3563
        %3565 = vdwg.mxu0
        %3566 = vmatpush.msra.mxu0 0.0
        %3567 = vmatpush.msra.mxu0 0.0
        %3568 = vmatpush.msra.mxu0 0.0
        %3569 = vmatpush.msra.mxu0 0.0
        %3570 = vmatpush.msra.mxu0 0.0
        %3571 = vmatpush.msra.mxu0 0.0
        %3572 = vmatpush.msra.mxu0 0.0
        %3573 = vmatpush.msra.mxu0 0.0
        %3574 = vmatpush.msra.mxu0 0.0
        %3575 = vmatpush.msra.mxu0 0.0
        %3576 = vmatpush.msra.mxu0 0.0
        %3577 = vmatpush.msra.mxu0 0.0
        %3578 = vmatpush.msra.mxu0 %v3517
        %3579 = vmatpush.msra.mxu0 %v3516
        %3580 = vmatpush.msra.mxu0 %v3515
        %3581 = vmatpush.msra.mxu0 %v3514
        %3582 = vmatmul.f32.gmra.mxu0 %v3524
        %v3583 = vpop.f32.mrf.mxu0
        %v3584 = vadd.f32 0.0, %v3583
        %3585 = vdwg.mxu0
        %3586 = vmatpush.msra.mxu0 0.0
        %3587 = vmatpush.msra.mxu0 0.0
        %3588 = vmatpush.msra.mxu0 0.0
        %3589 = vmatpush.msra.mxu0 0.0
        %3590 = vmatpush.msra.mxu0 0.0
        %3591 = vmatpush.msra.mxu0 0.0
        %3592 = vmatpush.msra.mxu0 0.0
        %3593 = vmatpush.msra.mxu0 0.0
        %3594 = vmatpush.msra.mxu0 0.0
        %3595 = vmatpush.msra.mxu0 0.0
        %3596 = vmatpush.msra.mxu0 0.0
        %3597 = vmatpush.msra.mxu0 0.0
        %3598 = vmatpush.msra.mxu0 %v3521
        %3599 = vmatpush.msra.mxu0 %v3520
        %3600 = vmatpush.msra.mxu0 %v3519
        %3601 = vmatpush.msra.mxu0 %v3518
        %3602 = vmatmul.f32.gmra.mxu0 %v3524
        %v3603 = vpop.f32.mrf.mxu0
        %v3604 = vadd.f32 0.0, %v3603
        %3605 = vdwg.mxu0
        %v3610 = vrot.slane %v3544, 3
        %v3611 = vrot.slane %v3564, 3
        %v3612 = vrot.slane %v3584, 3
        %v3613 = vrot.slane %v3604, 3
        %v3618 = vadd.f32 %v2609, %v3610
        %v3619 = vadd.f32 %v2610, %v3611
        %v3620 = vadd.f32 %v2611, %v3612
        %v3621 = vadd.f32 %v2612, %v3613
        %v3622 = vxor.u32 %v3618, 2147483648
        %v3623 = vmul.f32 %v3622, 1.442695
        %v3624 = vpow.pop %v3623
        %v3625 = vadd.f32 %v3624, 1.0
        %v3626 = vrcp.pop %v3625
        %v3627 = vmul.f32 %v3625, %v3626
        %v3628 = vsub.f32 1.0, %v3627
        %v3629 = vmul.f32 %v3626, %v3628
        %v3630 = vadd.f32 %v3626, %v3629
        %vm3631 = vweird.f32 %v3625
        %vm3632 = vweird.f32 %v3626
        %vm3633 = vmor %vm3631, %vm3632
        %v3634 = vsel %vm3633, %v3626, %v3630
        %v3635 = vand.u32 2147483647, %v3625
        %vm3636 = vcmp.eq.f32.partialorder %v3635, 8.507059e+37
        %v3637 = vand.u32 %v3625, 2147483648
        %v3638 = vor.u32 1.1754944e-38, %v3637
        %v3639 = vsel %vm3636, %v3638, %v3634
        %v3640 = vmul.f32 1.0, %v3639
        %v3641 = vxor.u32 %v3619, 2147483648
        %v3642 = vmul.f32 %v3641, 1.442695
        %v3643 = vpow.pop %v3642
        %v3644 = vadd.f32 %v3643, 1.0
        %v3645 = vrcp.pop %v3644
        %v3646 = vmul.f32 %v3644, %v3645
        %v3647 = vsub.f32 1.0, %v3646
        %v3648 = vmul.f32 %v3645, %v3647
        %v3649 = vadd.f32 %v3645, %v3648
        %vm3650 = vweird.f32 %v3644
        %vm3651 = vweird.f32 %v3645
        %vm3652 = vmor %vm3650, %vm3651
        %v3653 = vsel %vm3652, %v3645, %v3649
        %v3654 = vand.u32 2147483647, %v3644
        %vm3655 = vcmp.eq.f32.partialorder %v3654, 8.507059e+37
        %v3656 = vand.u32 %v3644, 2147483648
        %v3657 = vor.u32 1.1754944e-38, %v3656
        %v3658 = vsel %vm3655, %v3657, %v3653
        %v3659 = vmul.f32 1.0, %v3658
        %v3660 = vtanh.pop %v3620
        %v3661 = vxor.u32 %v3621, 2147483648
        %v3662 = vmul.f32 %v3661, 1.442695
        %v3663 = vpow.pop %v3662
        %v3664 = vadd.f32 %v3663, 1.0
        %v3665 = vrcp.pop %v3664
        %v3666 = vmul.f32 %v3664, %v3665
        %v3667 = vsub.f32 1.0, %v3666
        %v3668 = vmul.f32 %v3665, %v3667
        %v3669 = vadd.f32 %v3665, %v3668
        %vm3670 = vweird.f32 %v3664
        %vm3671 = vweird.f32 %v3665
        %vm3672 = vmor %vm3670, %vm3671
        %v3673 = vsel %vm3672, %v3665, %v3669
        %v3674 = vand.u32 2147483647, %v3664
        %vm3675 = vcmp.eq.f32.partialorder %v3674, 8.507059e+37
        %v3676 = vand.u32 %v3664, 2147483648
        %v3677 = vor.u32 1.1754944e-38, %v3676
        %v3678 = vsel %vm3675, %v3677, %v3673
        %v3679 = vmul.f32 1.0, %v3678
        %v3681 = vrot.slane %v3503, 7
        %v3683 = vmul.f32 %v3659, %v3681
        %v3684 = vmul.f32 %v3640, %v3660
        %v3685 = vadd.f32 %v3683, %v3684
        %v3686 = vtanh.pop %v3685
        %v3687 = vmul.f32 %v3679, %v3686
        %v3688 = vld [vmem:[%s17] sm:$0xff]
        %v3689 = vld [vmem:[%s17 + $0x8] sm:$0xff]
        %v3690 = vld [vmem:[%s17 + $0x10] sm:$0xff]
        %v3691 = vld [vmem:[%s17 + $0x18] sm:$0xff]
        %v3692 = vld [vmem:[%s17 + $0x20] sm:$0xff]
        %v3693 = vld [vmem:[%s17 + $0x28] sm:$0xff]
        %v3694 = vld [vmem:[%s17 + $0x30] sm:$0xff]
        %v3695 = vld [vmem:[%s17 + $0x38] sm:$0xff]
        %v3696 = vld [vmem:[%s17 + $0x40] sm:$0xff]
        %v3697 = vld [vmem:[%s17 + $0x48] sm:$0xff]
        %v3698 = vld [vmem:[%s17 + $0x50] sm:$0xff]
        %v3699 = vld [vmem:[%s17 + $0x58] sm:$0xff]
        %v3700 = vld [vmem:[%s17 + $0x60] sm:$0xff]
        %v3701 = vld [vmem:[%s17 + $0x68] sm:$0xff]
        %v3702 = vld [vmem:[%s17 + $0x70] sm:$0xff]
        %v3703 = vld [vmem:[%s17 + $0x78] sm:$0xff]
        %v3705 = vrot.slane %v3687, 5
        %v3706 = vsel %vm683, %v3705, 0
        %3708 = vmatpush.msra.mxu0 0.0
        %3709 = vmatpush.msra.mxu0 0.0
        %3710 = vmatpush.msra.mxu0 0.0
        %3711 = vmatpush.msra.mxu0 0.0
        %3712 = vmatpush.msra.mxu0 0.0
        %3713 = vmatpush.msra.mxu0 0.0
        %3714 = vmatpush.msra.mxu0 0.0
        %3715 = vmatpush.msra.mxu0 0.0
        %3716 = vmatpush.msra.mxu0 0.0
        %3717 = vmatpush.msra.mxu0 0.0
        %3718 = vmatpush.msra.mxu0 0.0
        %3719 = vmatpush.msra.mxu0 0.0
        %3720 = vmatpush.msra.mxu0 %v3691
        %3721 = vmatpush.msra.mxu0 %v3690
        %3722 = vmatpush.msra.mxu0 %v3689
        %3723 = vmatpush.msra.mxu0 %v3688
        %3724 = vmatmul.f32.gmra.mxu0 %v3706
        %v3725 = vpop.f32.mrf.mxu0
        %v3726 = vadd.f32 0.0, %v3725
        %3727 = vdwg.mxu0
        %3728 = vmatpush.msra.mxu0 0.0
        %3729 = vmatpush.msra.mxu0 0.0
        %3730 = vmatpush.msra.mxu0 0.0
        %3731 = vmatpush.msra.mxu0 0.0
        %3732 = vmatpush.msra.mxu0 0.0
        %3733 = vmatpush.msra.mxu0 0.0
        %3734 = vmatpush.msra.mxu0 0.0
        %3735 = vmatpush.msra.mxu0 0.0
        %3736 = vmatpush.msra.mxu0 0.0
        %3737 = vmatpush.msra.mxu0 0.0
        %3738 = vmatpush.msra.mxu0 0.0
        %3739 = vmatpush.msra.mxu0 0.0
        %3740 = vmatpush.msra.mxu0 %v3695
        %3741 = vmatpush.msra.mxu0 %v3694
        %3742 = vmatpush.msra.mxu0 %v3693
        %3743 = vmatpush.msra.mxu0 %v3692
        %3744 = vmatmul.f32.gmra.mxu0 %v3706
        %v3745 = vpop.f32.mrf.mxu0
        %v3746 = vadd.f32 0.0, %v3745
        %3747 = vdwg.mxu0
        %3748 = vmatpush.msra.mxu0 0.0
        %3749 = vmatpush.msra.mxu0 0.0
        %3750 = vmatpush.msra.mxu0 0.0
        %3751 = vmatpush.msra.mxu0 0.0
        %3752 = vmatpush.msra.mxu0 0.0
        %3753 = vmatpush.msra.mxu0 0.0
        %3754 = vmatpush.msra.mxu0 0.0
        %3755 = vmatpush.msra.mxu0 0.0
        %3756 = vmatpush.msra.mxu0 0.0
        %3757 = vmatpush.msra.mxu0 0.0
        %3758 = vmatpush.msra.mxu0 0.0
        %3759 = vmatpush.msra.mxu0 0.0
        %3760 = vmatpush.msra.mxu0 %v3699
        %3761 = vmatpush.msra.mxu0 %v3698
        %3762 = vmatpush.msra.mxu0 %v3697
        %3763 = vmatpush.msra.mxu0 %v3696
        %3764 = vmatmul.f32.gmra.mxu0 %v3706
        %v3765 = vpop.f32.mrf.mxu0
        %v3766 = vadd.f32 0.0, %v3765
        %3767 = vdwg.mxu0
        %3768 = vmatpush.msra.mxu0 0.0
        %3769 = vmatpush.msra.mxu0 0.0
        %3770 = vmatpush.msra.mxu0 0.0
        %3771 = vmatpush.msra.mxu0 0.0
        %3772 = vmatpush.msra.mxu0 0.0
        %3773 = vmatpush.msra.mxu0 0.0
        %3774 = vmatpush.msra.mxu0 0.0
        %3775 = vmatpush.msra.mxu0 0.0
        %3776 = vmatpush.msra.mxu0 0.0
        %3777 = vmatpush.msra.mxu0 0.0
        %3778 = vmatpush.msra.mxu0 0.0
        %3779 = vmatpush.msra.mxu0 0.0
        %3780 = vmatpush.msra.mxu0 %v3703
        %3781 = vmatpush.msra.mxu0 %v3702
        %3782 = vmatpush.msra.mxu0 %v3701
        %3783 = vmatpush.msra.mxu0 %v3700
        %3784 = vmatmul.f32.gmra.mxu0 %v3706
        %v3785 = vpop.f32.mrf.mxu0
        %v3786 = vadd.f32 0.0, %v3785
        %3787 = vdwg.mxu0
        %v3792 = vrot.slane %v3726, 2
        %v3793 = vrot.slane %v3746, 2
        %v3794 = vrot.slane %v3766, 2
        %v3795 = vrot.slane %v3786, 2
        %v3800 = vadd.f32 %v2609, %v3792
        %v3801 = vadd.f32 %v2610, %v3793
        %v3802 = vadd.f32 %v2611, %v3794
        %v3803 = vadd.f32 %v2612, %v3795
        %v3804 = vxor.u32 %v3800, 2147483648
        %v3805 = vmul.f32 %v3804, 1.442695
        %v3806 = vpow.pop %v3805
        %v3807 = vadd.f32 %v3806, 1.0
        %v3808 = vrcp.pop %v3807
        %v3809 = vmul.f32 %v3807, %v3808
        %v3810 = vsub.f32 1.0, %v3809
        %v3811 = vmul.f32 %v3808, %v3810
        %v3812 = vadd.f32 %v3808, %v3811
        %vm3813 = vweird.f32 %v3807
        %vm3814 = vweird.f32 %v3808
        %vm3815 = vmor %vm3813, %vm3814
        %v3816 = vsel %vm3815, %v3808, %v3812
        %v3817 = vand.u32 2147483647, %v3807
        %vm3818 = vcmp.eq.f32.partialorder %v3817, 8.507059e+37
        %v3819 = vand.u32 %v3807, 2147483648
        %v3820 = vor.u32 1.1754944e-38, %v3819
        %v3821 = vsel %vm3818, %v3820, %v3816
        %v3822 = vmul.f32 1.0, %v3821
        %v3823 = vxor.u32 %v3801, 2147483648
        %v3824 = vmul.f32 %v3823, 1.442695
        %v3825 = vpow.pop %v3824
        %v3826 = vadd.f32 %v3825, 1.0
        %v3827 = vrcp.pop %v3826
        %v3828 = vmul.f32 %v3826, %v3827
        %v3829 = vsub.f32 1.0, %v3828
        %v3830 = vmul.f32 %v3827, %v3829
        %v3831 = vadd.f32 %v3827, %v3830
        %vm3832 = vweird.f32 %v3826
        %vm3833 = vweird.f32 %v3827
        %vm3834 = vmor %vm3832, %vm3833
        %v3835 = vsel %vm3834, %v3827, %v3831
        %v3836 = vand.u32 2147483647, %v3826
        %vm3837 = vcmp.eq.f32.partialorder %v3836, 8.507059e+37
        %v3838 = vand.u32 %v3826, 2147483648
        %v3839 = vor.u32 1.1754944e-38, %v3838
        %v3840 = vsel %vm3837, %v3839, %v3835
        %v3841 = vmul.f32 1.0, %v3840
        %v3842 = vtanh.pop %v3802
        %v3843 = vxor.u32 %v3803, 2147483648
        %v3844 = vmul.f32 %v3843, 1.442695
        %v3845 = vpow.pop %v3844
        %v3846 = vadd.f32 %v3845, 1.0
        %v3847 = vrcp.pop %v3846
        %v3848 = vmul.f32 %v3846, %v3847
        %v3849 = vsub.f32 1.0, %v3848
        %v3850 = vmul.f32 %v3847, %v3849
        %v3851 = vadd.f32 %v3847, %v3850
        %vm3852 = vweird.f32 %v3846
        %vm3853 = vweird.f32 %v3847
        %vm3854 = vmor %vm3852, %vm3853
        %v3855 = vsel %vm3854, %v3847, %v3851
        %v3856 = vand.u32 2147483647, %v3846
        %vm3857 = vcmp.eq.f32.partialorder %v3856, 8.507059e+37
        %v3858 = vand.u32 %v3846, 2147483648
        %v3859 = vor.u32 1.1754944e-38, %v3858
        %v3860 = vsel %vm3857, %v3859, %v3855
        %v3861 = vmul.f32 1.0, %v3860
        %v3863 = vrot.slane %v3685, 7
        %v3865 = vmul.f32 %v3841, %v3863
        %v3866 = vmul.f32 %v3822, %v3842
        %v3867 = vadd.f32 %v3865, %v3866
        %v3868 = vtanh.pop %v3867
        %v3869 = vmul.f32 %v3861, %v3868
        %v3870 = vld [vmem:[%s17] sm:$0xff]
        %v3871 = vld [vmem:[%s17 + $0x8] sm:$0xff]
        %v3872 = vld [vmem:[%s17 + $0x10] sm:$0xff]
        %v3873 = vld [vmem:[%s17 + $0x18] sm:$0xff]
        %v3874 = vld [vmem:[%s17 + $0x20] sm:$0xff]
        %v3875 = vld [vmem:[%s17 + $0x28] sm:$0xff]
        %v3876 = vld [vmem:[%s17 + $0x30] sm:$0xff]
        %v3877 = vld [vmem:[%s17 + $0x38] sm:$0xff]
        %v3878 = vld [vmem:[%s17 + $0x40] sm:$0xff]
        %v3879 = vld [vmem:[%s17 + $0x48] sm:$0xff]
        %v3880 = vld [vmem:[%s17 + $0x50] sm:$0xff]
        %v3881 = vld [vmem:[%s17 + $0x58] sm:$0xff]
        %v3882 = vld [vmem:[%s17 + $0x60] sm:$0xff]
        %v3883 = vld [vmem:[%s17 + $0x68] sm:$0xff]
        %v3884 = vld [vmem:[%s17 + $0x70] sm:$0xff]
        %v3885 = vld [vmem:[%s17 + $0x78] sm:$0xff]
        %v3887 = vrot.slane %v3869, 6
        %v3888 = vsel %vm683, %v3887, 0
        %3890 = vmatpush.msra.mxu0 0.0
        %3891 = vmatpush.msra.mxu0 0.0
        %3892 = vmatpush.msra.mxu0 0.0
        %3893 = vmatpush.msra.mxu0 0.0
        %3894 = vmatpush.msra.mxu0 0.0
        %3895 = vmatpush.msra.mxu0 0.0
        %3896 = vmatpush.msra.mxu0 0.0
        %3897 = vmatpush.msra.mxu0 0.0
        %3898 = vmatpush.msra.mxu0 0.0
        %3899 = vmatpush.msra.mxu0 0.0
        %3900 = vmatpush.msra.mxu0 0.0
        %3901 = vmatpush.msra.mxu0 0.0
        %3902 = vmatpush.msra.mxu0 %v3873
        %3903 = vmatpush.msra.mxu0 %v3872
        %3904 = vmatpush.msra.mxu0 %v3871
        %3905 = vmatpush.msra.mxu0 %v3870
        %3906 = vmatmul.f32.gmra.mxu0 %v3888
        %v3907 = vpop.f32.mrf.mxu0
        %v3908 = vadd.f32 0.0, %v3907
        %3909 = vdwg.mxu0
        %3910 = vmatpush.msra.mxu0 0.0
        %3911 = vmatpush.msra.mxu0 0.0
        %3912 = vmatpush.msra.mxu0 0.0
        %3913 = vmatpush.msra.mxu0 0.0
        %3914 = vmatpush.msra.mxu0 0.0
        %3915 = vmatpush.msra.mxu0 0.0
        %3916 = vmatpush.msra.mxu0 0.0
        %3917 = vmatpush.msra.mxu0 0.0
        %3918 = vmatpush.msra.mxu0 0.0
        %3919 = vmatpush.msra.mxu0 0.0
        %3920 = vmatpush.msra.mxu0 0.0
        %3921 = vmatpush.msra.mxu0 0.0
        %3922 = vmatpush.msra.mxu0 %v3877
        %3923 = vmatpush.msra.mxu0 %v3876
        %3924 = vmatpush.msra.mxu0 %v3875
        %3925 = vmatpush.msra.mxu0 %v3874
        %3926 = vmatmul.f32.gmra.mxu0 %v3888
        %v3927 = vpop.f32.mrf.mxu0
        %v3928 = vadd.f32 0.0, %v3927
        %3929 = vdwg.mxu0
        %3930 = vmatpush.msra.mxu0 0.0
        %3931 = vmatpush.msra.mxu0 0.0
        %3932 = vmatpush.msra.mxu0 0.0
        %3933 = vmatpush.msra.mxu0 0.0
        %3934 = vmatpush.msra.mxu0 0.0
        %3935 = vmatpush.msra.mxu0 0.0
        %3936 = vmatpush.msra.mxu0 0.0
        %3937 = vmatpush.msra.mxu0 0.0
        %3938 = vmatpush.msra.mxu0 0.0
        %3939 = vmatpush.msra.mxu0 0.0
        %3940 = vmatpush.msra.mxu0 0.0
        %3941 = vmatpush.msra.mxu0 0.0
        %3942 = vmatpush.msra.mxu0 %v3881
        %3943 = vmatpush.msra.mxu0 %v3880
        %3944 = vmatpush.msra.mxu0 %v3879
        %3945 = vmatpush.msra.mxu0 %v3878
        %3946 = vmatmul.f32.gmra.mxu0 %v3888
        %v3947 = vpop.f32.mrf.mxu0
        %v3948 = vadd.f32 0.0, %v3947
        %3949 = vdwg.mxu0
        %3950 = vmatpush.msra.mxu0 0.0
        %3951 = vmatpush.msra.mxu0 0.0
        %3952 = vmatpush.msra.mxu0 0.0
        %3953 = vmatpush.msra.mxu0 0.0
        %3954 = vmatpush.msra.mxu0 0.0
        %3955 = vmatpush.msra.mxu0 0.0
        %3956 = vmatpush.msra.mxu0 0.0
        %3957 = vmatpush.msra.mxu0 0.0
        %3958 = vmatpush.msra.mxu0 0.0
        %3959 = vmatpush.msra.mxu0 0.0
        %3960 = vmatpush.msra.mxu0 0.0
        %3961 = vmatpush.msra.mxu0 0.0
        %3962 = vmatpush.msra.mxu0 %v3885
        %3963 = vmatpush.msra.mxu0 %v3884
        %3964 = vmatpush.msra.mxu0 %v3883
        %3965 = vmatpush.msra.mxu0 %v3882
        %3966 = vmatmul.f32.gmra.mxu0 %v3888
        %v3967 = vpop.f32.mrf.mxu0
        %v3968 = vadd.f32 0.0, %v3967
        %3969 = vdwg.mxu0
        %v3974 = vrot.slane %v3908, 1
        %v3975 = vrot.slane %v3928, 1
        %v3976 = vrot.slane %v3948, 1
        %v3977 = vrot.slane %v3968, 1
        %v3982 = vadd.f32 %v2609, %v3974
        %v3983 = vadd.f32 %v2610, %v3975
        %v3984 = vadd.f32 %v2611, %v3976
        %v3985 = vadd.f32 %v2612, %v3977
        %v3986 = vxor.u32 %v3982, 2147483648
        %v3987 = vmul.f32 %v3986, 1.442695
        %v3988 = vpow.pop %v3987
        %v3989 = vadd.f32 %v3988, 1.0
        %v3990 = vrcp.pop %v3989
        %v3991 = vmul.f32 %v3989, %v3990
        %v3992 = vsub.f32 1.0, %v3991
        %v3993 = vmul.f32 %v3990, %v3992
        %v3994 = vadd.f32 %v3990, %v3993
        %vm3995 = vweird.f32 %v3989
        %vm3996 = vweird.f32 %v3990
        %vm3997 = vmor %vm3995, %vm3996
        %v3998 = vsel %vm3997, %v3990, %v3994
        %v3999 = vand.u32 2147483647, %v3989
        %vm4000 = vcmp.eq.f32.partialorder %v3999, 8.507059e+37
        %v4001 = vand.u32 %v3989, 2147483648
        %v4002 = vor.u32 1.1754944e-38, %v4001
        %v4003 = vsel %vm4000, %v4002, %v3998
        %v4004 = vmul.f32 1.0, %v4003
        %v4005 = vxor.u32 %v3983, 2147483648
        %v4006 = vmul.f32 %v4005, 1.442695
        %v4007 = vpow.pop %v4006
        %v4008 = vadd.f32 %v4007, 1.0
        %v4009 = vrcp.pop %v4008
        %v4010 = vmul.f32 %v4008, %v4009
        %v4011 = vsub.f32 1.0, %v4010
        %v4012 = vmul.f32 %v4009, %v4011
        %v4013 = vadd.f32 %v4009, %v4012
        %vm4014 = vweird.f32 %v4008
        %vm4015 = vweird.f32 %v4009
        %vm4016 = vmor %vm4014, %vm4015
        %v4017 = vsel %vm4016, %v4009, %v4013
        %v4018 = vand.u32 2147483647, %v4008
        %vm4019 = vcmp.eq.f32.partialorder %v4018, 8.507059e+37
        %v4020 = vand.u32 %v4008, 2147483648
        %v4021 = vor.u32 1.1754944e-38, %v4020
        %v4022 = vsel %vm4019, %v4021, %v4017
        %v4023 = vmul.f32 1.0, %v4022
        %v4024 = vtanh.pop %v3984
        %v4025 = vxor.u32 %v3985, 2147483648
        %v4026 = vmul.f32 %v4025, 1.442695
        %v4027 = vpow.pop %v4026
        %v4028 = vadd.f32 %v4027, 1.0
        %v4029 = vrcp.pop %v4028
        %v4030 = vmul.f32 %v4028, %v4029
        %v4031 = vsub.f32 1.0, %v4030
        %v4032 = vmul.f32 %v4029, %v4031
        %v4033 = vadd.f32 %v4029, %v4032
        %vm4034 = vweird.f32 %v4028
        %vm4035 = vweird.f32 %v4029
        %vm4036 = vmor %vm4034, %vm4035
        %v4037 = vsel %vm4036, %v4029, %v4033
        %v4038 = vand.u32 2147483647, %v4028
        %vm4039 = vcmp.eq.f32.partialorder %v4038, 8.507059e+37
        %v4040 = vand.u32 %v4028, 2147483648
        %v4041 = vor.u32 1.1754944e-38, %v4040
        %v4042 = vsel %vm4039, %v4041, %v4037
        %v4043 = vmul.f32 1.0, %v4042
        %v4045 = vrot.slane %v3867, 7
        %v4047 = vmul.f32 %v4023, %v4045
        %v4048 = vmul.f32 %v4004, %v4024
        %v4049 = vadd.f32 %v4047, %v4048
        %v4050 = vtanh.pop %v4049
        %v4051 = vmul.f32 %v4043, %v4050
        %v4052 = vld [vmem:[%s20] sm:$0xff]
        %v4053 = vld [vmem:[%s20 + $0x8] sm:$0xff]
        %v4054 = vld [vmem:[%s20 + $0x10] sm:$0xff]
        %v4055 = vld [vmem:[%s20 + $0x18] sm:$0xff]
        %v4056 = vld [vmem:[%s21] sm:$0x1]
        %v4058 = vrot.slane %v4051, 7
        %v4059 = vsel %vm683, %v4058, 0
        %4061 = vmatpush.msra.mxu0 0.0
        %4062 = vmatpush.msra.mxu0 0.0
        %4063 = vmatpush.msra.mxu0 0.0
        %4064 = vmatpush.msra.mxu0 0.0
        %4065 = vmatpush.msra.mxu0 0.0
        %4066 = vmatpush.msra.mxu0 0.0
        %4067 = vmatpush.msra.mxu0 0.0
        %4068 = vmatpush.msra.mxu0 0.0
        %4069 = vmatpush.msra.mxu0 0.0
        %4070 = vmatpush.msra.mxu0 0.0
        %4071 = vmatpush.msra.mxu0 0.0
        %4072 = vmatpush.msra.mxu0 0.0
        %4073 = vmatpush.msra.mxu0 %v4055
        %4074 = vmatpush.msra.mxu0 %v4054
        %4075 = vmatpush.msra.mxu0 %v4053
        %4076 = vmatpush.msra.mxu0 %v4052
        %4077 = vmatmul.f32.gmra.mxu0 %v4059
        %v4078 = vpop.f32.mrf.mxu0
        %v4079 = vadd.f32 %v4056, %v4078
        %4080 = vdwg.mxu0
        %4081 = vst [vmem:[%s673] sm:$0x1] %v4079
        %s4082 = sand.u32 %s511, 1
        %s4083 = scalar_lea.sflag [#allocation3], %s4082
        %s4084 = sand.u32 %s511, 1
        %s4085 = scalar_lea.vmem [#allocation2], %s4084
        // Predicated region
        $region109: #{transformer_forward.1} parent=107 // pred_check
          %p4086 = pneg %p521
        $region110: #{transformer_forward.1} parent=107 // pred_check_branch
          %4088 = sbr.rel (%p4086) target = $region112
        $region111: #{transformer_forward.1} parent=107 // pred_region
          %4090 = vsyncadd %s4083, 0
          %s4091 = scalar_lea.hbm %s22, %s36
          %s4093 = sshll.u32 %s4085, 4
          %s4094 = int_to_ptr.vmem [resolvable:$true] %s4093
          %s4095 = sshll.u32 %s4091, 4
          %s4096 = int_to_ptr.hbm [resolvable:$true] %s4095
          %4098 = dma.vmem_to_hbm [thread:$0]  %s4094, 16, %s4096, %s4083
        $region112: #{transformer_forward.1} parent=107 // pred_fallthru
          _
      $region108: #{transformer_forward.1} parent=5 // pred_fallthru
        _
      %p4099 = scmp.le.s32.totalorder 2, %s31
      // Predicated region
      $region113: #{transformer_forward.1} parent=5 // pred_check
        %p4100 = pneg %p4099
      $region114: #{transformer_forward.1} parent=5 // pred_check_branch
        %4102 = sbr.rel (%p4100) target = $region116
      $region115: #{transformer_forward.1} parent=5 // pred_region
        %s4103 = ssub.s32 %s31, 2
        // Predicated region
        $region117: #{transformer_forward.1} parent=115 // pred_check
          %p4104 = pneg %p527
        $region118: #{transformer_forward.1} parent=115 // pred_check_branch
          %4106 = sbr.rel (%p4104) target = $region120
        $region119: #{transformer_forward.1} parent=115 // pred_region
          %s4107 = sand.u32 %s512, 1
          %s4108 = scalar_lea.sflag [#allocation3], %s4107
          %s4109 = sand.u32 %s512, 1
          %s4110 = scalar_lea.vmem [#allocation2], %s4109
          %4112 = dma.done %s4108, 16
        $region120: #{transformer_forward.1} parent=115 // pred_fallthru
          _
      $region116: #{transformer_forward.1} parent=5 // pred_fallthru
        _
    $region6: #{transformer_forward.1} parent=1 // loop_footer
      %s35 = sadd.s32 1, %s31
    $region7: #{transformer_forward.1} parent=1 // loop_footer_branch
      %30 = sbr.rel target = $region3
    $region8: #{transformer_forward.1} parent=1 // loop_exit
      _
    %4113 = vsyncpa [#allocation3], 1
    %s4114 = scalar_lea.sflag [#allocation3], 1
    %4115 = vsyncpa %s4114, 1

</llo_original>
